<compile_context>
chip_gen: v5e
topology: v5e:2x2
jax: 0.10.0
libtpu: 0.0.40
codegen_flags: <defaults>
</compile_context>

<pallas_src>
import functools

import jax
import jax.numpy as jnp
from jax import lax
from jax.experimental import pallas as pl
from jax.experimental.pallas import tpu as pltpu


# --------------------------------------------------------------------------------------
# In-kernel helpers
# --------------------------------------------------------------------------------------
def _pool2x2(y):
    """2x2 max-pool, stride 2.  y: (R, W, C) f32 with R = B*H (H even, rows contiguous
    per image, so adjacent-row pairs never cross an image boundary)."""
    R, W, C = y.shape
    y = jnp.max(y.reshape(R // 2, 2, W, C), axis=1)          # pool H (adjacent row pairs)
    # TODO(synk): this reshape has a sub-8 second-to-last dim (2) -> small relayout;
    #             negligible at these sizes.
    y = jnp.max(y.reshape(R // 2, W // 2, 2, C), axis=2)     # pool W
    return y                                                 # (R//2, W//2, C)


def _zero_halo(xp_ref, B, H, W):
    """Zero only the 1-pixel halo strips of the padded scratch (the interior is always
    overwritten).  Runs every grid step (do NOT gate on program_id: with 'parallel'
    semantics the second TensorCore's scratch would never be initialized)."""
    C = xp_ref.shape[-1]
    dt = xp_ref.dtype
    xp_ref[:, 0:1, :, :] = jnp.zeros((B, 1, W + 2, C), dt)
    xp_ref[:, H + 1:H + 2, :, :] = jnp.zeros((B, 1, W + 2, C), dt)
    xp_ref[:, :, 0:1, :] = jnp.zeros((B, H + 2, 1, C), dt)
    xp_ref[:, :, W + 1:W + 2, :] = jnp.zeros((B, H + 2, 1, C), dt)


def _im2col(xp_ref, ps_ref, B, H, W, Cin):
    """Build the (B*H*W, 9*Cin) patch matrix from the zero-haloed padded scratch.
    Tap order is [kx, ky, cin]: per (image, kx) ONE contiguous (H*W, 3*Cin) slab store."""
    Hp = H + 2
    HW = H * W
    for b in range(B):
        r0 = b * HW
        for kx in range(3):
            # Slice directly from the ref (don't materialize the whole padded tile).
            col = xp_ref[b, :, kx:kx + W, :].reshape(Hp * W, Cin)       # ((H+2)*W, Cin)
            slab = jnp.concatenate(
                [col[ky * W: ky * W + HW, :] for ky in range(3)], axis=-1)  # (HW, 3*Cin)
            ps_ref[r0:r0 + HW, kx * 3 * Cin:(kx + 1) * 3 * Cin] = slab


def _make_kernel(B, H, W, C1, C2, C3):
    H2, W2 = H // 2, W // 2
    H4, W4 = H // 4, W // 4
    H8, W8 = H // 8, W // 8

    def kernel(p1_ref, w1_ref, w2_ref, w3_ref, bias_ref,
               o_ref, xp2, ps2, xp3, ps3):
        b1 = bias_ref[:, 0:C1]
        b2 = bias_ref[:, C1:C1 + C2]
        b3 = bias_ref[:, C1 + C2:C1 + C2 + C3]

        # ---- block 1: single MXU matmul on the wrapper-built im2col patches ----
        a1 = jnp.dot(p1_ref[...], w1_ref[...], preferred_element_type=jnp.float32)
        y1 = jnp.maximum(a1 + b1, 0.0)                        # (B*H*W, C1) f32
        y1 = _pool2x2(y1.reshape(B * H, W, C1))               # (B*H2, W2, C1)
        # dropout (eval) = identity

        # ---- block 2: intermediate stays in VMEM ----
        _zero_halo(xp2, B, H2, W2)
        xp2[:, 1:H2 + 1, 1:W2 + 1, :] = y1.reshape(B, H2, W2, C1).astype(xp2.dtype)
        _im2col(xp2, ps2, B, H2, W2, C1)
        a2 = jnp.dot(ps2[...], w2_ref[...], preferred_element_type=jnp.float32)
        y2 = jnp.maximum(a2 + b2, 0.0)                        # (B*H2*W2, C2)
        y2 = _pool2x2(y2.reshape(B * H2, W2, C2))             # (B*H4, W4, C2)

        # ---- block 3 ----
        _zero_halo(xp3, B, H4, W4)
        xp3[:, 1:H4 + 1, 1:W4 + 1, :] = y2.reshape(B, H4, W4, C2).astype(xp3.dtype)
        _im2col(xp3, ps3, B, H4, W4, C2)
        a3 = jnp.dot(ps3[...], w3_ref[...], preferred_element_type=jnp.float32)
        y3 = jnp.maximum(a3 + b3, 0.0)                        # (B*H4*W4, C3)
        y3 = _pool2x2(y3.reshape(B * H4, W4, C3))             # (B*H8, W8, C3)

        # Lane/sublane-dense final store: (B*H8*W8, 128).
        o_ref[...] = y3.reshape(B * H8 * W8, C3).astype(o_ref.dtype)

    return kernel


# --------------------------------------------------------------------------------------
# Wrapper
# --------------------------------------------------------------------------------------
def frame_cnn_forward_nhwc(x_nhwc, p1, p2, p3, batch_tile=None):
    """x_nhwc: (N, H, W, Cin) float32 -> (N, H//8, W//8, 128) float32."""
    N, H, W, Cin = x_nhwc.shape
    assert H % 8 == 0 and W % 8 == 0, "H and W must be divisible by 8 (three 2x2 pools)"
    C1, C2, C3 = p1["w"].shape[-1], p2["w"].shape[-1], p3["w"].shape[-1]
    H2, W2, H4, W4 = H // 2, W // 2, H // 4, W // 4
    H8, W8 = H // 8, W // 8
    hw8 = H8 * W8

    # Images per grid step: amortize per-step overhead / fill the MXU M-dim, while keeping
    # the final output block sublane-dense (B*hw8 must be a multiple of 8).
    if batch_tile is None:
        B = max(1, min(N, 8))
        while (B * hw8) % 8 != 0:
            B += 1
    else:
        B = int(batch_tile)
        assert (B * hw8) % 8 == 0, "batch_tile * (H/8)*(W/8) must be a multiple of 8"
    n_steps = -(-N // B)
    Npad = n_steps * B
    if Npad != N:
        x_nhwc = jnp.pad(x_nhwc, ((0, Npad - N), (0, 0), (0, 0), (0, 0)))

    # Layer-1 (Cin=3) im2col in the wrapper: avoids 3-lane-wide masked stores in-kernel.
    # Tap order [kx, ky, cin] matches the flattened weights below.
    xpad = jnp.pad(x_nhwc, ((0, 0), (1, 1), (1, 1), (0, 0)))
    slabs = [xpad[:, ky:ky + H, kx:kx + W, :] for kx in range(3) for ky in range(3)]
    patches1 = jnp.concatenate(slabs, axis=-1).reshape(Npad * H * W, 9 * Cin)
    patches1 = patches1.astype(jnp.bfloat16)

    def flat_w(p):
        # Fold the BN scale into the weights; HWIO (ky,kx,cin,cout) -> K order [kx,ky,cin].
        w = (p["w"] * p["scale"]).astype(jnp.float32)
        w = jnp.transpose(w, (1, 0, 2, 3))                    # (kx, ky, cin, cout)
        return w.reshape(9 * w.shape[2], w.shape[3]).astype(jnp.bfloat16)

    bias_all = jnp.concatenate(
        [p["bias"].reshape(1, -1).astype(jnp.float32) for p in (p1, p2, p3)], axis=-1)

    kernel = _make_kernel(B, H, W, C1, C2, C3)

    in_specs = [
        pl.BlockSpec((B * H * W, 9 * Cin), lambda i: (i, 0)),   # layer-1 patches
        pl.BlockSpec((9 * Cin, C1), lambda i: (0, 0)),          # w1 (scale-folded, bf16)
        pl.BlockSpec((9 * C1, C2), lambda i: (0, 0)),           # w2
        pl.BlockSpec((9 * C2, C3), lambda i: (0, 0)),           # w3
        pl.BlockSpec((1, C1 + C2 + C3), lambda i: (0, 0)),      # merged biases
    ]
    scratch_shapes = [
        pltpu.VMEM((B, H2 + 2, W2 + 2, C1), jnp.bfloat16),      # xp2 (padded activations)
        pltpu.VMEM((B * H2 * W2, 9 * C1), jnp.bfloat16),        # ps2 (im2col patches)
        pltpu.VMEM((B, H4 + 2, W4 + 2, C2), jnp.bfloat16),      # xp3
        pltpu.VMEM((B * H4 * W4, 9 * C2), jnp.bfloat16),        # ps3
    ]

    out = pl.pallas_call(
        kernel,
        out_shape=jax.ShapeDtypeStruct((Npad * hw8, C3), x_nhwc.dtype),
        grid=(n_steps,),
        in_specs=in_specs,
        out_specs=pl.BlockSpec((B * hw8, C3), lambda i: (i, 0)),
        scratch_shapes=scratch_shapes,
        compiler_params=pltpu.CompilerParams(
            dimension_semantics=("parallel",)),                 # megacore: split images
    )(patches1, flat_w(p1), flat_w(p2), flat_w(p3), bias_all)

    return out.reshape(Npad, H8, W8, C3)[:N]


@functools.partial(jax.jit, static_argnames=("batch_tile",))
def frame_cnn_forward(x_nchw, p1, p2, p3, batch_tile=None):
    """Pallas FrameCNN.forward (eval mode).  x_nchw: (N, Cin, H, W) -> (N, 128, H/8, W/8)."""
    x = jnp.transpose(x_nchw, (0, 2, 3, 1))           # NCHW -> NHWC
    y = frame_cnn_forward_nhwc(x, p1, p2, p3, batch_tile)
    return jnp.transpose(y, (0, 3, 1, 2))             # NHWC -> NCHW


# --------------------------------------------------------------------------------------
# Parameters & references
# --------------------------------------------------------------------------------------
def make_block_params(key, cin, cout, eps=1e-5):
    """Deterministic synthetic parameters for Conv2d(cin->cout, 3x3) + BatchNorm2d."""
    ks = jax.random.split(key, 6)
    w = jax.random.normal(ks[0], (3, 3, cin, cout), jnp.float32) * 0.1   # HWIO
    b_conv = jax.random.normal(ks[1], (cout,), jnp.float32) * 0.1
    gamma = jax.random.uniform(ks[2], (cout,), jnp.float32, 0.5, 1.5)
    beta = jax.random.normal(ks[3], (cout,), jnp.float32) * 0.1
    run_mean = jax.random.normal(ks[4], (cout,), jnp.float32) * 0.1
    run_var = jax.random.uniform(ks[5], (cout,), jnp.float32, 0.5, 1.5)
    scale = gamma / jnp.sqrt(run_var + eps)                 # folded BN (inference)
    bias = (b_conv - run_mean) * scale + beta
    return {"w": w, "scale": scale, "bias": bias,
            "b_conv": b_conv, "gamma": gamma, "beta": beta,
            "mean": run_mean, "var": run_var, "eps": eps}


def _ref_block_f32(x_nhwc, p):
    y = lax.conv_general_dilated(
        x_nhwc, p["w"], window_strides=(1, 1), padding="SAME",
        dimension_numbers=("NHWC", "HWIO", "NHWC"))
    y = y + p["b_conv"]
    y = (y - p["mean"]) / jnp.sqrt(p["var"] + p["eps"]) * p["gamma"] + p["beta"]
    y = jnp.maximum(y, 0.0)
    return lax.reduce_window(y, -jnp.inf, lax.max, (1, 2, 2, 1), (1, 2, 2, 1), "VALID")


def frame_cnn_reference_f32(x_nchw, p1, p2, p3):
    """Full-f32 module semantics (eval mode)."""
    x = jnp.transpose(x_nchw, (0, 2, 3, 1))
    for p in (p1, p2, p3):
        x = _ref_block_f32(x, p)
    return jnp.transpose(x, (0, 3, 1, 2))


def frame_cnn_reference_bf16(x_nchw, p1, p2, p3):
    """Same math as the kernel (bf16 operands / folded scale, f32 accumulation)."""
    x = jnp.transpose(x_nchw, (0, 2, 3, 1))
    for p in (p1, p2, p3):
        w = (p["w"] * p["scale"]).astype(jnp.bfloat16)
        y = lax.conv_general_dilated(
            x.astype(jnp.bfloat16), w, window_strides=(1, 1), padding="SAME",
            dimension_numbers=("NHWC", "HWIO", "NHWC"),
            preferred_element_type=jnp.float32)
        y = jnp.maximum(y + p["bias"], 0.0)
        x = lax.reduce_window(y, -jnp.inf, lax.max, (1, 2, 2, 1), (1, 2, 2, 1), "VALID")
    return jnp.transpose(x, (0, 3, 1, 2))


# --------------------------------------------------------------------------------------
if __name__ == "__main__":
    key = jax.random.PRNGKey(0)
    k_in, k1, k2, k3 = jax.random.split(key, 4)

    # Small shapes consistent with the module: batch=2, in_channels=3, spatial=16.
    N, CIN, H, W = 2, 3, 16, 16
    x = jax.random.normal(k_in, (N, CIN, H, W), jnp.float32)

    p1 = make_block_params(k1, CIN, 32)
    p2 = make_block_params(k2, 32, 64)
    p3 = make_block_params(k3, 64, 128)

    out = jax.block_until_ready(frame_cnn_forward(x, p1, p2, p3))
    assert out.shape == (N, 128, H // 8, W // 8), out.shape

    # Check 1 (tight): same-math reference (bf16 operands, f32 accumulation).
    ref_b = jax.block_until_ready(frame_cnn_reference_bf16(x, p1, p2, p3))
    err_b = float(jnp.max(jnp.abs(out - ref_b)))
    assert jnp.allclose(out, ref_b, atol=1e-2, rtol=1e-2), err_b

    # Check 2 (loose): full-f32 module semantics; tolerance sized for bf16 MXU operands.
    ref_f = jax.block_until_ready(frame_cnn_reference_f32(x, p1, p2, p3))
    err_f = float(jnp.max(jnp.abs(out - ref_f)))
    assert jnp.allclose(out, ref_f, atol=2e-1, rtol=5e-2), err_f

    print("KERNEL_OK")
</pallas_src>

<mosaic_0001>
module attributes {stable_mosaic.version = 11 : i64} {
  func.func @kernel(%arg0: i32, %arg1: memref<512x27xbf16, #tpu.memory_space<vmem>>, %arg2: memref<27x32xbf16, #tpu.memory_space<vmem>>, %arg3: memref<288x64xbf16, #tpu.memory_space<vmem>>, %arg4: memref<576x128xbf16, #tpu.memory_space<vmem>>, %arg5: memref<1x224xf32, #tpu.memory_space<vmem>>, %arg6: memref<8x128xf32, #tpu.memory_space<vmem>>, %arg7: memref<2x10x10x32xbf16, #tpu.memory_space<vmem>>, %arg8: memref<128x288xbf16, #tpu.memory_space<vmem>>, %arg9: memref<2x6x6x64xbf16, #tpu.memory_space<vmem>>, %arg10: memref<32x576xbf16, #tpu.memory_space<vmem>>) attributes {dimension_semantics = [#tpu.dimension_semantics<parallel>], iteration_bounds = array<i64: 1>, scalar_prefetch = 0 : i64, scratch_operands = 4 : i64, tpu.core_type = #tpu.core_type<tc>, window_params = [{transform_indices = @transform_0, window_bounds = array<i64: 512, 27>}, {pipeline_mode = #tpu.pipeline_mode<synchronous>, transform_indices = @transform_1, window_bounds = array<i64: 27, 32>}, {pipeline_mode = #tpu.pipeline_mode<synchronous>, transform_indices = @transform_2, window_bounds = array<i64: 288, 64>}, {pipeline_mode = #tpu.pipeline_mode<synchronous>, transform_indices = @transform_3, window_bounds = array<i64: 576, 128>}, {pipeline_mode = #tpu.pipeline_mode<synchronous>, transform_indices = @transform_4, window_bounds = array<i64: 1, 224>}, {transform_indices = @transform_5, window_bounds = array<i64: 8, 128>}]} {
    %c0 = arith.constant 0 : index
    %c0_0 = arith.constant 0 : index
    %0 = vector.load %arg5[%c0, %c0_0] : memref<1x224xf32, #tpu.memory_space<vmem>>, vector<1x32xf32>
    %c0_1 = arith.constant 0 : index
    %c32 = arith.constant 32 : index
    %1 = vector.load %arg5[%c0_1, %c32] : memref<1x224xf32, #tpu.memory_space<vmem>>, vector<1x64xf32>
    %c0_2 = arith.constant 0 : index
    %c96 = arith.constant 96 : index
    %2 = vector.load %arg5[%c0_2, %c96] : memref<1x224xf32, #tpu.memory_space<vmem>>, vector<1x128xf32>
    %c0_3 = arith.constant 0 : index
    %c0_4 = arith.constant 0 : index
    %3 = vector.load %arg1[%c0_3, %c0_4] : memref<512x27xbf16, #tpu.memory_space<vmem>>, vector<512x27xbf16>
    %c0_5 = arith.constant 0 : index
    %c0_6 = arith.constant 0 : index
    %4 = vector.load %arg2[%c0_5, %c0_6] : memref<27x32xbf16, #tpu.memory_space<vmem>>, vector<27x32xbf16>
    %cst = arith.constant dense<0.000000e+00> : vector<512x32xf32>
    %5 = tpu.matmul %3, %4, %cst {dimension_numbers = #tpu.dot_dimension_numbers<[1], [0], [0], [1], [0, 0, 1, 1], [], []>} : vector<512x27xbf16>, vector<27x32xbf16>, vector<512x32xf32> -> vector<512x32xf32>
    %6 = vector.broadcast %0 : vector<1x32xf32> to vector<512x32xf32>
    %7 = arith.addf %5, %6 : vector<512x32xf32>
    %cst_7 = arith.constant 0.000000e+00 : f32
    %8 = vector.broadcast %cst_7 : f32 to vector<512x32xf32>
    %9 = arith.maximumf %7, %8 : vector<512x32xf32>
    %10 = vector.shape_cast %9 : vector<512x32xf32> to vector<32x16x32xf32>
    %11 = vector.shape_cast %10 : vector<32x16x32xf32> to vector<16x2x16x32xf32>
    %cst_8 = arith.constant dense<0xFF800000> : vector<16x16x32xf32>
    %12 = vector.multi_reduction <maximumf>, %11, %cst_8 [1] : vector<16x2x16x32xf32> to vector<16x16x32xf32>
    %13 = vector.shape_cast %12 : vector<16x16x32xf32> to vector<16x8x2x32xf32>
    %cst_9 = arith.constant dense<0xFF800000> : vector<16x8x32xf32>
    %14 = vector.multi_reduction <maximumf>, %13, %cst_9 [2] : vector<16x8x2x32xf32> to vector<16x8x32xf32>
    %cst_10 = arith.constant 0.000000e+00 : bf16
    %15 = vector.broadcast %cst_10 : bf16 to vector<2x1x10x32xbf16>
    %c0_11 = arith.constant 0 : index
    %c0_12 = arith.constant 0 : index
    %c0_13 = arith.constant 0 : index
    %c0_14 = arith.constant 0 : index
    %16 = vector.load %arg7[%c0_11, %c0_12, %c0_13, %c0_14] : memref<2x10x10x32xbf16, #tpu.memory_space<vmem>>, vector<2x1x10x32xbf16>
    tpu.vector_store %arg7[%c0_11, %c0_12, %c0_13, %c0_14], %15 {strides = array<i32>} : memref<2x10x10x32xbf16, #tpu.memory_space<vmem>>, vector<2x1x10x32xbf16>,
    %cst_15 = arith.constant 0.000000e+00 : bf16
    %17 = vector.broadcast %cst_15 : bf16 to vector<2x1x10x32xbf16>
    %c0_16 = arith.constant 0 : index
    %c9 = arith.constant 9 : index
    %c0_17 = arith.constant 0 : index
    %c0_18 = arith.constant 0 : index
    %18 = vector.load %arg7[%c0_16, %c9, %c0_17, %c0_18] : memref<2x10x10x32xbf16, #tpu.memory_space<vmem>>, vector<2x1x10x32xbf16>
    tpu.vector_store %arg7[%c0_16, %c9, %c0_17, %c0_18], %17 {strides = array<i32>} : memref<2x10x10x32xbf16, #tpu.memory_space<vmem>>, vector<2x1x10x32xbf16>,
    %cst_19 = arith.constant 0.000000e+00 : bf16
    %19 = vector.broadcast %cst_19 : bf16 to vector<2x10x1x32xbf16>
    %c0_20 = arith.constant 0 : index
    %c0_21 = arith.constant 0 : index
    %c0_22 = arith.constant 0 : index
    %c0_23 = arith.constant 0 : index
    %20 = vector.load %arg7[%c0_20, %c0_21, %c0_22, %c0_23] : memref<2x10x10x32xbf16, #tpu.memory_space<vmem>>, vector<2x10x1x32xbf16>
    tpu.vector_store %arg7[%c0_20, %c0_21, %c0_22, %c0_23], %19 {strides = array<i32>} : memref<2x10x10x32xbf16, #tpu.memory_space<vmem>>, vector<2x10x1x32xbf16>,
    %cst_24 = arith.constant 0.000000e+00 : bf16
    %21 = vector.broadcast %cst_24 : bf16 to vector<2x10x1x32xbf16>
    %c0_25 = arith.constant 0 : index
    %c0_26 = arith.constant 0 : index
    %c9_27 = arith.constant 9 : index
    %c0_28 = arith.constant 0 : index
    %22 = vector.load %arg7[%c0_25, %c0_26, %c9_27, %c0_28] : memref<2x10x10x32xbf16, #tpu.memory_space<vmem>>, vector<2x10x1x32xbf16>
    tpu.vector_store %arg7[%c0_25, %c0_26, %c9_27, %c0_28], %21 {strides = array<i32>} : memref<2x10x10x32xbf16, #tpu.memory_space<vmem>>, vector<2x10x1x32xbf16>,
    %23 = vector.shape_cast %14 : vector<16x8x32xf32> to vector<2x8x8x32xf32>
    %24 = arith.truncf %23 : vector<2x8x8x32xf32> to vector<2x8x8x32xbf16>
    %c0_29 = arith.constant 0 : index
    %c1 = arith.constant 1 : index
    %c1_30 = arith.constant 1 : index
    %c0_31 = arith.constant 0 : index
    %25 = vector.load %arg7[%c0_29, %c1, %c1_30, %c0_31] : memref<2x10x10x32xbf16, #tpu.memory_space<vmem>>, vector<2x8x8x32xbf16>
    tpu.vector_store %arg7[%c0_29, %c1, %c1_30, %c0_31], %24 {strides = array<i32>} : memref<2x10x10x32xbf16, #tpu.memory_space<vmem>>, vector<2x8x8x32xbf16>,
    %c0_32 = arith.constant 0 : index
    %c0_33 = arith.constant 0 : index
    %c0_34 = arith.constant 0 : index
    %c0_35 = arith.constant 0 : index
    %26 = vector.load %arg7[%c0_32, %c0_33, %c0_34, %c0_35] : memref<2x10x10x32xbf16, #tpu.memory_space<vmem>>, vector<1x10x8x32xbf16>
    %27 = vector.shape_cast %26 : vector<1x10x8x32xbf16> to vector<10x8x32xbf16>
    %28 = vector.shape_cast %27 : vector<10x8x32xbf16> to vector<80x32xbf16>
    %29 = vector.extract_strided_slice %28 {offsets = [0, 0], sizes = [64, 32], strides = [1, 1]} : vector<80x32xbf16> to vector<64x32xbf16>
    %30 = vector.extract_strided_slice %28 {offsets = [8, 0], sizes = [64, 32], strides = [1, 1]} : vector<80x32xbf16> to vector<64x32xbf16>
    %31 = vector.extract_strided_slice %28 {offsets = [16, 0], sizes = [64, 32], strides = [1, 1]} : vector<80x32xbf16> to vector<64x32xbf16>
    %32 = tpu.concatenate %29, %30, %31 in 1 : vector<64x32xbf16>, vector<64x32xbf16>, vector<64x32xbf16> -> vector<64x96xbf16>
    %c0_36 = arith.constant 0 : index
    %c0_37 = arith.constant 0 : index
    %33 = vector.load %arg8[%c0_36, %c0_37] : memref<128x288xbf16, #tpu.memory_space<vmem>>, vector<64x96xbf16>
    tpu.vector_store %arg8[%c0_36, %c0_37], %32 {strides = array<i32>} : memref<128x288xbf16, #tpu.memory_space<vmem>>, vector<64x96xbf16>,
    %c0_38 = arith.constant 0 : index
    %c0_39 = arith.constant 0 : index
    %c1_40 = arith.constant 1 : index
    %c0_41 = arith.constant 0 : index
    %34 = vector.load %arg7[%c0_38, %c0_39, %c1_40, %c0_41] : memref<2x10x10x32xbf16, #tpu.memory_space<vmem>>, vector<1x10x8x32xbf16>
    %35 = vector.shape_cast %34 : vector<1x10x8x32xbf16> to vector<10x8x32xbf16>
    %36 = vector.shape_cast %35 : vector<10x8x32xbf16> to vector<80x32xbf16>
    %37 = vector.extract_strided_slice %36 {offsets = [0, 0], sizes = [64, 32], strides = [1, 1]} : vector<80x32xbf16> to vector<64x32xbf16>
    %38 = vector.extract_strided_slice %36 {offsets = [8, 0], sizes = [64, 32], strides = [1, 1]} : vector<80x32xbf16> to vector<64x32xbf16>
    %39 = vector.extract_strided_slice %36 {offsets = [16, 0], sizes = [64, 32], strides = [1, 1]} : vector<80x32xbf16> to vector<64x32xbf16>
    %40 = tpu.concatenate %37, %38, %39 in 1 : vector<64x32xbf16>, vector<64x32xbf16>, vector<64x32xbf16> -> vector<64x96xbf16>
    %c0_42 = arith.constant 0 : index
    %c96_43 = arith.constant 96 : index
    %41 = vector.load %arg8[%c0_42, %c96_43] : memref<128x288xbf16, #tpu.memory_space<vmem>>, vector<64x96xbf16>
    tpu.vector_store %arg8[%c0_42, %c96_43], %40 {strides = array<i32>} : memref<128x288xbf16, #tpu.memory_space<vmem>>, vector<64x96xbf16>,
    %c0_44 = arith.constant 0 : index
    %c0_45 = arith.constant 0 : index
    %c2 = arith.constant 2 : index
    %c0_46 = arith.constant 0 : index
    %42 = vector.load %arg7[%c0_44, %c0_45, %c2, %c0_46] : memref<2x10x10x32xbf16, #tpu.memory_space<vmem>>, vector<1x10x8x32xbf16>
    %43 = vector.shape_cast %42 : vector<1x10x8x32xbf16> to vector<10x8x32xbf16>
    %44 = vector.shape_cast %43 : vector<10x8x32xbf16> to vector<80x32xbf16>
    %45 = vector.extract_strided_slice %44 {offsets = [0, 0], sizes = [64, 32], strides = [1, 1]} : vector<80x32xbf16> to vector<64x32xbf16>
    %46 = vector.extract_strided_slice %44 {offsets = [8, 0], sizes = [64, 32], strides = [1, 1]} : vector<80x32xbf16> to vector<64x32xbf16>
    %47 = vector.extract_strided_slice %44 {offsets = [16, 0], sizes = [64, 32], strides = [1, 1]} : vector<80x32xbf16> to vector<64x32xbf16>
    %48 = tpu.concatenate %45, %46, %47 in 1 : vector<64x32xbf16>, vector<64x32xbf16>, vector<64x32xbf16> -> vector<64x96xbf16>
    %c0_47 = arith.constant 0 : index
    %c192 = arith.constant 192 : index
    %49 = vector.load %arg8[%c0_47, %c192] : memref<128x288xbf16, #tpu.memory_space<vmem>>, vector<64x96xbf16>
    tpu.vector_store %arg8[%c0_47, %c192], %48 {strides = array<i32>} : memref<128x288xbf16, #tpu.memory_space<vmem>>, vector<64x96xbf16>,
    %c1_48 = arith.constant 1 : index
    %c0_49 = arith.constant 0 : index
    %c0_50 = arith.constant 0 : index
    %c0_51 = arith.constant 0 : index
    %50 = vector.load %arg7[%c1_48, %c0_49, %c0_50, %c0_51] : memref<2x10x10x32xbf16, #tpu.memory_space<vmem>>, vector<1x10x8x32xbf16>
    %51 = vector.shape_cast %50 : vector<1x10x8x32xbf16> to vector<10x8x32xbf16>
    %52 = vector.shape_cast %51 : vector<10x8x32xbf16> to vector<80x32xbf16>
    %53 = vector.extract_strided_slice %52 {offsets = [0, 0], sizes = [64, 32], strides = [1, 1]} : vector<80x32xbf16> to vector<64x32xbf16>
    %54 = vector.extract_strided_slice %52 {offsets = [8, 0], sizes = [64, 32], strides = [1, 1]} : vector<80x32xbf16> to vector<64x32xbf16>
    %55 = vector.extract_strided_slice %52 {offsets = [16, 0], sizes = [64, 32], strides = [1, 1]} : vector<80x32xbf16> to vector<64x32xbf16>
    %56 = tpu.concatenate %53, %54, %55 in 1 : vector<64x32xbf16>, vector<64x32xbf16>, vector<64x32xbf16> -> vector<64x96xbf16>
    %c64 = arith.constant 64 : index
    %c0_52 = arith.constant 0 : index
    %57 = vector.load %arg8[%c64, %c0_52] : memref<128x288xbf16, #tpu.memory_space<vmem>>, vector<64x96xbf16>
    tpu.vector_store %arg8[%c64, %c0_52], %56 {strides = array<i32>} : memref<128x288xbf16, #tpu.memory_space<vmem>>, vector<64x96xbf16>,
    %c1_53 = arith.constant 1 : index
    %c0_54 = arith.constant 0 : index
    %c1_55 = arith.constant 1 : index
    %c0_56 = arith.constant 0 : index
    %58 = vector.load %arg7[%c1_53, %c0_54, %c1_55, %c0_56] : memref<2x10x10x32xbf16, #tpu.memory_space<vmem>>, vector<1x10x8x32xbf16>
    %59 = vector.shape_cast %58 : vector<1x10x8x32xbf16> to vector<10x8x32xbf16>
    %60 = vector.shape_cast %59 : vector<10x8x32xbf16> to vector<80x32xbf16>
    %61 = vector.extract_strided_slice %60 {offsets = [0, 0], sizes = [64, 32], strides = [1, 1]} : vector<80x32xbf16> to vector<64x32xbf16>
    %62 = vector.extract_strided_slice %60 {offsets = [8, 0], sizes = [64, 32], strides = [1, 1]} : vector<80x32xbf16> to vector<64x32xbf16>
    %63 = vector.extract_strided_slice %60 {offsets = [16, 0], sizes = [64, 32], strides = [1, 1]} : vector<80x32xbf16> to vector<64x32xbf16>
    %64 = tpu.concatenate %61, %62, %63 in 1 : vector<64x32xbf16>, vector<64x32xbf16>, vector<64x32xbf16> -> vector<64x96xbf16>
    %c64_57 = arith.constant 64 : index
    %c96_58 = arith.constant 96 : index
    %65 = vector.load %arg8[%c64_57, %c96_58] : memref<128x288xbf16, #tpu.memory_space<vmem>>, vector<64x96xbf16>
    tpu.vector_store %arg8[%c64_57, %c96_58], %64 {strides = array<i32>} : memref<128x288xbf16, #tpu.memory_space<vmem>>, vector<64x96xbf16>,
    %c1_59 = arith.constant 1 : index
    %c0_60 = arith.constant 0 : index
    %c2_61 = arith.constant 2 : index
    %c0_62 = arith.constant 0 : index
    %66 = vector.load %arg7[%c1_59, %c0_60, %c2_61, %c0_62] : memref<2x10x10x32xbf16, #tpu.memory_space<vmem>>, vector<1x10x8x32xbf16>
    %67 = vector.shape_cast %66 : vector<1x10x8x32xbf16> to vector<10x8x32xbf16>
    %68 = vector.shape_cast %67 : vector<10x8x32xbf16> to vector<80x32xbf16>
    %69 = vector.extract_strided_slice %68 {offsets = [0, 0], sizes = [64, 32], strides = [1, 1]} : vector<80x32xbf16> to vector<64x32xbf16>
    %70 = vector.extract_strided_slice %68 {offsets = [8, 0], sizes = [64, 32], strides = [1, 1]} : vector<80x32xbf16> to vector<64x32xbf16>
    %71 = vector.extract_strided_slice %68 {offsets = [16, 0], sizes = [64, 32], strides = [1, 1]} : vector<80x32xbf16> to vector<64x32xbf16>
    %72 = tpu.concatenate %69, %70, %71 in 1 : vector<64x32xbf16>, vector<64x32xbf16>, vector<64x32xbf16> -> vector<64x96xbf16>
    %c64_63 = arith.constant 64 : index
    %c192_64 = arith.constant 192 : index
    %73 = vector.load %arg8[%c64_63, %c192_64] : memref<128x288xbf16, #tpu.memory_space<vmem>>, vector<64x96xbf16>
    tpu.vector_store %arg8[%c64_63, %c192_64], %72 {strides = array<i32>} : memref<128x288xbf16, #tpu.memory_space<vmem>>, vector<64x96xbf16>,
    %c0_65 = arith.constant 0 : index
    %c0_66 = arith.constant 0 : index
    %74 = vector.load %arg8[%c0_65, %c0_66] : memref<128x288xbf16, #tpu.memory_space<vmem>>, vector<128x288xbf16>
    %c0_67 = arith.constant 0 : index
    %c0_68 = arith.constant 0 : index
    %75 = vector.load %arg3[%c0_67, %c0_68] : memref<288x64xbf16, #tpu.memory_space<vmem>>, vector<288x64xbf16>
    %cst_69 = arith.constant dense<0.000000e+00> : vector<128x64xf32>
    %76 = tpu.matmul %74, %75, %cst_69 {dimension_numbers = #tpu.dot_dimension_numbers<[1], [0], [0], [1], [0, 0, 1, 1], [], []>} : vector<128x288xbf16>, vector<288x64xbf16>, vector<128x64xf32> -> vector<128x64xf32>
    %77 = vector.broadcast %1 : vector<1x64xf32> to vector<128x64xf32>
    %78 = arith.addf %76, %77 : vector<128x64xf32>
    %cst_70 = arith.constant 0.000000e+00 : f32
    %79 = vector.broadcast %cst_70 : f32 to vector<128x64xf32>
    %80 = arith.maximumf %78, %79 : vector<128x64xf32>
    %81 = vector.shape_cast %80 : vector<128x64xf32> to vector<16x8x64xf32>
    %82 = vector.shape_cast %81 : vector<16x8x64xf32> to vector<8x2x8x64xf32>
    %cst_71 = arith.constant dense<0xFF800000> : vector<8x8x64xf32>
    %83 = vector.multi_reduction <maximumf>, %82, %cst_71 [1] : vector<8x2x8x64xf32> to vector<8x8x64xf32>
    %84 = vector.shape_cast %83 : vector<8x8x64xf32> to vector<8x4x2x64xf32>
    %cst_72 = arith.constant dense<0xFF800000> : vector<8x4x64xf32>
    %85 = vector.multi_reduction <maximumf>, %84, %cst_72 [2] : vector<8x4x2x64xf32> to vector<8x4x64xf32>
    %cst_73 = arith.constant 0.000000e+00 : bf16
    %86 = vector.broadcast %cst_73 : bf16 to vector<2x1x6x64xbf16>
    %c0_74 = arith.constant 0 : index
    %c0_75 = arith.constant 0 : index
    %c0_76 = arith.constant 0 : index
    %c0_77 = arith.constant 0 : index
    %87 = vector.load %arg9[%c0_74, %c0_75, %c0_76, %c0_77] : memref<2x6x6x64xbf16, #tpu.memory_space<vmem>>, vector<2x1x6x64xbf16>
    tpu.vector_store %arg9[%c0_74, %c0_75, %c0_76, %c0_77], %86 {strides = array<i32>} : memref<2x6x6x64xbf16, #tpu.memory_space<vmem>>, vector<2x1x6x64xbf16>,
    %cst_78 = arith.constant 0.000000e+00 : bf16
    %88 = vector.broadcast %cst_78 : bf16 to vector<2x1x6x64xbf16>
    %c0_79 = arith.constant 0 : index
    %c5 = arith.constant 5 : index
    %c0_80 = arith.constant 0 : index
    %c0_81 = arith.constant 0 : index
    %89 = vector.load %arg9[%c0_79, %c5, %c0_80, %c0_81] : memref<2x6x6x64xbf16, #tpu.memory_space<vmem>>, vector<2x1x6x64xbf16>
    tpu.vector_store %arg9[%c0_79, %c5, %c0_80, %c0_81], %88 {strides = array<i32>} : memref<2x6x6x64xbf16, #tpu.memory_space<vmem>>, vector<2x1x6x64xbf16>,
    %cst_82 = arith.constant 0.000000e+00 : bf16
    %90 = vector.broadcast %cst_82 : bf16 to vector<2x6x1x64xbf16>
    %c0_83 = arith.constant 0 : index
    %c0_84 = arith.constant 0 : index
    %c0_85 = arith.constant 0 : index
    %c0_86 = arith.constant 0 : index
    %91 = vector.load %arg9[%c0_83, %c0_84, %c0_85, %c0_86] : memref<2x6x6x64xbf16, #tpu.memory_space<vmem>>, vector<2x6x1x64xbf16>
    tpu.vector_store %arg9[%c0_83, %c0_84, %c0_85, %c0_86], %90 {strides = array<i32>} : memref<2x6x6x64xbf16, #tpu.memory_space<vmem>>, vector<2x6x1x64xbf16>,
    %cst_87 = arith.constant 0.000000e+00 : bf16
    %92 = vector.broadcast %cst_87 : bf16 to vector<2x6x1x64xbf16>
    %c0_88 = arith.constant 0 : index
    %c0_89 = arith.constant 0 : index
    %c5_90 = arith.constant 5 : index
    %c0_91 = arith.constant 0 : index
    %93 = vector.load %arg9[%c0_88, %c0_89, %c5_90, %c0_91] : memref<2x6x6x64xbf16, #tpu.memory_space<vmem>>, vector<2x6x1x64xbf16>
    tpu.vector_store %arg9[%c0_88, %c0_89, %c5_90, %c0_91], %92 {strides = array<i32>} : memref<2x6x6x64xbf16, #tpu.memory_space<vmem>>, vector<2x6x1x64xbf16>,
    %94 = vector.shape_cast %85 : vector<8x4x64xf32> to vector<2x4x4x64xf32>
    %95 = arith.truncf %94 : vector<2x4x4x64xf32> to vector<2x4x4x64xbf16>
    %c0_92 = arith.constant 0 : index
    %c1_93 = arith.constant 1 : index
    %c1_94 = arith.constant 1 : index
    %c0_95 = arith.constant 0 : index
    %96 = vector.load %arg9[%c0_92, %c1_93, %c1_94, %c0_95] : memref<2x6x6x64xbf16, #tpu.memory_space<vmem>>, vector<2x4x4x64xbf16>
    tpu.vector_store %arg9[%c0_92, %c1_93, %c1_94, %c0_95], %95 {strides = array<i32>} : memref<2x6x6x64xbf16, #tpu.memory_space<vmem>>, vector<2x4x4x64xbf16>,
    %c0_96 = arith.constant 0 : index
    %c0_97 = arith.constant 0 : index
    %c0_98 = arith.constant 0 : index
    %c0_99 = arith.constant 0 : index
    %97 = vector.load %arg9[%c0_96, %c0_97, %c0_98, %c0_99] : memref<2x6x6x64xbf16, #tpu.memory_space<vmem>>, vector<1x6x4x64xbf16>
    %98 = vector.shape_cast %97 : vector<1x6x4x64xbf16> to vector<6x4x64xbf16>
    %99 = vector.shape_cast %98 : vector<6x4x64xbf16> to vector<24x64xbf16>
    %100 = vector.extract_strided_slice %99 {offsets = [0, 0], sizes = [16, 64], strides = [1, 1]} : vector<24x64xbf16> to vector<16x64xbf16>
    %101 = vector.extract_strided_slice %99 {offsets = [4, 0], sizes = [16, 64], strides = [1, 1]} : vector<24x64xbf16> to vector<16x64xbf16>
    %102 = vector.extract_strided_slice %99 {offsets = [8, 0], sizes = [16, 64], strides = [1, 1]} : vector<24x64xbf16> to vector<16x64xbf16>
    %103 = tpu.concatenate %100, %101, %102 in 1 : vector<16x64xbf16>, vector<16x64xbf16>, vector<16x64xbf16> -> vector<16x192xbf16>
    %c0_100 = arith.constant 0 : index
    %c0_101 = arith.constant 0 : index
    %104 = vector.load %arg10[%c0_100, %c0_101] : memref<32x576xbf16, #tpu.memory_space<vmem>>, vector<16x192xbf16>
    tpu.vector_store %arg10[%c0_100, %c0_101], %103 {strides = array<i32>} : memref<32x576xbf16, #tpu.memory_space<vmem>>, vector<16x192xbf16>,
    %c0_102 = arith.constant 0 : index
    %c0_103 = arith.constant 0 : index
    %c1_104 = arith.constant 1 : index
    %c0_105 = arith.constant 0 : index
    %105 = vector.load %arg9[%c0_102, %c0_103, %c1_104, %c0_105] : memref<2x6x6x64xbf16, #tpu.memory_space<vmem>>, vector<1x6x4x64xbf16>
    %106 = vector.shape_cast %105 : vector<1x6x4x64xbf16> to vector<6x4x64xbf16>
    %107 = vector.shape_cast %106 : vector<6x4x64xbf16> to vector<24x64xbf16>
    %108 = vector.extract_strided_slice %107 {offsets = [0, 0], sizes = [16, 64], strides = [1, 1]} : vector<24x64xbf16> to vector<16x64xbf16>
    %109 = vector.extract_strided_slice %107 {offsets = [4, 0], sizes = [16, 64], strides = [1, 1]} : vector<24x64xbf16> to vector<16x64xbf16>
    %110 = vector.extract_strided_slice %107 {offsets = [8, 0], sizes = [16, 64], strides = [1, 1]} : vector<24x64xbf16> to vector<16x64xbf16>
    %111 = tpu.concatenate %108, %109, %110 in 1 : vector<16x64xbf16>, vector<16x64xbf16>, vector<16x64xbf16> -> vector<16x192xbf16>
    %c0_106 = arith.constant 0 : index
    %c192_107 = arith.constant 192 : index
    %112 = vector.load %arg10[%c0_106, %c192_107] : memref<32x576xbf16, #tpu.memory_space<vmem>>, vector<16x192xbf16>
    tpu.vector_store %arg10[%c0_106, %c192_107], %111 {strides = array<i32>} : memref<32x576xbf16, #tpu.memory_space<vmem>>, vector<16x192xbf16>,
    %c0_108 = arith.constant 0 : index
    %c0_109 = arith.constant 0 : index
    %c2_110 = arith.constant 2 : index
    %c0_111 = arith.constant 0 : index
    %113 = vector.load %arg9[%c0_108, %c0_109, %c2_110, %c0_111] : memref<2x6x6x64xbf16, #tpu.memory_space<vmem>>, vector<1x6x4x64xbf16>
    %114 = vector.shape_cast %113 : vector<1x6x4x64xbf16> to vector<6x4x64xbf16>
    %115 = vector.shape_cast %114 : vector<6x4x64xbf16> to vector<24x64xbf16>
    %116 = vector.extract_strided_slice %115 {offsets = [0, 0], sizes = [16, 64], strides = [1, 1]} : vector<24x64xbf16> to vector<16x64xbf16>
    %117 = vector.extract_strided_slice %115 {offsets = [4, 0], sizes = [16, 64], strides = [1, 1]} : vector<24x64xbf16> to vector<16x64xbf16>
    %118 = vector.extract_strided_slice %115 {offsets = [8, 0], sizes = [16, 64], strides = [1, 1]} : vector<24x64xbf16> to vector<16x64xbf16>
    %119 = tpu.concatenate %116, %117, %118 in 1 : vector<16x64xbf16>, vector<16x64xbf16>, vector<16x64xbf16> -> vector<16x192xbf16>
    %c0_112 = arith.constant 0 : index
    %c384 = arith.constant 384 : index
    %120 = vector.load %arg10[%c0_112, %c384] : memref<32x576xbf16, #tpu.memory_space<vmem>>, vector<16x192xbf16>
    tpu.vector_store %arg10[%c0_112, %c384], %119 {strides = array<i32>} : memref<32x576xbf16, #tpu.memory_space<vmem>>, vector<16x192xbf16>,
    %c1_113 = arith.constant 1 : index
    %c0_114 = arith.constant 0 : index
    %c0_115 = arith.constant 0 : index
    %c0_116 = arith.constant 0 : index
    %121 = vector.load %arg9[%c1_113, %c0_114, %c0_115, %c0_116] : memref<2x6x6x64xbf16, #tpu.memory_space<vmem>>, vector<1x6x4x64xbf16>
    %122 = vector.shape_cast %121 : vector<1x6x4x64xbf16> to vector<6x4x64xbf16>
    %123 = vector.shape_cast %122 : vector<6x4x64xbf16> to vector<24x64xbf16>
    %124 = vector.extract_strided_slice %123 {offsets = [0, 0], sizes = [16, 64], strides = [1, 1]} : vector<24x64xbf16> to vector<16x64xbf16>
    %125 = vector.extract_strided_slice %123 {offsets = [4, 0], sizes = [16, 64], strides = [1, 1]} : vector<24x64xbf16> to vector<16x64xbf16>
    %126 = vector.extract_strided_slice %123 {offsets = [8, 0], sizes = [16, 64], strides = [1, 1]} : vector<24x64xbf16> to vector<16x64xbf16>
    %127 = tpu.concatenate %124, %125, %126 in 1 : vector<16x64xbf16>, vector<16x64xbf16>, vector<16x64xbf16> -> vector<16x192xbf16>
    %c16 = arith.constant 16 : index
    %c0_117 = arith.constant 0 : index
    %128 = vector.load %arg10[%c16, %c0_117] : memref<32x576xbf16, #tpu.memory_space<vmem>>, vector<16x192xbf16>
    tpu.vector_store %arg10[%c16, %c0_117], %127 {strides = array<i32>} : memref<32x576xbf16, #tpu.memory_space<vmem>>, vector<16x192xbf16>,
    %c1_118 = arith.constant 1 : index
    %c0_119 = arith.constant 0 : index
    %c1_120 = arith.constant 1 : index
    %c0_121 = arith.constant 0 : index
    %129 = vector.load %arg9[%c1_118, %c0_119, %c1_120, %c0_121] : memref<2x6x6x64xbf16, #tpu.memory_space<vmem>>, vector<1x6x4x64xbf16>
    %130 = vector.shape_cast %129 : vector<1x6x4x64xbf16> to vector<6x4x64xbf16>
    %131 = vector.shape_cast %130 : vector<6x4x64xbf16> to vector<24x64xbf16>
    %132 = vector.extract_strided_slice %131 {offsets = [0, 0], sizes = [16, 64], strides = [1, 1]} : vector<24x64xbf16> to vector<16x64xbf16>
    %133 = vector.extract_strided_slice %131 {offsets = [4, 0], sizes = [16, 64], strides = [1, 1]} : vector<24x64xbf16> to vector<16x64xbf16>
    %134 = vector.extract_strided_slice %131 {offsets = [8, 0], sizes = [16, 64], strides = [1, 1]} : vector<24x64xbf16> to vector<16x64xbf16>
    %135 = tpu.concatenate %132, %133, %134 in 1 : vector<16x64xbf16>, vector<16x64xbf16>, vector<16x64xbf16> -> vector<16x192xbf16>
    %c16_122 = arith.constant 16 : index
    %c192_123 = arith.constant 192 : index
    %136 = vector.load %arg10[%c16_122, %c192_123] : memref<32x576xbf16, #tpu.memory_space<vmem>>, vector<16x192xbf16>
    tpu.vector_store %arg10[%c16_122, %c192_123], %135 {strides = array<i32>} : memref<32x576xbf16, #tpu.memory_space<vmem>>, vector<16x192xbf16>,
    %c1_124 = arith.constant 1 : index
    %c0_125 = arith.constant 0 : index
    %c2_126 = arith.constant 2 : index
    %c0_127 = arith.constant 0 : index
    %137 = vector.load %arg9[%c1_124, %c0_125, %c2_126, %c0_127] : memref<2x6x6x64xbf16, #tpu.memory_space<vmem>>, vector<1x6x4x64xbf16>
    %138 = vector.shape_cast %137 : vector<1x6x4x64xbf16> to vector<6x4x64xbf16>
    %139 = vector.shape_cast %138 : vector<6x4x64xbf16> to vector<24x64xbf16>
    %140 = vector.extract_strided_slice %139 {offsets = [0, 0], sizes = [16, 64], strides = [1, 1]} : vector<24x64xbf16> to vector<16x64xbf16>
    %141 = vector.extract_strided_slice %139 {offsets = [4, 0], sizes = [16, 64], strides = [1, 1]} : vector<24x64xbf16> to vector<16x64xbf16>
    %142 = vector.extract_strided_slice %139 {offsets = [8, 0], sizes = [16, 64], strides = [1, 1]} : vector<24x64xbf16> to vector<16x64xbf16>
    %143 = tpu.concatenate %140, %141, %142 in 1 : vector<16x64xbf16>, vector<16x64xbf16>, vector<16x64xbf16> -> vector<16x192xbf16>
    %c16_128 = arith.constant 16 : index
    %c384_129 = arith.constant 384 : index
    %144 = vector.load %arg10[%c16_128, %c384_129] : memref<32x576xbf16, #tpu.memory_space<vmem>>, vector<16x192xbf16>
    tpu.vector_store %arg10[%c16_128, %c384_129], %143 {strides = array<i32>} : memref<32x576xbf16, #tpu.memory_space<vmem>>, vector<16x192xbf16>,
    %c0_130 = arith.constant 0 : index
    %c0_131 = arith.constant 0 : index
    %145 = vector.load %arg10[%c0_130, %c0_131] : memref<32x576xbf16, #tpu.memory_space<vmem>>, vector<32x576xbf16>
    %c0_132 = arith.constant 0 : index
    %c0_133 = arith.constant 0 : index
    %146 = vector.load %arg4[%c0_132, %c0_133] : memref<576x128xbf16, #tpu.memory_space<vmem>>, vector<576x128xbf16>
    %cst_134 = arith.constant dense<0.000000e+00> : vector<32x128xf32>
    %147 = tpu.matmul %145, %146, %cst_134 {dimension_numbers = #tpu.dot_dimension_numbers<[1], [0], [0], [1], [0, 0, 1, 1], [], []>} : vector<32x576xbf16>, vector<576x128xbf16>, vector<32x128xf32> -> vector<32x128xf32>
    %148 = vector.broadcast %2 : vector<1x128xf32> to vector<32x128xf32>
    %149 = arith.addf %147, %148 : vector<32x128xf32>
    %cst_135 = arith.constant 0.000000e+00 : f32
    %150 = vector.broadcast %cst_135 : f32 to vector<32x128xf32>
    %151 = arith.maximumf %149, %150 : vector<32x128xf32>
    %152 = vector.shape_cast %151 : vector<32x128xf32> to vector<8x4x128xf32>
    %153 = vector.shape_cast %152 : vector<8x4x128xf32> to vector<4x2x4x128xf32>
    %cst_136 = arith.constant dense<0xFF800000> : vector<4x4x128xf32>
    %154 = vector.multi_reduction <maximumf>, %153, %cst_136 [1] : vector<4x2x4x128xf32> to vector<4x4x128xf32>
    %155 = vector.shape_cast %154 : vector<4x4x128xf32> to vector<4x2x2x128xf32>
    %cst_137 = arith.constant dense<0xFF800000> : vector<4x2x128xf32>
    %156 = vector.multi_reduction <maximumf>, %155, %cst_137 [2] : vector<4x2x2x128xf32> to vector<4x2x128xf32>
    %157 = vector.shape_cast %156 : vector<4x2x128xf32> to vector<8x128xf32>
    %c0_138 = arith.constant 0 : index
    %c0_139 = arith.constant 0 : index
    %158 = vector.load %arg6[%c0_138, %c0_139] : memref<8x128xf32, #tpu.memory_space<vmem>>, vector<8x128xf32>
    tpu.vector_store %arg6[%c0_138, %c0_139], %157 {strides = array<i32>} : memref<8x128xf32, #tpu.memory_space<vmem>>, vector<8x128xf32>,
    return
  }
  func.func @transform_0(%arg0: i32) -> (i32, i32) {
    %c0_i32 = arith.constant 0 : i32
    %c0_i32_0 = arith.constant 0 : i32
    return %arg0, %c0_i32 : i32, i32
  }
  func.func @transform_1(%arg0: i32) -> (i32, i32) {
    %c0_i32 = arith.constant 0 : i32
    %c0_i32_0 = arith.constant 0 : i32
    %c0_i32_1 = arith.constant 0 : i32
    return %c0_i32, %c0_i32_0 : i32, i32
  }
  func.func @transform_2(%arg0: i32) -> (i32, i32) {
    %c0_i32 = arith.constant 0 : i32
    %c0_i32_0 = arith.constant 0 : i32
    %c0_i32_1 = arith.constant 0 : i32
    return %c0_i32, %c0_i32_0 : i32, i32
  }
  func.func @transform_3(%arg0: i32) -> (i32, i32) {
    %c0_i32 = arith.constant 0 : i32
    %c0_i32_0 = arith.constant 0 : i32
    %c0_i32_1 = arith.constant 0 : i32
    return %c0_i32, %c0_i32_0 : i32, i32
  }
  func.func @transform_4(%arg0: i32) -> (i32, i32) {
    %c0_i32 = arith.constant 0 : i32
    %c0_i32_0 = arith.constant 0 : i32
    %c0_i32_1 = arith.constant 0 : i32
    return %c0_i32, %c0_i32_0 : i32, i32
  }
  func.func @transform_5(%arg0: i32) -> (i32, i32) {
    %c0_i32 = arith.constant 0 : i32
    %c0_i32_0 = arith.constant 0 : i32
    return %arg0, %c0_i32 : i32, i32
  }
}

</mosaic_0001>

<llo_original>
// kernel: frame_cnn_forward.1
$region0: #{frame_cnn_forward.1}
  #allocation0 [shape = 'u32[]', space=smem, size = 0x4, offset = 0x4, fixed_abs, tag = 'smem constant byte address 0x4 - core index']
  #allocation1 [shape = 'u32[72,128]{1,0:T(1,128)}', space=vmem, size = 0x9000, scoped, tag = 'internal scratch']
  #allocation2 [shape = 'bf16[2,10,10,32]{3,2,1,0:T(8,128)(2,1)}', space=vmem, size = 0x14000, scoped, tag = 'scratch operand']
  #allocation3 [shape = 'bf16[128,288]{1,0:T(8,128)(2,1)}', space=vmem, size = 0x18000, scoped, tag = 'scratch operand']
  #allocation4 [shape = 'bf16[2,6,6,64]{3,2,1,0:T(8,128)(2,1)}', space=vmem, size = 0x6000, scoped, tag = 'scratch operand']
  #allocation5 [shape = 'bf16[32,576]{1,0:T(8,128)(2,1)}', space=vmem, size = 0xa000, scoped, tag = 'scratch operand']
  %s0 = inlined_call_operand.vmem [shape: bf16[512,27], index: 0, kind: input, shape index: {}]
  %s1 = inlined_call_operand.vmem [shape: bf16[27,32], index: 1, kind: input, shape index: {}]
  %s2 = inlined_call_operand.vmem [shape: bf16[288,64], index: 2, kind: input, shape index: {}]
  %s3 = inlined_call_operand.vmem [shape: bf16[576,128], index: 3, kind: input, shape index: {}]
  %s4 = inlined_call_operand.vmem [shape: f32[1,224], index: 4, kind: input, shape index: {}]
  %s5 = inlined_call_operand.hbm [shape: f32[8,128], index: 5, kind: output, shape index: {}]
  %s6 = sld [smem:[#allocation0]]
  $region30: #{frame_cnn_forward.1} parent=0
    _
  %s8 = ssub.s32 1, %s6
  %s9 = scalar_select 0, %s8, %s6
  $region1: #{frame_cnn_forward.1} parent=0
    #allocation6 [shape = 'u8[4096]{0}', space=vmem, size = 0x1000, scoped, tag = 'output window, operand 0, single buffered']
    #allocation7 [shape = 's32[1]{0}', space=sflag, size = 0x4, scoped, tag = 'scoped memory for frame_cnn_forward.1']
    %10 = vsyncpa [#allocation7], 0
    // Predicated region
    $region2: #{frame_cnn_forward.1} parent=1 // pred_check
      _
    $region3: #{frame_cnn_forward.1} parent=1 // pred_check_branch
      %12 = sbr.rel (0) target = $region5
    $region4: #{frame_cnn_forward.1} parent=1 // pred_region
      _
    $region5: #{frame_cnn_forward.1} parent=1 // pred_fallthru
      _
    // Predicated region
    $region6: #{frame_cnn_forward.1} parent=1 // pred_check
      _
    $region7: #{frame_cnn_forward.1} parent=1 // pred_check_branch
      %14 = sbr.rel (0) target = $region9
    $region8: #{frame_cnn_forward.1} parent=1 // pred_region
      _
    $region9: #{frame_cnn_forward.1} parent=1 // pred_fallthru
      _
    // Predicated region
    $region10: #{frame_cnn_forward.1} parent=1 // pred_check
      _
    $region11: #{frame_cnn_forward.1} parent=1 // pred_check_branch
      %16 = sbr.rel (0) target = $region13
    $region12: #{frame_cnn_forward.1} parent=1 // pred_region
      _
    $region13: #{frame_cnn_forward.1} parent=1 // pred_fallthru
      _
    // Predicated region
    $region14: #{frame_cnn_forward.1} parent=1 // pred_check
      _
    $region15: #{frame_cnn_forward.1} parent=1 // pred_check_branch
      %18 = sbr.rel (0) target = $region17
    $region16: #{frame_cnn_forward.1} parent=1 // pred_region
      _
    $region17: #{frame_cnn_forward.1} parent=1 // pred_fallthru
      _
    // Predicated region
    $region18: #{frame_cnn_forward.1} parent=1 // pred_check
      _
    $region19: #{frame_cnn_forward.1} parent=1 // pred_check_branch
      %20 = sbr.rel (0) target = $region21
    $region20: #{frame_cnn_forward.1} parent=1 // pred_region
      _
    $region21: #{frame_cnn_forward.1} parent=1 // pred_fallthru
      _
    %v22 = vld [vmem:[%s4] sm:$0x1]
    %v23 = vld [vmem:[%s4] sm:$0x3]
    %v24 = vld [vmem:[%s0] sm:$0xf]
    %v25 = vld [vmem:[%s0 + $0x4] sm:$0xf]
    %v26 = vld [vmem:[%s0 + $0x8] sm:$0xf]
    %v27 = vld [vmem:[%s0 + $0xc] sm:$0xf]
    %v28 = vld [vmem:[%s0 + $0x10] sm:$0xf]
    %v29 = vld [vmem:[%s0 + $0x14] sm:$0xf]
    %v30 = vld [vmem:[%s0 + $0x18] sm:$0xf]
    %v31 = vld [vmem:[%s0 + $0x1c] sm:$0xf]
    %v32 = vld [vmem:[%s0 + $0x20] sm:$0xf]
    %v33 = vld [vmem:[%s0 + $0x24] sm:$0xf]
    %v34 = vld [vmem:[%s0 + $0x28] sm:$0xf]
    %v35 = vld [vmem:[%s0 + $0x2c] sm:$0xf]
    %v36 = vld [vmem:[%s0 + $0x30] sm:$0xf]
    %v37 = vld [vmem:[%s0 + $0x34] sm:$0xf]
    %v38 = vld [vmem:[%s0 + $0x38] sm:$0xf]
    %v39 = vld [vmem:[%s0 + $0x3c] sm:$0xf]
    %v40 = vld [vmem:[%s0 + $0x40] sm:$0xf]
    %v41 = vld [vmem:[%s0 + $0x44] sm:$0xf]
    %v42 = vld [vmem:[%s0 + $0x48] sm:$0xf]
    %v43 = vld [vmem:[%s0 + $0x4c] sm:$0xf]
    %v44 = vld [vmem:[%s0 + $0x50] sm:$0xf]
    %v45 = vld [vmem:[%s0 + $0x54] sm:$0xf]
    %v46 = vld [vmem:[%s0 + $0x58] sm:$0xf]
    %v47 = vld [vmem:[%s0 + $0x5c] sm:$0xf]
    %v48 = vld [vmem:[%s0 + $0x60] sm:$0xf]
    %v49 = vld [vmem:[%s0 + $0x64] sm:$0xf]
    %v50 = vld [vmem:[%s0 + $0x68] sm:$0xf]
    %v51 = vld [vmem:[%s0 + $0x6c] sm:$0xf]
    %v52 = vld [vmem:[%s0 + $0x70] sm:$0xf]
    %v53 = vld [vmem:[%s0 + $0x74] sm:$0xf]
    %v54 = vld [vmem:[%s0 + $0x78] sm:$0xf]
    %v55 = vld [vmem:[%s0 + $0x7c] sm:$0xf]
    %v56 = vld [vmem:[%s0 + $0x80] sm:$0xf]
    %v57 = vld [vmem:[%s0 + $0x84] sm:$0xf]
    %v58 = vld [vmem:[%s0 + $0x88] sm:$0xf]
    %v59 = vld [vmem:[%s0 + $0x8c] sm:$0xf]
    %v60 = vld [vmem:[%s0 + $0x90] sm:$0xf]
    %v61 = vld [vmem:[%s0 + $0x94] sm:$0xf]
    %v62 = vld [vmem:[%s0 + $0x98] sm:$0xf]
    %v63 = vld [vmem:[%s0 + $0x9c] sm:$0xf]
    %v64 = vld [vmem:[%s0 + $0xa0] sm:$0xf]
    %v65 = vld [vmem:[%s0 + $0xa4] sm:$0xf]
    %v66 = vld [vmem:[%s0 + $0xa8] sm:$0xf]
    %v67 = vld [vmem:[%s0 + $0xac] sm:$0xf]
    %v68 = vld [vmem:[%s0 + $0xb0] sm:$0xf]
    %v69 = vld [vmem:[%s0 + $0xb4] sm:$0xf]
    %v70 = vld [vmem:[%s0 + $0xb8] sm:$0xf]
    %v71 = vld [vmem:[%s0 + $0xbc] sm:$0xf]
    %v72 = vld [vmem:[%s0 + $0xc0] sm:$0xf]
    %v73 = vld [vmem:[%s0 + $0xc4] sm:$0xf]
    %v74 = vld [vmem:[%s0 + $0xc8] sm:$0xf]
    %v75 = vld [vmem:[%s0 + $0xcc] sm:$0xf]
    %v76 = vld [vmem:[%s0 + $0xd0] sm:$0xf]
    %v77 = vld [vmem:[%s0 + $0xd4] sm:$0xf]
    %v78 = vld [vmem:[%s0 + $0xd8] sm:$0xf]
    %v79 = vld [vmem:[%s0 + $0xdc] sm:$0xf]
    %v80 = vld [vmem:[%s0 + $0xe0] sm:$0xf]
    %v81 = vld [vmem:[%s0 + $0xe4] sm:$0xf]
    %v82 = vld [vmem:[%s0 + $0xe8] sm:$0xf]
    %v83 = vld [vmem:[%s0 + $0xec] sm:$0xf]
    %v84 = vld [vmem:[%s0 + $0xf0] sm:$0xf]
    %v85 = vld [vmem:[%s0 + $0xf4] sm:$0xf]
    %v86 = vld [vmem:[%s0 + $0xf8] sm:$0xf]
    %v87 = vld [vmem:[%s0 + $0xfc] sm:$0xf]
    %v88 = vld [vmem:[%s1] sm:$0xf]
    %v89 = vld [vmem:[%s1 + $0x4] sm:$0xf]
    %v90 = vld [vmem:[%s1 + $0x8] sm:$0xf]
    %v91 = vld [vmem:[%s1 + $0xc] sm:$0x3]
    %v93 = vperm.slane %v22, 0
    %v159 = vunpack.c.l.b16 %v24
    %v160 = vunpack.c.l.b16 %v25
    %v161 = vunpack.c.l.b16 %v26
    %v162 = vunpack.c.l.b16 %v27
    %v163 = vunpack.c.l.b16 %v28
    %v164 = vunpack.c.l.b16 %v29
    %v165 = vunpack.c.l.b16 %v30
    %v166 = vunpack.c.l.b16 %v31
    %v167 = vunpack.c.l.b16 %v32
    %v168 = vunpack.c.l.b16 %v33
    %v169 = vunpack.c.l.b16 %v34
    %v170 = vunpack.c.l.b16 %v35
    %v171 = vunpack.c.l.b16 %v36
    %v172 = vunpack.c.l.b16 %v37
    %v173 = vunpack.c.l.b16 %v38
    %v174 = vunpack.c.l.b16 %v39
    %v175 = vunpack.c.l.b16 %v40
    %v176 = vunpack.c.l.b16 %v41
    %v177 = vunpack.c.l.b16 %v42
    %v178 = vunpack.c.l.b16 %v43
    %v179 = vunpack.c.l.b16 %v44
    %v180 = vunpack.c.l.b16 %v45
    %v181 = vunpack.c.l.b16 %v46
    %v182 = vunpack.c.l.b16 %v47
    %v183 = vunpack.c.l.b16 %v48
    %v184 = vunpack.c.l.b16 %v49
    %v185 = vunpack.c.l.b16 %v50
    %v186 = vunpack.c.l.b16 %v51
    %v187 = vunpack.c.l.b16 %v52
    %v188 = vunpack.c.l.b16 %v53
    %v189 = vunpack.c.l.b16 %v54
    %v190 = vunpack.c.l.b16 %v55
    %v191 = vunpack.c.l.b16 %v56
    %v192 = vunpack.c.l.b16 %v57
    %v193 = vunpack.c.l.b16 %v58
    %v194 = vunpack.c.l.b16 %v59
    %v195 = vunpack.c.l.b16 %v60
    %v196 = vunpack.c.l.b16 %v61
    %v197 = vunpack.c.l.b16 %v62
    %v198 = vunpack.c.l.b16 %v63
    %v199 = vunpack.c.l.b16 %v64
    %v200 = vunpack.c.l.b16 %v65
    %v201 = vunpack.c.l.b16 %v66
    %v202 = vunpack.c.l.b16 %v67
    %v203 = vunpack.c.l.b16 %v68
    %v204 = vunpack.c.l.b16 %v69
    %v205 = vunpack.c.l.b16 %v70
    %v206 = vunpack.c.l.b16 %v71
    %v207 = vunpack.c.l.b16 %v72
    %v208 = vunpack.c.l.b16 %v73
    %v209 = vunpack.c.l.b16 %v74
    %v210 = vunpack.c.l.b16 %v75
    %v211 = vunpack.c.l.b16 %v76
    %v212 = vunpack.c.l.b16 %v77
    %v213 = vunpack.c.l.b16 %v78
    %v214 = vunpack.c.l.b16 %v79
    %v215 = vunpack.c.l.b16 %v80
    %v216 = vunpack.c.l.b16 %v81
    %v217 = vunpack.c.l.b16 %v82
    %v218 = vunpack.c.l.b16 %v83
    %v219 = vunpack.c.l.b16 %v84
    %v220 = vunpack.c.l.b16 %v85
    %v221 = vunpack.c.l.b16 %v86
    %v222 = vunpack.c.l.b16 %v87
    %v223 = vpack.c.b16 %v160, %v159
    %v224 = vpack.c.b16 %v162, %v161
    %v225 = vpack.c.b16 %v164, %v163
    %v226 = vpack.c.b16 %v166, %v165
    %v227 = vpack.c.b16 %v168, %v167
    %v228 = vpack.c.b16 %v170, %v169
    %v229 = vpack.c.b16 %v172, %v171
    %v230 = vpack.c.b16 %v174, %v173
    %v231 = vpack.c.b16 %v176, %v175
    %v232 = vpack.c.b16 %v178, %v177
    %v233 = vpack.c.b16 %v180, %v179
    %v234 = vpack.c.b16 %v182, %v181
    %v235 = vpack.c.b16 %v184, %v183
    %v236 = vpack.c.b16 %v186, %v185
    %v237 = vpack.c.b16 %v188, %v187
    %v238 = vpack.c.b16 %v190, %v189
    %v239 = vpack.c.b16 %v192, %v191
    %v240 = vpack.c.b16 %v194, %v193
    %v241 = vpack.c.b16 %v196, %v195
    %v242 = vpack.c.b16 %v198, %v197
    %v243 = vpack.c.b16 %v200, %v199
    %v244 = vpack.c.b16 %v202, %v201
    %v245 = vpack.c.b16 %v204, %v203
    %v246 = vpack.c.b16 %v206, %v205
    %v247 = vpack.c.b16 %v208, %v207
    %v248 = vpack.c.b16 %v210, %v209
    %v249 = vpack.c.b16 %v212, %v211
    %v250 = vpack.c.b16 %v214, %v213
    %v251 = vpack.c.b16 %v216, %v215
    %v252 = vpack.c.b16 %v218, %v217
    %v253 = vpack.c.b16 %v220, %v219
    %v254 = vpack.c.b16 %v222, %v221
    %v259 = vunpack.c.l.b16 %v88
    %v260 = vunpack.c.l.b16 %v89
    %v261 = vunpack.c.l.b16 %v90
    %v262 = vunpack.c.l.b16 %v91
    %v263 = vpack.c.b16 %v260, %v259
    %v264 = vpack.c.b16 %v262, %v261
    %vm266 = vcmask 220160
    %v268 = vsel %vm266, %v223, 0
    %v271 = vsel %vm266, %v224, 0
    %v274 = vsel %vm266, %v225, 0
    %v277 = vsel %vm266, %v226, 0
    %v280 = vsel %vm266, %v227, 0
    %v283 = vsel %vm266, %v228, 0
    %v286 = vsel %vm266, %v229, 0
    %v289 = vsel %vm266, %v230, 0
    %v292 = vsel %vm266, %v231, 0
    %v295 = vsel %vm266, %v232, 0
    %v298 = vsel %vm266, %v233, 0
    %v301 = vsel %vm266, %v234, 0
    %v304 = vsel %vm266, %v235, 0
    %v307 = vsel %vm266, %v236, 0
    %v310 = vsel %vm266, %v237, 0
    %v313 = vsel %vm266, %v238, 0
    %v316 = vsel %vm266, %v239, 0
    %v319 = vsel %vm266, %v240, 0
    %v322 = vsel %vm266, %v241, 0
    %v325 = vsel %vm266, %v242, 0
    %v328 = vsel %vm266, %v243, 0
    %v331 = vsel %vm266, %v244, 0
    %v334 = vsel %vm266, %v245, 0
    %v337 = vsel %vm266, %v246, 0
    %v340 = vsel %vm266, %v247, 0
    %v343 = vsel %vm266, %v248, 0
    %v346 = vsel %vm266, %v249, 0
    %v349 = vsel %vm266, %v250, 0
    %v352 = vsel %vm266, %v251, 0
    %v355 = vsel %vm266, %v252, 0
    %v358 = vsel %vm266, %v253, 0
    %v361 = vsel %vm266, %v254, 0
    %vm363 = vcmask 1044480
    %vm364 = vcmask 1045504
    %v365 = vsel %vm363, 4294967295, 65535
    %v366 = vsel %vm364, %v365, 0
    %v368 = vand.u32 %v264, %v366
    %370 = vmatpush.bf16.msra.mxu0 0
    %371 = vmatpush.bf16.msra.mxu0 0
    %372 = vmatpush.bf16.msra.mxu0 0
    %373 = vmatpush.bf16.msra.mxu0 0
    %374 = vmatpush.bf16.msra.mxu0 0
    %375 = vmatpush.bf16.msra.mxu0 0
    %376 = vmatpush.bf16.msra.mxu0 %v368
    %377 = vmatpush.bf16.msra.mxu0 %v263
    %378 = vmatmul.bf16.gmra.mxu0 %v268
    %v379 = vpop.f32.mrf.mxu0
    %v380 = vadd.f32 %v93, %v379
    %v381 = vpop.f32.mrf.mxu0
    %v382 = vadd.f32 %v93, %v381
    %383 = vmatmul.bf16.gmra.mxu0 %v271
    %v384 = vpop.f32.mrf.mxu0
    %v385 = vadd.f32 %v93, %v384
    %v386 = vpop.f32.mrf.mxu0
    %v387 = vadd.f32 %v93, %v386
    %388 = vmatmul.bf16.gmra.mxu0 %v274
    %v389 = vpop.f32.mrf.mxu0
    %v390 = vadd.f32 %v93, %v389
    %v391 = vpop.f32.mrf.mxu0
    %v392 = vadd.f32 %v93, %v391
    %393 = vmatmul.bf16.gmra.mxu0 %v277
    %v394 = vpop.f32.mrf.mxu0
    %v395 = vadd.f32 %v93, %v394
    %v396 = vpop.f32.mrf.mxu0
    %v397 = vadd.f32 %v93, %v396
    %398 = vmatmul.bf16.gmra.mxu0 %v280
    %v399 = vpop.f32.mrf.mxu0
    %v400 = vadd.f32 %v93, %v399
    %v401 = vpop.f32.mrf.mxu0
    %v402 = vadd.f32 %v93, %v401
    %403 = vmatmul.bf16.gmra.mxu0 %v283
    %v404 = vpop.f32.mrf.mxu0
    %v405 = vadd.f32 %v93, %v404
    %v406 = vpop.f32.mrf.mxu0
    %v407 = vadd.f32 %v93, %v406
    %408 = vmatmul.bf16.gmra.mxu0 %v286
    %v409 = vpop.f32.mrf.mxu0
    %v410 = vadd.f32 %v93, %v409
    %v411 = vpop.f32.mrf.mxu0
    %v412 = vadd.f32 %v93, %v411
    %413 = vmatmul.bf16.gmra.mxu0 %v289
    %v414 = vpop.f32.mrf.mxu0
    %v415 = vadd.f32 %v93, %v414
    %v416 = vpop.f32.mrf.mxu0
    %v417 = vadd.f32 %v93, %v416
    %418 = vmatmul.bf16.gmra.mxu0 %v292
    %v419 = vpop.f32.mrf.mxu0
    %v420 = vadd.f32 %v93, %v419
    %v421 = vpop.f32.mrf.mxu0
    %v422 = vadd.f32 %v93, %v421
    %423 = vmatmul.bf16.gmra.mxu0 %v295
    %v424 = vpop.f32.mrf.mxu0
    %v425 = vadd.f32 %v93, %v424
    %v426 = vpop.f32.mrf.mxu0
    %v427 = vadd.f32 %v93, %v426
    %428 = vmatmul.bf16.gmra.mxu0 %v298
    %v429 = vpop.f32.mrf.mxu0
    %v430 = vadd.f32 %v93, %v429
    %v431 = vpop.f32.mrf.mxu0
    %v432 = vadd.f32 %v93, %v431
    %433 = vmatmul.bf16.gmra.mxu0 %v301
    %v434 = vpop.f32.mrf.mxu0
    %v435 = vadd.f32 %v93, %v434
    %v436 = vpop.f32.mrf.mxu0
    %v437 = vadd.f32 %v93, %v436
    %438 = vmatmul.bf16.gmra.mxu0 %v304
    %v439 = vpop.f32.mrf.mxu0
    %v440 = vadd.f32 %v93, %v439
    %v441 = vpop.f32.mrf.mxu0
    %v442 = vadd.f32 %v93, %v441
    %443 = vmatmul.bf16.gmra.mxu0 %v307
    %v444 = vpop.f32.mrf.mxu0
    %v445 = vadd.f32 %v93, %v444
    %v446 = vpop.f32.mrf.mxu0
    %v447 = vadd.f32 %v93, %v446
    %448 = vmatmul.bf16.gmra.mxu0 %v310
    %v449 = vpop.f32.mrf.mxu0
    %v450 = vadd.f32 %v93, %v449
    %v451 = vpop.f32.mrf.mxu0
    %v452 = vadd.f32 %v93, %v451
    %453 = vmatmul.bf16.gmra.mxu0 %v313
    %v454 = vpop.f32.mrf.mxu0
    %v455 = vadd.f32 %v93, %v454
    %v456 = vpop.f32.mrf.mxu0
    %v457 = vadd.f32 %v93, %v456
    %458 = vmatmul.bf16.gmra.mxu0 %v316
    %v459 = vpop.f32.mrf.mxu0
    %v460 = vadd.f32 %v93, %v459
    %v461 = vpop.f32.mrf.mxu0
    %v462 = vadd.f32 %v93, %v461
    %463 = vmatmul.bf16.gmra.mxu0 %v319
    %v464 = vpop.f32.mrf.mxu0
    %v465 = vadd.f32 %v93, %v464
    %v466 = vpop.f32.mrf.mxu0
    %v467 = vadd.f32 %v93, %v466
    %468 = vmatmul.bf16.gmra.mxu0 %v322
    %v469 = vpop.f32.mrf.mxu0
    %v470 = vadd.f32 %v93, %v469
    %v471 = vpop.f32.mrf.mxu0
    %v472 = vadd.f32 %v93, %v471
    %473 = vmatmul.bf16.gmra.mxu0 %v325
    %v474 = vpop.f32.mrf.mxu0
    %v475 = vadd.f32 %v93, %v474
    %v476 = vpop.f32.mrf.mxu0
    %v477 = vadd.f32 %v93, %v476
    %478 = vmatmul.bf16.gmra.mxu0 %v328
    %v479 = vpop.f32.mrf.mxu0
    %v480 = vadd.f32 %v93, %v479
    %v481 = vpop.f32.mrf.mxu0
    %v482 = vadd.f32 %v93, %v481
    %483 = vmatmul.bf16.gmra.mxu0 %v331
    %v484 = vpop.f32.mrf.mxu0
    %v485 = vadd.f32 %v93, %v484
    %v486 = vpop.f32.mrf.mxu0
    %v487 = vadd.f32 %v93, %v486
    %488 = vmatmul.bf16.gmra.mxu0 %v334
    %v489 = vpop.f32.mrf.mxu0
    %v490 = vadd.f32 %v93, %v489
    %v491 = vpop.f32.mrf.mxu0
    %v492 = vadd.f32 %v93, %v491
    %493 = vmatmul.bf16.gmra.mxu0 %v337
    %v494 = vpop.f32.mrf.mxu0
    %v495 = vadd.f32 %v93, %v494
    %v496 = vpop.f32.mrf.mxu0
    %v497 = vadd.f32 %v93, %v496
    %498 = vmatmul.bf16.gmra.mxu0 %v340
    %v499 = vpop.f32.mrf.mxu0
    %v500 = vadd.f32 %v93, %v499
    %v501 = vpop.f32.mrf.mxu0
    %v502 = vadd.f32 %v93, %v501
    %503 = vmatmul.bf16.gmra.mxu0 %v343
    %v504 = vpop.f32.mrf.mxu0
    %v505 = vadd.f32 %v93, %v504
    %v506 = vpop.f32.mrf.mxu0
    %v507 = vadd.f32 %v93, %v506
    %508 = vmatmul.bf16.gmra.mxu0 %v346
    %v509 = vpop.f32.mrf.mxu0
    %v510 = vadd.f32 %v93, %v509
    %v511 = vpop.f32.mrf.mxu0
    %v512 = vadd.f32 %v93, %v511
    %513 = vmatmul.bf16.gmra.mxu0 %v349
    %v514 = vpop.f32.mrf.mxu0
    %v515 = vadd.f32 %v93, %v514
    %v516 = vpop.f32.mrf.mxu0
    %v517 = vadd.f32 %v93, %v516
    %518 = vmatmul.bf16.gmra.mxu0 %v352
    %v519 = vpop.f32.mrf.mxu0
    %v520 = vadd.f32 %v93, %v519
    %v521 = vpop.f32.mrf.mxu0
    %v522 = vadd.f32 %v93, %v521
    %523 = vmatmul.bf16.gmra.mxu0 %v355
    %v524 = vpop.f32.mrf.mxu0
    %v525 = vadd.f32 %v93, %v524
    %v526 = vpop.f32.mrf.mxu0
    %v527 = vadd.f32 %v93, %v526
    %528 = vmatmul.bf16.gmra.mxu0 %v358
    %v529 = vpop.f32.mrf.mxu0
    %v530 = vadd.f32 %v93, %v529
    %v531 = vpop.f32.mrf.mxu0
    %v532 = vadd.f32 %v93, %v531
    %533 = vmatmul.bf16.gmra.mxu0 %v361
    %v534 = vpop.f32.mrf.mxu0
    %v535 = vadd.f32 %v93, %v534
    %v536 = vpop.f32.mrf.mxu0
    %v537 = vadd.f32 %v93, %v536
    %538 = vdwg.mxu0
    %v539 = vmax.f32 %v380, 0.0
    %v540 = vmax.f32 %v382, 0.0
    %v541 = vmax.f32 %v385, 0.0
    %v542 = vmax.f32 %v387, 0.0
    %v543 = vmax.f32 %v390, 0.0
    %v544 = vmax.f32 %v392, 0.0
    %v545 = vmax.f32 %v395, 0.0
    %v546 = vmax.f32 %v397, 0.0
    %v547 = vmax.f32 %v400, 0.0
    %v548 = vmax.f32 %v402, 0.0
    %v549 = vmax.f32 %v405, 0.0
    %v550 = vmax.f32 %v407, 0.0
    %v551 = vmax.f32 %v410, 0.0
    %v552 = vmax.f32 %v412, 0.0
    %v553 = vmax.f32 %v415, 0.0
    %v554 = vmax.f32 %v417, 0.0
    %v555 = vmax.f32 %v420, 0.0
    %v556 = vmax.f32 %v422, 0.0
    %v557 = vmax.f32 %v425, 0.0
    %v558 = vmax.f32 %v427, 0.0
    %v559 = vmax.f32 %v430, 0.0
    %v560 = vmax.f32 %v432, 0.0
    %v561 = vmax.f32 %v435, 0.0
    %v562 = vmax.f32 %v437, 0.0
    %v563 = vmax.f32 %v440, 0.0
    %v564 = vmax.f32 %v442, 0.0
    %v565 = vmax.f32 %v445, 0.0
    %v566 = vmax.f32 %v447, 0.0
    %v567 = vmax.f32 %v450, 0.0
    %v568 = vmax.f32 %v452, 0.0
    %v569 = vmax.f32 %v455, 0.0
    %v570 = vmax.f32 %v457, 0.0
    %v571 = vmax.f32 %v460, 0.0
    %v572 = vmax.f32 %v462, 0.0
    %v573 = vmax.f32 %v465, 0.0
    %v574 = vmax.f32 %v467, 0.0
    %v575 = vmax.f32 %v470, 0.0
    %v576 = vmax.f32 %v472, 0.0
    %v577 = vmax.f32 %v475, 0.0
    %v578 = vmax.f32 %v477, 0.0
    %v579 = vmax.f32 %v480, 0.0
    %v580 = vmax.f32 %v482, 0.0
    %v581 = vmax.f32 %v485, 0.0
    %v582 = vmax.f32 %v487, 0.0
    %v583 = vmax.f32 %v490, 0.0
    %v584 = vmax.f32 %v492, 0.0
    %v585 = vmax.f32 %v495, 0.0
    %v586 = vmax.f32 %v497, 0.0
    %v587 = vmax.f32 %v500, 0.0
    %v588 = vmax.f32 %v502, 0.0
    %v589 = vmax.f32 %v505, 0.0
    %v590 = vmax.f32 %v507, 0.0
    %v591 = vmax.f32 %v510, 0.0
    %v592 = vmax.f32 %v512, 0.0
    %v593 = vmax.f32 %v515, 0.0
    %v594 = vmax.f32 %v517, 0.0
    %v595 = vmax.f32 %v520, 0.0
    %v596 = vmax.f32 %v522, 0.0
    %v597 = vmax.f32 %v525, 0.0
    %v598 = vmax.f32 %v527, 0.0
    %v599 = vmax.f32 %v530, 0.0
    %v600 = vmax.f32 %v532, 0.0
    %v601 = vmax.f32 %v535, 0.0
    %v602 = vmax.f32 %v537, 0.0
    %vm603 = vcmask 261120
    %v604 = vsel %vm603, %v539, -inf
    %v605 = vsel %vm603, %v541, -inf
    %v606 = vmax.f32 %v604, %v605
    %v607 = vsel %vm603, %v540, -inf
    %v608 = vsel %vm603, %v542, -inf
    %v609 = vmax.f32 %v607, %v608
    %v610 = vsel %vm603, %v543, -inf
    %v611 = vsel %vm603, %v545, -inf
    %v612 = vmax.f32 %v610, %v611
    %v613 = vsel %vm603, %v544, -inf
    %v614 = vsel %vm603, %v546, -inf
    %v615 = vmax.f32 %v613, %v614
    %v616 = vsel %vm603, %v547, -inf
    %v617 = vsel %vm603, %v549, -inf
    %v618 = vmax.f32 %v616, %v617
    %v619 = vsel %vm603, %v548, -inf
    %v620 = vsel %vm603, %v550, -inf
    %v621 = vmax.f32 %v619, %v620
    %v622 = vsel %vm603, %v551, -inf
    %v623 = vsel %vm603, %v553, -inf
    %v624 = vmax.f32 %v622, %v623
    %v625 = vsel %vm603, %v552, -inf
    %v626 = vsel %vm603, %v554, -inf
    %v627 = vmax.f32 %v625, %v626
    %v628 = vsel %vm603, %v555, -inf
    %v629 = vsel %vm603, %v557, -inf
    %v630 = vmax.f32 %v628, %v629
    %v631 = vsel %vm603, %v556, -inf
    %v632 = vsel %vm603, %v558, -inf
    %v633 = vmax.f32 %v631, %v632
    %v634 = vsel %vm603, %v559, -inf
    %v635 = vsel %vm603, %v561, -inf
    %v636 = vmax.f32 %v634, %v635
    %v637 = vsel %vm603, %v560, -inf
    %v638 = vsel %vm603, %v562, -inf
    %v639 = vmax.f32 %v637, %v638
    %v640 = vsel %vm603, %v563, -inf
    %v641 = vsel %vm603, %v565, -inf
    %v642 = vmax.f32 %v640, %v641
    %v643 = vsel %vm603, %v564, -inf
    %v644 = vsel %vm603, %v566, -inf
    %v645 = vmax.f32 %v643, %v644
    %v646 = vsel %vm603, %v567, -inf
    %v647 = vsel %vm603, %v569, -inf
    %v648 = vmax.f32 %v646, %v647
    %v649 = vsel %vm603, %v568, -inf
    %v650 = vsel %vm603, %v570, -inf
    %v651 = vmax.f32 %v649, %v650
    %v652 = vsel %vm603, %v571, -inf
    %v653 = vsel %vm603, %v573, -inf
    %v654 = vmax.f32 %v652, %v653
    %v655 = vsel %vm603, %v572, -inf
    %v656 = vsel %vm603, %v574, -inf
    %v657 = vmax.f32 %v655, %v656
    %v658 = vsel %vm603, %v575, -inf
    %v659 = vsel %vm603, %v577, -inf
    %v660 = vmax.f32 %v658, %v659
    %v661 = vsel %vm603, %v576, -inf
    %v662 = vsel %vm603, %v578, -inf
    %v663 = vmax.f32 %v661, %v662
    %v664 = vsel %vm603, %v579, -inf
    %v665 = vsel %vm603, %v581, -inf
    %v666 = vmax.f32 %v664, %v665
    %v667 = vsel %vm603, %v580, -inf
    %v668 = vsel %vm603, %v582, -inf
    %v669 = vmax.f32 %v667, %v668
    %v670 = vsel %vm603, %v583, -inf
    %v671 = vsel %vm603, %v585, -inf
    %v672 = vmax.f32 %v670, %v671
    %v673 = vsel %vm603, %v584, -inf
    %v674 = vsel %vm603, %v586, -inf
    %v675 = vmax.f32 %v673, %v674
    %v676 = vsel %vm603, %v587, -inf
    %v677 = vsel %vm603, %v589, -inf
    %v678 = vmax.f32 %v676, %v677
    %v679 = vsel %vm603, %v588, -inf
    %v680 = vsel %vm603, %v590, -inf
    %v681 = vmax.f32 %v679, %v680
    %v682 = vsel %vm603, %v591, -inf
    %v683 = vsel %vm603, %v593, -inf
    %v684 = vmax.f32 %v682, %v683
    %v685 = vsel %vm603, %v592, -inf
    %v686 = vsel %vm603, %v594, -inf
    %v687 = vmax.f32 %v685, %v686
    %v688 = vsel %vm603, %v595, -inf
    %v689 = vsel %vm603, %v597, -inf
    %v690 = vmax.f32 %v688, %v689
    %v691 = vsel %vm603, %v596, -inf
    %v692 = vsel %vm603, %v598, -inf
    %v693 = vmax.f32 %v691, %v692
    %v694 = vsel %vm603, %v599, -inf
    %v695 = vsel %vm603, %v601, -inf
    %v696 = vmax.f32 %v694, %v695
    %v697 = vsel %vm603, %v600, -inf
    %v698 = vsel %vm603, %v602, -inf
    %v699 = vmax.f32 %v697, %v698
    %v732 = vrot.slane %v606, 2
    %v733 = vrot.slane %v606, 4
    %v734 = vrot.slane %v606, 6
    %v735 = vrot.slane %v609, 2
    %v736 = vrot.slane %v609, 4
    %v737 = vrot.slane %v609, 6
    %v738 = vrot.slane %v612, 2
    %v739 = vrot.slane %v612, 4
    %v740 = vrot.slane %v612, 6
    %v741 = vrot.slane %v615, 2
    %v742 = vrot.slane %v615, 4
    %v743 = vrot.slane %v615, 6
    %v744 = vrot.slane %v618, 2
    %v745 = vrot.slane %v618, 4
    %v746 = vrot.slane %v618, 6
    %v747 = vrot.slane %v621, 2
    %v748 = vrot.slane %v621, 4
    %v749 = vrot.slane %v621, 6
    %v750 = vrot.slane %v624, 2
    %v751 = vrot.slane %v624, 4
    %v752 = vrot.slane %v624, 6
    %v753 = vrot.slane %v627, 2
    %v754 = vrot.slane %v627, 4
    %v755 = vrot.slane %v627, 6
    %v756 = vrot.slane %v630, 2
    %v757 = vrot.slane %v630, 4
    %v758 = vrot.slane %v630, 6
    %v759 = vrot.slane %v633, 2
    %v760 = vrot.slane %v633, 4
    %v761 = vrot.slane %v633, 6
    %v762 = vrot.slane %v636, 2
    %v763 = vrot.slane %v636, 4
    %v764 = vrot.slane %v636, 6
    %v765 = vrot.slane %v639, 2
    %v766 = vrot.slane %v639, 4
    %v767 = vrot.slane %v639, 6
    %v768 = vrot.slane %v642, 2
    %v769 = vrot.slane %v642, 4
    %v770 = vrot.slane %v642, 6
    %v771 = vrot.slane %v645, 2
    %v772 = vrot.slane %v645, 4
    %v773 = vrot.slane %v645, 6
    %v774 = vrot.slane %v648, 2
    %v775 = vrot.slane %v648, 4
    %v776 = vrot.slane %v648, 6
    %v777 = vrot.slane %v651, 2
    %v778 = vrot.slane %v651, 4
    %v779 = vrot.slane %v651, 6
    %v780 = vrot.slane %v654, 2
    %v781 = vrot.slane %v654, 4
    %v782 = vrot.slane %v654, 6
    %v783 = vrot.slane %v657, 2
    %v784 = vrot.slane %v657, 4
    %v785 = vrot.slane %v657, 6
    %v786 = vrot.slane %v660, 2
    %v787 = vrot.slane %v660, 4
    %v788 = vrot.slane %v660, 6
    %v789 = vrot.slane %v663, 2
    %v790 = vrot.slane %v663, 4
    %v791 = vrot.slane %v663, 6
    %v792 = vrot.slane %v666, 2
    %v793 = vrot.slane %v666, 4
    %v794 = vrot.slane %v666, 6
    %v795 = vrot.slane %v669, 2
    %v796 = vrot.slane %v669, 4
    %v797 = vrot.slane %v669, 6
    %v798 = vrot.slane %v672, 2
    %v799 = vrot.slane %v672, 4
    %v800 = vrot.slane %v672, 6
    %v801 = vrot.slane %v675, 2
    %v802 = vrot.slane %v675, 4
    %v803 = vrot.slane %v675, 6
    %v804 = vrot.slane %v678, 2
    %v805 = vrot.slane %v678, 4
    %v806 = vrot.slane %v678, 6
    %v807 = vrot.slane %v681, 2
    %v808 = vrot.slane %v681, 4
    %v809 = vrot.slane %v681, 6
    %v810 = vrot.slane %v684, 2
    %v811 = vrot.slane %v684, 4
    %v812 = vrot.slane %v684, 6
    %v813 = vrot.slane %v687, 2
    %v814 = vrot.slane %v687, 4
    %v815 = vrot.slane %v687, 6
    %v816 = vrot.slane %v690, 2
    %v817 = vrot.slane %v690, 4
    %v818 = vrot.slane %v690, 6
    %v819 = vrot.slane %v693, 2
    %v820 = vrot.slane %v693, 4
    %v821 = vrot.slane %v693, 6
    %v822 = vrot.slane %v696, 2
    %v823 = vrot.slane %v696, 4
    %v824 = vrot.slane %v696, 6
    %v825 = vrot.slane %v699, 2
    %v826 = vrot.slane %v699, 4
    %v827 = vrot.slane %v699, 6
    %vm924 = vcmask 254976
    %v925 = vsel %vm924, %v606, -inf
    %v926 = vrot.slane %v925, 4
    %v927 = vmax.f32 %v925, %v926
    %v928 = vrot.slane %v927, 2
    %v929 = vmax.f32 %v927, %v928
    %v930 = vrot.slane %v929, 1
    %v931 = vmax.f32 %v929, %v930
    %v932 = vsel %vm924, %v732, -inf
    %v933 = vrot.slane %v932, 4
    %v934 = vmax.f32 %v932, %v933
    %v935 = vrot.slane %v934, 2
    %v936 = vmax.f32 %v934, %v935
    %v937 = vrot.slane %v936, 1
    %v938 = vmax.f32 %v936, %v937
    %v939 = vsel %vm924, %v733, -inf
    %v940 = vrot.slane %v939, 4
    %v941 = vmax.f32 %v939, %v940
    %v942 = vrot.slane %v941, 2
    %v943 = vmax.f32 %v941, %v942
    %v944 = vrot.slane %v943, 1
    %v945 = vmax.f32 %v943, %v944
    %v946 = vsel %vm924, %v734, -inf
    %v947 = vrot.slane %v946, 4
    %v948 = vmax.f32 %v946, %v947
    %v949 = vrot.slane %v948, 2
    %v950 = vmax.f32 %v948, %v949
    %v951 = vrot.slane %v950, 1
    %v952 = vmax.f32 %v950, %v951
    %v953 = vsel %vm924, %v609, -inf
    %v954 = vrot.slane %v953, 4
    %v955 = vmax.f32 %v953, %v954
    %v956 = vrot.slane %v955, 2
    %v957 = vmax.f32 %v955, %v956
    %v958 = vrot.slane %v957, 1
    %v959 = vmax.f32 %v957, %v958
    %v960 = vsel %vm924, %v735, -inf
    %v961 = vrot.slane %v960, 4
    %v962 = vmax.f32 %v960, %v961
    %v963 = vrot.slane %v962, 2
    %v964 = vmax.f32 %v962, %v963
    %v965 = vrot.slane %v964, 1
    %v966 = vmax.f32 %v964, %v965
    %v967 = vsel %vm924, %v736, -inf
    %v968 = vrot.slane %v967, 4
    %v969 = vmax.f32 %v967, %v968
    %v970 = vrot.slane %v969, 2
    %v971 = vmax.f32 %v969, %v970
    %v972 = vrot.slane %v971, 1
    %v973 = vmax.f32 %v971, %v972
    %v974 = vsel %vm924, %v737, -inf
    %v975 = vrot.slane %v974, 4
    %v976 = vmax.f32 %v974, %v975
    %v977 = vrot.slane %v976, 2
    %v978 = vmax.f32 %v976, %v977
    %v979 = vrot.slane %v978, 1
    %v980 = vmax.f32 %v978, %v979
    %v981 = vsel %vm924, %v612, -inf
    %v982 = vrot.slane %v981, 4
    %v983 = vmax.f32 %v981, %v982
    %v984 = vrot.slane %v983, 2
    %v985 = vmax.f32 %v983, %v984
    %v986 = vrot.slane %v985, 1
    %v987 = vmax.f32 %v985, %v986
    %v988 = vsel %vm924, %v738, -inf
    %v989 = vrot.slane %v988, 4
    %v990 = vmax.f32 %v988, %v989
    %v991 = vrot.slane %v990, 2
    %v992 = vmax.f32 %v990, %v991
    %v993 = vrot.slane %v992, 1
    %v994 = vmax.f32 %v992, %v993
    %v995 = vsel %vm924, %v739, -inf
    %v996 = vrot.slane %v995, 4
    %v997 = vmax.f32 %v995, %v996
    %v998 = vrot.slane %v997, 2
    %v999 = vmax.f32 %v997, %v998
    %v1000 = vrot.slane %v999, 1
    %v1001 = vmax.f32 %v999, %v1000
    %v1002 = vsel %vm924, %v740, -inf
    %v1003 = vrot.slane %v1002, 4
    %v1004 = vmax.f32 %v1002, %v1003
    %v1005 = vrot.slane %v1004, 2
    %v1006 = vmax.f32 %v1004, %v1005
    %v1007 = vrot.slane %v1006, 1
    %v1008 = vmax.f32 %v1006, %v1007
    %v1009 = vsel %vm924, %v615, -inf
    %v1010 = vrot.slane %v1009, 4
    %v1011 = vmax.f32 %v1009, %v1010
    %v1012 = vrot.slane %v1011, 2
    %v1013 = vmax.f32 %v1011, %v1012
    %v1014 = vrot.slane %v1013, 1
    %v1015 = vmax.f32 %v1013, %v1014
    %v1016 = vsel %vm924, %v741, -inf
    %v1017 = vrot.slane %v1016, 4
    %v1018 = vmax.f32 %v1016, %v1017
    %v1019 = vrot.slane %v1018, 2
    %v1020 = vmax.f32 %v1018, %v1019
    %v1021 = vrot.slane %v1020, 1
    %v1022 = vmax.f32 %v1020, %v1021
    %v1023 = vsel %vm924, %v742, -inf
    %v1024 = vrot.slane %v1023, 4
    %v1025 = vmax.f32 %v1023, %v1024
    %v1026 = vrot.slane %v1025, 2
    %v1027 = vmax.f32 %v1025, %v1026
    %v1028 = vrot.slane %v1027, 1
    %v1029 = vmax.f32 %v1027, %v1028
    %v1030 = vsel %vm924, %v743, -inf
    %v1031 = vrot.slane %v1030, 4
    %v1032 = vmax.f32 %v1030, %v1031
    %v1033 = vrot.slane %v1032, 2
    %v1034 = vmax.f32 %v1032, %v1033
    %v1035 = vrot.slane %v1034, 1
    %v1036 = vmax.f32 %v1034, %v1035
    %v1037 = vsel %vm924, %v618, -inf
    %v1038 = vrot.slane %v1037, 4
    %v1039 = vmax.f32 %v1037, %v1038
    %v1040 = vrot.slane %v1039, 2
    %v1041 = vmax.f32 %v1039, %v1040
    %v1042 = vrot.slane %v1041, 1
    %v1043 = vmax.f32 %v1041, %v1042
    %v1044 = vsel %vm924, %v744, -inf
    %v1045 = vrot.slane %v1044, 4
    %v1046 = vmax.f32 %v1044, %v1045
    %v1047 = vrot.slane %v1046, 2
    %v1048 = vmax.f32 %v1046, %v1047
    %v1049 = vrot.slane %v1048, 1
    %v1050 = vmax.f32 %v1048, %v1049
    %v1051 = vsel %vm924, %v745, -inf
    %v1052 = vrot.slane %v1051, 4
    %v1053 = vmax.f32 %v1051, %v1052
    %v1054 = vrot.slane %v1053, 2
    %v1055 = vmax.f32 %v1053, %v1054
    %v1056 = vrot.slane %v1055, 1
    %v1057 = vmax.f32 %v1055, %v1056
    %v1058 = vsel %vm924, %v746, -inf
    %v1059 = vrot.slane %v1058, 4
    %v1060 = vmax.f32 %v1058, %v1059
    %v1061 = vrot.slane %v1060, 2
    %v1062 = vmax.f32 %v1060, %v1061
    %v1063 = vrot.slane %v1062, 1
    %v1064 = vmax.f32 %v1062, %v1063
    %v1065 = vsel %vm924, %v621, -inf
    %v1066 = vrot.slane %v1065, 4
    %v1067 = vmax.f32 %v1065, %v1066
    %v1068 = vrot.slane %v1067, 2
    %v1069 = vmax.f32 %v1067, %v1068
    %v1070 = vrot.slane %v1069, 1
    %v1071 = vmax.f32 %v1069, %v1070
    %v1072 = vsel %vm924, %v747, -inf
    %v1073 = vrot.slane %v1072, 4
    %v1074 = vmax.f32 %v1072, %v1073
    %v1075 = vrot.slane %v1074, 2
    %v1076 = vmax.f32 %v1074, %v1075
    %v1077 = vrot.slane %v1076, 1
    %v1078 = vmax.f32 %v1076, %v1077
    %v1079 = vsel %vm924, %v748, -inf
    %v1080 = vrot.slane %v1079, 4
    %v1081 = vmax.f32 %v1079, %v1080
    %v1082 = vrot.slane %v1081, 2
    %v1083 = vmax.f32 %v1081, %v1082
    %v1084 = vrot.slane %v1083, 1
    %v1085 = vmax.f32 %v1083, %v1084
    %v1086 = vsel %vm924, %v749, -inf
    %v1087 = vrot.slane %v1086, 4
    %v1088 = vmax.f32 %v1086, %v1087
    %v1089 = vrot.slane %v1088, 2
    %v1090 = vmax.f32 %v1088, %v1089
    %v1091 = vrot.slane %v1090, 1
    %v1092 = vmax.f32 %v1090, %v1091
    %v1093 = vsel %vm924, %v624, -inf
    %v1094 = vrot.slane %v1093, 4
    %v1095 = vmax.f32 %v1093, %v1094
    %v1096 = vrot.slane %v1095, 2
    %v1097 = vmax.f32 %v1095, %v1096
    %v1098 = vrot.slane %v1097, 1
    %v1099 = vmax.f32 %v1097, %v1098
    %v1100 = vsel %vm924, %v750, -inf
    %v1101 = vrot.slane %v1100, 4
    %v1102 = vmax.f32 %v1100, %v1101
    %v1103 = vrot.slane %v1102, 2
    %v1104 = vmax.f32 %v1102, %v1103
    %v1105 = vrot.slane %v1104, 1
    %v1106 = vmax.f32 %v1104, %v1105
    %v1107 = vsel %vm924, %v751, -inf
    %v1108 = vrot.slane %v1107, 4
    %v1109 = vmax.f32 %v1107, %v1108
    %v1110 = vrot.slane %v1109, 2
    %v1111 = vmax.f32 %v1109, %v1110
    %v1112 = vrot.slane %v1111, 1
    %v1113 = vmax.f32 %v1111, %v1112
    %v1114 = vsel %vm924, %v752, -inf
    %v1115 = vrot.slane %v1114, 4
    %v1116 = vmax.f32 %v1114, %v1115
    %v1117 = vrot.slane %v1116, 2
    %v1118 = vmax.f32 %v1116, %v1117
    %v1119 = vrot.slane %v1118, 1
    %v1120 = vmax.f32 %v1118, %v1119
    %v1121 = vsel %vm924, %v627, -inf
    %v1122 = vrot.slane %v1121, 4
    %v1123 = vmax.f32 %v1121, %v1122
    %v1124 = vrot.slane %v1123, 2
    %v1125 = vmax.f32 %v1123, %v1124
    %v1126 = vrot.slane %v1125, 1
    %v1127 = vmax.f32 %v1125, %v1126
    %v1128 = vsel %vm924, %v753, -inf
    %v1129 = vrot.slane %v1128, 4
    %v1130 = vmax.f32 %v1128, %v1129
    %v1131 = vrot.slane %v1130, 2
    %v1132 = vmax.f32 %v1130, %v1131
    %v1133 = vrot.slane %v1132, 1
    %v1134 = vmax.f32 %v1132, %v1133
    %v1135 = vsel %vm924, %v754, -inf
    %v1136 = vrot.slane %v1135, 4
    %v1137 = vmax.f32 %v1135, %v1136
    %v1138 = vrot.slane %v1137, 2
    %v1139 = vmax.f32 %v1137, %v1138
    %v1140 = vrot.slane %v1139, 1
    %v1141 = vmax.f32 %v1139, %v1140
    %v1142 = vsel %vm924, %v755, -inf
    %v1143 = vrot.slane %v1142, 4
    %v1144 = vmax.f32 %v1142, %v1143
    %v1145 = vrot.slane %v1144, 2
    %v1146 = vmax.f32 %v1144, %v1145
    %v1147 = vrot.slane %v1146, 1
    %v1148 = vmax.f32 %v1146, %v1147
    %v1149 = vsel %vm924, %v630, -inf
    %v1150 = vrot.slane %v1149, 4
    %v1151 = vmax.f32 %v1149, %v1150
    %v1152 = vrot.slane %v1151, 2
    %v1153 = vmax.f32 %v1151, %v1152
    %v1154 = vrot.slane %v1153, 1
    %v1155 = vmax.f32 %v1153, %v1154
    %v1156 = vsel %vm924, %v756, -inf
    %v1157 = vrot.slane %v1156, 4
    %v1158 = vmax.f32 %v1156, %v1157
    %v1159 = vrot.slane %v1158, 2
    %v1160 = vmax.f32 %v1158, %v1159
    %v1161 = vrot.slane %v1160, 1
    %v1162 = vmax.f32 %v1160, %v1161
    %v1163 = vsel %vm924, %v757, -inf
    %v1164 = vrot.slane %v1163, 4
    %v1165 = vmax.f32 %v1163, %v1164
    %v1166 = vrot.slane %v1165, 2
    %v1167 = vmax.f32 %v1165, %v1166
    %v1168 = vrot.slane %v1167, 1
    %v1169 = vmax.f32 %v1167, %v1168
    %v1170 = vsel %vm924, %v758, -inf
    %v1171 = vrot.slane %v1170, 4
    %v1172 = vmax.f32 %v1170, %v1171
    %v1173 = vrot.slane %v1172, 2
    %v1174 = vmax.f32 %v1172, %v1173
    %v1175 = vrot.slane %v1174, 1
    %v1176 = vmax.f32 %v1174, %v1175
    %v1177 = vsel %vm924, %v633, -inf
    %v1178 = vrot.slane %v1177, 4
    %v1179 = vmax.f32 %v1177, %v1178
    %v1180 = vrot.slane %v1179, 2
    %v1181 = vmax.f32 %v1179, %v1180
    %v1182 = vrot.slane %v1181, 1
    %v1183 = vmax.f32 %v1181, %v1182
    %v1184 = vsel %vm924, %v759, -inf
    %v1185 = vrot.slane %v1184, 4
    %v1186 = vmax.f32 %v1184, %v1185
    %v1187 = vrot.slane %v1186, 2
    %v1188 = vmax.f32 %v1186, %v1187
    %v1189 = vrot.slane %v1188, 1
    %v1190 = vmax.f32 %v1188, %v1189
    %v1191 = vsel %vm924, %v760, -inf
    %v1192 = vrot.slane %v1191, 4
    %v1193 = vmax.f32 %v1191, %v1192
    %v1194 = vrot.slane %v1193, 2
    %v1195 = vmax.f32 %v1193, %v1194
    %v1196 = vrot.slane %v1195, 1
    %v1197 = vmax.f32 %v1195, %v1196
    %v1198 = vsel %vm924, %v761, -inf
    %v1199 = vrot.slane %v1198, 4
    %v1200 = vmax.f32 %v1198, %v1199
    %v1201 = vrot.slane %v1200, 2
    %v1202 = vmax.f32 %v1200, %v1201
    %v1203 = vrot.slane %v1202, 1
    %v1204 = vmax.f32 %v1202, %v1203
    %v1205 = vsel %vm924, %v636, -inf
    %v1206 = vrot.slane %v1205, 4
    %v1207 = vmax.f32 %v1205, %v1206
    %v1208 = vrot.slane %v1207, 2
    %v1209 = vmax.f32 %v1207, %v1208
    %v1210 = vrot.slane %v1209, 1
    %v1211 = vmax.f32 %v1209, %v1210
    %v1212 = vsel %vm924, %v762, -inf
    %v1213 = vrot.slane %v1212, 4
    %v1214 = vmax.f32 %v1212, %v1213
    %v1215 = vrot.slane %v1214, 2
    %v1216 = vmax.f32 %v1214, %v1215
    %v1217 = vrot.slane %v1216, 1
    %v1218 = vmax.f32 %v1216, %v1217
    %v1219 = vsel %vm924, %v763, -inf
    %v1220 = vrot.slane %v1219, 4
    %v1221 = vmax.f32 %v1219, %v1220
    %v1222 = vrot.slane %v1221, 2
    %v1223 = vmax.f32 %v1221, %v1222
    %v1224 = vrot.slane %v1223, 1
    %v1225 = vmax.f32 %v1223, %v1224
    %v1226 = vsel %vm924, %v764, -inf
    %v1227 = vrot.slane %v1226, 4
    %v1228 = vmax.f32 %v1226, %v1227
    %v1229 = vrot.slane %v1228, 2
    %v1230 = vmax.f32 %v1228, %v1229
    %v1231 = vrot.slane %v1230, 1
    %v1232 = vmax.f32 %v1230, %v1231
    %v1233 = vsel %vm924, %v639, -inf
    %v1234 = vrot.slane %v1233, 4
    %v1235 = vmax.f32 %v1233, %v1234
    %v1236 = vrot.slane %v1235, 2
    %v1237 = vmax.f32 %v1235, %v1236
    %v1238 = vrot.slane %v1237, 1
    %v1239 = vmax.f32 %v1237, %v1238
    %v1240 = vsel %vm924, %v765, -inf
    %v1241 = vrot.slane %v1240, 4
    %v1242 = vmax.f32 %v1240, %v1241
    %v1243 = vrot.slane %v1242, 2
    %v1244 = vmax.f32 %v1242, %v1243
    %v1245 = vrot.slane %v1244, 1
    %v1246 = vmax.f32 %v1244, %v1245
    %v1247 = vsel %vm924, %v766, -inf
    %v1248 = vrot.slane %v1247, 4
    %v1249 = vmax.f32 %v1247, %v1248
    %v1250 = vrot.slane %v1249, 2
    %v1251 = vmax.f32 %v1249, %v1250
    %v1252 = vrot.slane %v1251, 1
    %v1253 = vmax.f32 %v1251, %v1252
    %v1254 = vsel %vm924, %v767, -inf
    %v1255 = vrot.slane %v1254, 4
    %v1256 = vmax.f32 %v1254, %v1255
    %v1257 = vrot.slane %v1256, 2
    %v1258 = vmax.f32 %v1256, %v1257
    %v1259 = vrot.slane %v1258, 1
    %v1260 = vmax.f32 %v1258, %v1259
    %v1261 = vsel %vm924, %v642, -inf
    %v1262 = vrot.slane %v1261, 4
    %v1263 = vmax.f32 %v1261, %v1262
    %v1264 = vrot.slane %v1263, 2
    %v1265 = vmax.f32 %v1263, %v1264
    %v1266 = vrot.slane %v1265, 1
    %v1267 = vmax.f32 %v1265, %v1266
    %v1268 = vsel %vm924, %v768, -inf
    %v1269 = vrot.slane %v1268, 4
    %v1270 = vmax.f32 %v1268, %v1269
    %v1271 = vrot.slane %v1270, 2
    %v1272 = vmax.f32 %v1270, %v1271
    %v1273 = vrot.slane %v1272, 1
    %v1274 = vmax.f32 %v1272, %v1273
    %v1275 = vsel %vm924, %v769, -inf
    %v1276 = vrot.slane %v1275, 4
    %v1277 = vmax.f32 %v1275, %v1276
    %v1278 = vrot.slane %v1277, 2
    %v1279 = vmax.f32 %v1277, %v1278
    %v1280 = vrot.slane %v1279, 1
    %v1281 = vmax.f32 %v1279, %v1280
    %v1282 = vsel %vm924, %v770, -inf
    %v1283 = vrot.slane %v1282, 4
    %v1284 = vmax.f32 %v1282, %v1283
    %v1285 = vrot.slane %v1284, 2
    %v1286 = vmax.f32 %v1284, %v1285
    %v1287 = vrot.slane %v1286, 1
    %v1288 = vmax.f32 %v1286, %v1287
    %v1289 = vsel %vm924, %v645, -inf
    %v1290 = vrot.slane %v1289, 4
    %v1291 = vmax.f32 %v1289, %v1290
    %v1292 = vrot.slane %v1291, 2
    %v1293 = vmax.f32 %v1291, %v1292
    %v1294 = vrot.slane %v1293, 1
    %v1295 = vmax.f32 %v1293, %v1294
    %v1296 = vsel %vm924, %v771, -inf
    %v1297 = vrot.slane %v1296, 4
    %v1298 = vmax.f32 %v1296, %v1297
    %v1299 = vrot.slane %v1298, 2
    %v1300 = vmax.f32 %v1298, %v1299
    %v1301 = vrot.slane %v1300, 1
    %v1302 = vmax.f32 %v1300, %v1301
    %v1303 = vsel %vm924, %v772, -inf
    %v1304 = vrot.slane %v1303, 4
    %v1305 = vmax.f32 %v1303, %v1304
    %v1306 = vrot.slane %v1305, 2
    %v1307 = vmax.f32 %v1305, %v1306
    %v1308 = vrot.slane %v1307, 1
    %v1309 = vmax.f32 %v1307, %v1308
    %v1310 = vsel %vm924, %v773, -inf
    %v1311 = vrot.slane %v1310, 4
    %v1312 = vmax.f32 %v1310, %v1311
    %v1313 = vrot.slane %v1312, 2
    %v1314 = vmax.f32 %v1312, %v1313
    %v1315 = vrot.slane %v1314, 1
    %v1316 = vmax.f32 %v1314, %v1315
    %v1317 = vsel %vm924, %v648, -inf
    %v1318 = vrot.slane %v1317, 4
    %v1319 = vmax.f32 %v1317, %v1318
    %v1320 = vrot.slane %v1319, 2
    %v1321 = vmax.f32 %v1319, %v1320
    %v1322 = vrot.slane %v1321, 1
    %v1323 = vmax.f32 %v1321, %v1322
    %v1324 = vsel %vm924, %v774, -inf
    %v1325 = vrot.slane %v1324, 4
    %v1326 = vmax.f32 %v1324, %v1325
    %v1327 = vrot.slane %v1326, 2
    %v1328 = vmax.f32 %v1326, %v1327
    %v1329 = vrot.slane %v1328, 1
    %v1330 = vmax.f32 %v1328, %v1329
    %v1331 = vsel %vm924, %v775, -inf
    %v1332 = vrot.slane %v1331, 4
    %v1333 = vmax.f32 %v1331, %v1332
    %v1334 = vrot.slane %v1333, 2
    %v1335 = vmax.f32 %v1333, %v1334
    %v1336 = vrot.slane %v1335, 1
    %v1337 = vmax.f32 %v1335, %v1336
    %v1338 = vsel %vm924, %v776, -inf
    %v1339 = vrot.slane %v1338, 4
    %v1340 = vmax.f32 %v1338, %v1339
    %v1341 = vrot.slane %v1340, 2
    %v1342 = vmax.f32 %v1340, %v1341
    %v1343 = vrot.slane %v1342, 1
    %v1344 = vmax.f32 %v1342, %v1343
    %v1345 = vsel %vm924, %v651, -inf
    %v1346 = vrot.slane %v1345, 4
    %v1347 = vmax.f32 %v1345, %v1346
    %v1348 = vrot.slane %v1347, 2
    %v1349 = vmax.f32 %v1347, %v1348
    %v1350 = vrot.slane %v1349, 1
    %v1351 = vmax.f32 %v1349, %v1350
    %v1352 = vsel %vm924, %v777, -inf
    %v1353 = vrot.slane %v1352, 4
    %v1354 = vmax.f32 %v1352, %v1353
    %v1355 = vrot.slane %v1354, 2
    %v1356 = vmax.f32 %v1354, %v1355
    %v1357 = vrot.slane %v1356, 1
    %v1358 = vmax.f32 %v1356, %v1357
    %v1359 = vsel %vm924, %v778, -inf
    %v1360 = vrot.slane %v1359, 4
    %v1361 = vmax.f32 %v1359, %v1360
    %v1362 = vrot.slane %v1361, 2
    %v1363 = vmax.f32 %v1361, %v1362
    %v1364 = vrot.slane %v1363, 1
    %v1365 = vmax.f32 %v1363, %v1364
    %v1366 = vsel %vm924, %v779, -inf
    %v1367 = vrot.slane %v1366, 4
    %v1368 = vmax.f32 %v1366, %v1367
    %v1369 = vrot.slane %v1368, 2
    %v1370 = vmax.f32 %v1368, %v1369
    %v1371 = vrot.slane %v1370, 1
    %v1372 = vmax.f32 %v1370, %v1371
    %v1373 = vsel %vm924, %v654, -inf
    %v1374 = vrot.slane %v1373, 4
    %v1375 = vmax.f32 %v1373, %v1374
    %v1376 = vrot.slane %v1375, 2
    %v1377 = vmax.f32 %v1375, %v1376
    %v1378 = vrot.slane %v1377, 1
    %v1379 = vmax.f32 %v1377, %v1378
    %v1380 = vsel %vm924, %v780, -inf
    %v1381 = vrot.slane %v1380, 4
    %v1382 = vmax.f32 %v1380, %v1381
    %v1383 = vrot.slane %v1382, 2
    %v1384 = vmax.f32 %v1382, %v1383
    %v1385 = vrot.slane %v1384, 1
    %v1386 = vmax.f32 %v1384, %v1385
    %v1387 = vsel %vm924, %v781, -inf
    %v1388 = vrot.slane %v1387, 4
    %v1389 = vmax.f32 %v1387, %v1388
    %v1390 = vrot.slane %v1389, 2
    %v1391 = vmax.f32 %v1389, %v1390
    %v1392 = vrot.slane %v1391, 1
    %v1393 = vmax.f32 %v1391, %v1392
    %v1394 = vsel %vm924, %v782, -inf
    %v1395 = vrot.slane %v1394, 4
    %v1396 = vmax.f32 %v1394, %v1395
    %v1397 = vrot.slane %v1396, 2
    %v1398 = vmax.f32 %v1396, %v1397
    %v1399 = vrot.slane %v1398, 1
    %v1400 = vmax.f32 %v1398, %v1399
    %v1401 = vsel %vm924, %v657, -inf
    %v1402 = vrot.slane %v1401, 4
    %v1403 = vmax.f32 %v1401, %v1402
    %v1404 = vrot.slane %v1403, 2
    %v1405 = vmax.f32 %v1403, %v1404
    %v1406 = vrot.slane %v1405, 1
    %v1407 = vmax.f32 %v1405, %v1406
    %v1408 = vsel %vm924, %v783, -inf
    %v1409 = vrot.slane %v1408, 4
    %v1410 = vmax.f32 %v1408, %v1409
    %v1411 = vrot.slane %v1410, 2
    %v1412 = vmax.f32 %v1410, %v1411
    %v1413 = vrot.slane %v1412, 1
    %v1414 = vmax.f32 %v1412, %v1413
    %v1415 = vsel %vm924, %v784, -inf
    %v1416 = vrot.slane %v1415, 4
    %v1417 = vmax.f32 %v1415, %v1416
    %v1418 = vrot.slane %v1417, 2
    %v1419 = vmax.f32 %v1417, %v1418
    %v1420 = vrot.slane %v1419, 1
    %v1421 = vmax.f32 %v1419, %v1420
    %v1422 = vsel %vm924, %v785, -inf
    %v1423 = vrot.slane %v1422, 4
    %v1424 = vmax.f32 %v1422, %v1423
    %v1425 = vrot.slane %v1424, 2
    %v1426 = vmax.f32 %v1424, %v1425
    %v1427 = vrot.slane %v1426, 1
    %v1428 = vmax.f32 %v1426, %v1427
    %v1429 = vsel %vm924, %v660, -inf
    %v1430 = vrot.slane %v1429, 4
    %v1431 = vmax.f32 %v1429, %v1430
    %v1432 = vrot.slane %v1431, 2
    %v1433 = vmax.f32 %v1431, %v1432
    %v1434 = vrot.slane %v1433, 1
    %v1435 = vmax.f32 %v1433, %v1434
    %v1436 = vsel %vm924, %v786, -inf
    %v1437 = vrot.slane %v1436, 4
    %v1438 = vmax.f32 %v1436, %v1437
    %v1439 = vrot.slane %v1438, 2
    %v1440 = vmax.f32 %v1438, %v1439
    %v1441 = vrot.slane %v1440, 1
    %v1442 = vmax.f32 %v1440, %v1441
    %v1443 = vsel %vm924, %v787, -inf
    %v1444 = vrot.slane %v1443, 4
    %v1445 = vmax.f32 %v1443, %v1444
    %v1446 = vrot.slane %v1445, 2
    %v1447 = vmax.f32 %v1445, %v1446
    %v1448 = vrot.slane %v1447, 1
    %v1449 = vmax.f32 %v1447, %v1448
    %v1450 = vsel %vm924, %v788, -inf
    %v1451 = vrot.slane %v1450, 4
    %v1452 = vmax.f32 %v1450, %v1451
    %v1453 = vrot.slane %v1452, 2
    %v1454 = vmax.f32 %v1452, %v1453
    %v1455 = vrot.slane %v1454, 1
    %v1456 = vmax.f32 %v1454, %v1455
    %v1457 = vsel %vm924, %v663, -inf
    %v1458 = vrot.slane %v1457, 4
    %v1459 = vmax.f32 %v1457, %v1458
    %v1460 = vrot.slane %v1459, 2
    %v1461 = vmax.f32 %v1459, %v1460
    %v1462 = vrot.slane %v1461, 1
    %v1463 = vmax.f32 %v1461, %v1462
    %v1464 = vsel %vm924, %v789, -inf
    %v1465 = vrot.slane %v1464, 4
    %v1466 = vmax.f32 %v1464, %v1465
    %v1467 = vrot.slane %v1466, 2
    %v1468 = vmax.f32 %v1466, %v1467
    %v1469 = vrot.slane %v1468, 1
    %v1470 = vmax.f32 %v1468, %v1469
    %v1471 = vsel %vm924, %v790, -inf
    %v1472 = vrot.slane %v1471, 4
    %v1473 = vmax.f32 %v1471, %v1472
    %v1474 = vrot.slane %v1473, 2
    %v1475 = vmax.f32 %v1473, %v1474
    %v1476 = vrot.slane %v1475, 1
    %v1477 = vmax.f32 %v1475, %v1476
    %v1478 = vsel %vm924, %v791, -inf
    %v1479 = vrot.slane %v1478, 4
    %v1480 = vmax.f32 %v1478, %v1479
    %v1481 = vrot.slane %v1480, 2
    %v1482 = vmax.f32 %v1480, %v1481
    %v1483 = vrot.slane %v1482, 1
    %v1484 = vmax.f32 %v1482, %v1483
    %v1485 = vsel %vm924, %v666, -inf
    %v1486 = vrot.slane %v1485, 4
    %v1487 = vmax.f32 %v1485, %v1486
    %v1488 = vrot.slane %v1487, 2
    %v1489 = vmax.f32 %v1487, %v1488
    %v1490 = vrot.slane %v1489, 1
    %v1491 = vmax.f32 %v1489, %v1490
    %v1492 = vsel %vm924, %v792, -inf
    %v1493 = vrot.slane %v1492, 4
    %v1494 = vmax.f32 %v1492, %v1493
    %v1495 = vrot.slane %v1494, 2
    %v1496 = vmax.f32 %v1494, %v1495
    %v1497 = vrot.slane %v1496, 1
    %v1498 = vmax.f32 %v1496, %v1497
    %v1499 = vsel %vm924, %v793, -inf
    %v1500 = vrot.slane %v1499, 4
    %v1501 = vmax.f32 %v1499, %v1500
    %v1502 = vrot.slane %v1501, 2
    %v1503 = vmax.f32 %v1501, %v1502
    %v1504 = vrot.slane %v1503, 1
    %v1505 = vmax.f32 %v1503, %v1504
    %v1506 = vsel %vm924, %v794, -inf
    %v1507 = vrot.slane %v1506, 4
    %v1508 = vmax.f32 %v1506, %v1507
    %v1509 = vrot.slane %v1508, 2
    %v1510 = vmax.f32 %v1508, %v1509
    %v1511 = vrot.slane %v1510, 1
    %v1512 = vmax.f32 %v1510, %v1511
    %v1513 = vsel %vm924, %v669, -inf
    %v1514 = vrot.slane %v1513, 4
    %v1515 = vmax.f32 %v1513, %v1514
    %v1516 = vrot.slane %v1515, 2
    %v1517 = vmax.f32 %v1515, %v1516
    %v1518 = vrot.slane %v1517, 1
    %v1519 = vmax.f32 %v1517, %v1518
    %v1520 = vsel %vm924, %v795, -inf
    %v1521 = vrot.slane %v1520, 4
    %v1522 = vmax.f32 %v1520, %v1521
    %v1523 = vrot.slane %v1522, 2
    %v1524 = vmax.f32 %v1522, %v1523
    %v1525 = vrot.slane %v1524, 1
    %v1526 = vmax.f32 %v1524, %v1525
    %v1527 = vsel %vm924, %v796, -inf
    %v1528 = vrot.slane %v1527, 4
    %v1529 = vmax.f32 %v1527, %v1528
    %v1530 = vrot.slane %v1529, 2
    %v1531 = vmax.f32 %v1529, %v1530
    %v1532 = vrot.slane %v1531, 1
    %v1533 = vmax.f32 %v1531, %v1532
    %v1534 = vsel %vm924, %v797, -inf
    %v1535 = vrot.slane %v1534, 4
    %v1536 = vmax.f32 %v1534, %v1535
    %v1537 = vrot.slane %v1536, 2
    %v1538 = vmax.f32 %v1536, %v1537
    %v1539 = vrot.slane %v1538, 1
    %v1540 = vmax.f32 %v1538, %v1539
    %v1541 = vsel %vm924, %v672, -inf
    %v1542 = vrot.slane %v1541, 4
    %v1543 = vmax.f32 %v1541, %v1542
    %v1544 = vrot.slane %v1543, 2
    %v1545 = vmax.f32 %v1543, %v1544
    %v1546 = vrot.slane %v1545, 1
    %v1547 = vmax.f32 %v1545, %v1546
    %v1548 = vsel %vm924, %v798, -inf
    %v1549 = vrot.slane %v1548, 4
    %v1550 = vmax.f32 %v1548, %v1549
    %v1551 = vrot.slane %v1550, 2
    %v1552 = vmax.f32 %v1550, %v1551
    %v1553 = vrot.slane %v1552, 1
    %v1554 = vmax.f32 %v1552, %v1553
    %v1555 = vsel %vm924, %v799, -inf
    %v1556 = vrot.slane %v1555, 4
    %v1557 = vmax.f32 %v1555, %v1556
    %v1558 = vrot.slane %v1557, 2
    %v1559 = vmax.f32 %v1557, %v1558
    %v1560 = vrot.slane %v1559, 1
    %v1561 = vmax.f32 %v1559, %v1560
    %v1562 = vsel %vm924, %v800, -inf
    %v1563 = vrot.slane %v1562, 4
    %v1564 = vmax.f32 %v1562, %v1563
    %v1565 = vrot.slane %v1564, 2
    %v1566 = vmax.f32 %v1564, %v1565
    %v1567 = vrot.slane %v1566, 1
    %v1568 = vmax.f32 %v1566, %v1567
    %v1569 = vsel %vm924, %v675, -inf
    %v1570 = vrot.slane %v1569, 4
    %v1571 = vmax.f32 %v1569, %v1570
    %v1572 = vrot.slane %v1571, 2
    %v1573 = vmax.f32 %v1571, %v1572
    %v1574 = vrot.slane %v1573, 1
    %v1575 = vmax.f32 %v1573, %v1574
    %v1576 = vsel %vm924, %v801, -inf
    %v1577 = vrot.slane %v1576, 4
    %v1578 = vmax.f32 %v1576, %v1577
    %v1579 = vrot.slane %v1578, 2
    %v1580 = vmax.f32 %v1578, %v1579
    %v1581 = vrot.slane %v1580, 1
    %v1582 = vmax.f32 %v1580, %v1581
    %v1583 = vsel %vm924, %v802, -inf
    %v1584 = vrot.slane %v1583, 4
    %v1585 = vmax.f32 %v1583, %v1584
    %v1586 = vrot.slane %v1585, 2
    %v1587 = vmax.f32 %v1585, %v1586
    %v1588 = vrot.slane %v1587, 1
    %v1589 = vmax.f32 %v1587, %v1588
    %v1590 = vsel %vm924, %v803, -inf
    %v1591 = vrot.slane %v1590, 4
    %v1592 = vmax.f32 %v1590, %v1591
    %v1593 = vrot.slane %v1592, 2
    %v1594 = vmax.f32 %v1592, %v1593
    %v1595 = vrot.slane %v1594, 1
    %v1596 = vmax.f32 %v1594, %v1595
    %v1597 = vsel %vm924, %v678, -inf
    %v1598 = vrot.slane %v1597, 4
    %v1599 = vmax.f32 %v1597, %v1598
    %v1600 = vrot.slane %v1599, 2
    %v1601 = vmax.f32 %v1599, %v1600
    %v1602 = vrot.slane %v1601, 1
    %v1603 = vmax.f32 %v1601, %v1602
    %v1604 = vsel %vm924, %v804, -inf
    %v1605 = vrot.slane %v1604, 4
    %v1606 = vmax.f32 %v1604, %v1605
    %v1607 = vrot.slane %v1606, 2
    %v1608 = vmax.f32 %v1606, %v1607
    %v1609 = vrot.slane %v1608, 1
    %v1610 = vmax.f32 %v1608, %v1609
    %v1611 = vsel %vm924, %v805, -inf
    %v1612 = vrot.slane %v1611, 4
    %v1613 = vmax.f32 %v1611, %v1612
    %v1614 = vrot.slane %v1613, 2
    %v1615 = vmax.f32 %v1613, %v1614
    %v1616 = vrot.slane %v1615, 1
    %v1617 = vmax.f32 %v1615, %v1616
    %v1618 = vsel %vm924, %v806, -inf
    %v1619 = vrot.slane %v1618, 4
    %v1620 = vmax.f32 %v1618, %v1619
    %v1621 = vrot.slane %v1620, 2
    %v1622 = vmax.f32 %v1620, %v1621
    %v1623 = vrot.slane %v1622, 1
    %v1624 = vmax.f32 %v1622, %v1623
    %v1625 = vsel %vm924, %v681, -inf
    %v1626 = vrot.slane %v1625, 4
    %v1627 = vmax.f32 %v1625, %v1626
    %v1628 = vrot.slane %v1627, 2
    %v1629 = vmax.f32 %v1627, %v1628
    %v1630 = vrot.slane %v1629, 1
    %v1631 = vmax.f32 %v1629, %v1630
    %v1632 = vsel %vm924, %v807, -inf
    %v1633 = vrot.slane %v1632, 4
    %v1634 = vmax.f32 %v1632, %v1633
    %v1635 = vrot.slane %v1634, 2
    %v1636 = vmax.f32 %v1634, %v1635
    %v1637 = vrot.slane %v1636, 1
    %v1638 = vmax.f32 %v1636, %v1637
    %v1639 = vsel %vm924, %v808, -inf
    %v1640 = vrot.slane %v1639, 4
    %v1641 = vmax.f32 %v1639, %v1640
    %v1642 = vrot.slane %v1641, 2
    %v1643 = vmax.f32 %v1641, %v1642
    %v1644 = vrot.slane %v1643, 1
    %v1645 = vmax.f32 %v1643, %v1644
    %v1646 = vsel %vm924, %v809, -inf
    %v1647 = vrot.slane %v1646, 4
    %v1648 = vmax.f32 %v1646, %v1647
    %v1649 = vrot.slane %v1648, 2
    %v1650 = vmax.f32 %v1648, %v1649
    %v1651 = vrot.slane %v1650, 1
    %v1652 = vmax.f32 %v1650, %v1651
    %v1653 = vsel %vm924, %v684, -inf
    %v1654 = vrot.slane %v1653, 4
    %v1655 = vmax.f32 %v1653, %v1654
    %v1656 = vrot.slane %v1655, 2
    %v1657 = vmax.f32 %v1655, %v1656
    %v1658 = vrot.slane %v1657, 1
    %v1659 = vmax.f32 %v1657, %v1658
    %v1660 = vsel %vm924, %v810, -inf
    %v1661 = vrot.slane %v1660, 4
    %v1662 = vmax.f32 %v1660, %v1661
    %v1663 = vrot.slane %v1662, 2
    %v1664 = vmax.f32 %v1662, %v1663
    %v1665 = vrot.slane %v1664, 1
    %v1666 = vmax.f32 %v1664, %v1665
    %v1667 = vsel %vm924, %v811, -inf
    %v1668 = vrot.slane %v1667, 4
    %v1669 = vmax.f32 %v1667, %v1668
    %v1670 = vrot.slane %v1669, 2
    %v1671 = vmax.f32 %v1669, %v1670
    %v1672 = vrot.slane %v1671, 1
    %v1673 = vmax.f32 %v1671, %v1672
    %v1674 = vsel %vm924, %v812, -inf
    %v1675 = vrot.slane %v1674, 4
    %v1676 = vmax.f32 %v1674, %v1675
    %v1677 = vrot.slane %v1676, 2
    %v1678 = vmax.f32 %v1676, %v1677
    %v1679 = vrot.slane %v1678, 1
    %v1680 = vmax.f32 %v1678, %v1679
    %v1681 = vsel %vm924, %v687, -inf
    %v1682 = vrot.slane %v1681, 4
    %v1683 = vmax.f32 %v1681, %v1682
    %v1684 = vrot.slane %v1683, 2
    %v1685 = vmax.f32 %v1683, %v1684
    %v1686 = vrot.slane %v1685, 1
    %v1687 = vmax.f32 %v1685, %v1686
    %v1688 = vsel %vm924, %v813, -inf
    %v1689 = vrot.slane %v1688, 4
    %v1690 = vmax.f32 %v1688, %v1689
    %v1691 = vrot.slane %v1690, 2
    %v1692 = vmax.f32 %v1690, %v1691
    %v1693 = vrot.slane %v1692, 1
    %v1694 = vmax.f32 %v1692, %v1693
    %v1695 = vsel %vm924, %v814, -inf
    %v1696 = vrot.slane %v1695, 4
    %v1697 = vmax.f32 %v1695, %v1696
    %v1698 = vrot.slane %v1697, 2
    %v1699 = vmax.f32 %v1697, %v1698
    %v1700 = vrot.slane %v1699, 1
    %v1701 = vmax.f32 %v1699, %v1700
    %v1702 = vsel %vm924, %v815, -inf
    %v1703 = vrot.slane %v1702, 4
    %v1704 = vmax.f32 %v1702, %v1703
    %v1705 = vrot.slane %v1704, 2
    %v1706 = vmax.f32 %v1704, %v1705
    %v1707 = vrot.slane %v1706, 1
    %v1708 = vmax.f32 %v1706, %v1707
    %v1709 = vsel %vm924, %v690, -inf
    %v1710 = vrot.slane %v1709, 4
    %v1711 = vmax.f32 %v1709, %v1710
    %v1712 = vrot.slane %v1711, 2
    %v1713 = vmax.f32 %v1711, %v1712
    %v1714 = vrot.slane %v1713, 1
    %v1715 = vmax.f32 %v1713, %v1714
    %v1716 = vsel %vm924, %v816, -inf
    %v1717 = vrot.slane %v1716, 4
    %v1718 = vmax.f32 %v1716, %v1717
    %v1719 = vrot.slane %v1718, 2
    %v1720 = vmax.f32 %v1718, %v1719
    %v1721 = vrot.slane %v1720, 1
    %v1722 = vmax.f32 %v1720, %v1721
    %v1723 = vsel %vm924, %v817, -inf
    %v1724 = vrot.slane %v1723, 4
    %v1725 = vmax.f32 %v1723, %v1724
    %v1726 = vrot.slane %v1725, 2
    %v1727 = vmax.f32 %v1725, %v1726
    %v1728 = vrot.slane %v1727, 1
    %v1729 = vmax.f32 %v1727, %v1728
    %v1730 = vsel %vm924, %v818, -inf
    %v1731 = vrot.slane %v1730, 4
    %v1732 = vmax.f32 %v1730, %v1731
    %v1733 = vrot.slane %v1732, 2
    %v1734 = vmax.f32 %v1732, %v1733
    %v1735 = vrot.slane %v1734, 1
    %v1736 = vmax.f32 %v1734, %v1735
    %v1737 = vsel %vm924, %v693, -inf
    %v1738 = vrot.slane %v1737, 4
    %v1739 = vmax.f32 %v1737, %v1738
    %v1740 = vrot.slane %v1739, 2
    %v1741 = vmax.f32 %v1739, %v1740
    %v1742 = vrot.slane %v1741, 1
    %v1743 = vmax.f32 %v1741, %v1742
    %v1744 = vsel %vm924, %v819, -inf
    %v1745 = vrot.slane %v1744, 4
    %v1746 = vmax.f32 %v1744, %v1745
    %v1747 = vrot.slane %v1746, 2
    %v1748 = vmax.f32 %v1746, %v1747
    %v1749 = vrot.slane %v1748, 1
    %v1750 = vmax.f32 %v1748, %v1749
    %v1751 = vsel %vm924, %v820, -inf
    %v1752 = vrot.slane %v1751, 4
    %v1753 = vmax.f32 %v1751, %v1752
    %v1754 = vrot.slane %v1753, 2
    %v1755 = vmax.f32 %v1753, %v1754
    %v1756 = vrot.slane %v1755, 1
    %v1757 = vmax.f32 %v1755, %v1756
    %v1758 = vsel %vm924, %v821, -inf
    %v1759 = vrot.slane %v1758, 4
    %v1760 = vmax.f32 %v1758, %v1759
    %v1761 = vrot.slane %v1760, 2
    %v1762 = vmax.f32 %v1760, %v1761
    %v1763 = vrot.slane %v1762, 1
    %v1764 = vmax.f32 %v1762, %v1763
    %v1765 = vsel %vm924, %v696, -inf
    %v1766 = vrot.slane %v1765, 4
    %v1767 = vmax.f32 %v1765, %v1766
    %v1768 = vrot.slane %v1767, 2
    %v1769 = vmax.f32 %v1767, %v1768
    %v1770 = vrot.slane %v1769, 1
    %v1771 = vmax.f32 %v1769, %v1770
    %v1772 = vsel %vm924, %v822, -inf
    %v1773 = vrot.slane %v1772, 4
    %v1774 = vmax.f32 %v1772, %v1773
    %v1775 = vrot.slane %v1774, 2
    %v1776 = vmax.f32 %v1774, %v1775
    %v1777 = vrot.slane %v1776, 1
    %v1778 = vmax.f32 %v1776, %v1777
    %v1779 = vsel %vm924, %v823, -inf
    %v1780 = vrot.slane %v1779, 4
    %v1781 = vmax.f32 %v1779, %v1780
    %v1782 = vrot.slane %v1781, 2
    %v1783 = vmax.f32 %v1781, %v1782
    %v1784 = vrot.slane %v1783, 1
    %v1785 = vmax.f32 %v1783, %v1784
    %v1786 = vsel %vm924, %v824, -inf
    %v1787 = vrot.slane %v1786, 4
    %v1788 = vmax.f32 %v1786, %v1787
    %v1789 = vrot.slane %v1788, 2
    %v1790 = vmax.f32 %v1788, %v1789
    %v1791 = vrot.slane %v1790, 1
    %v1792 = vmax.f32 %v1790, %v1791
    %v1793 = vsel %vm924, %v699, -inf
    %v1794 = vrot.slane %v1793, 4
    %v1795 = vmax.f32 %v1793, %v1794
    %v1796 = vrot.slane %v1795, 2
    %v1797 = vmax.f32 %v1795, %v1796
    %v1798 = vrot.slane %v1797, 1
    %v1799 = vmax.f32 %v1797, %v1798
    %v1800 = vsel %vm924, %v825, -inf
    %v1801 = vrot.slane %v1800, 4
    %v1802 = vmax.f32 %v1800, %v1801
    %v1803 = vrot.slane %v1802, 2
    %v1804 = vmax.f32 %v1802, %v1803
    %v1805 = vrot.slane %v1804, 1
    %v1806 = vmax.f32 %v1804, %v1805
    %v1807 = vsel %vm924, %v826, -inf
    %v1808 = vrot.slane %v1807, 4
    %v1809 = vmax.f32 %v1807, %v1808
    %v1810 = vrot.slane %v1809, 2
    %v1811 = vmax.f32 %v1809, %v1810
    %v1812 = vrot.slane %v1811, 1
    %v1813 = vmax.f32 %v1811, %v1812
    %v1814 = vsel %vm924, %v827, -inf
    %v1815 = vrot.slane %v1814, 4
    %v1816 = vmax.f32 %v1814, %v1815
    %v1817 = vrot.slane %v1816, 2
    %v1818 = vmax.f32 %v1816, %v1817
    %v1819 = vrot.slane %v1818, 1
    %v1820 = vmax.f32 %v1818, %v1819
    %vm1821 = vcmask 257024
    %1822 = vst.msk [vmem:[#allocation2] sm:$0xf] %vm1821, 0
    %vm1823 = vcmask 253952
    %1824 = vst.msk [vmem:[#allocation2 + $0x4] sm:$0x1] %vm1823, 0
    %1825 = vst.msk [vmem:[#allocation2 + $0x50] sm:$0xf] %vm1821, 0
    %1826 = vst.msk [vmem:[#allocation2 + $0x54] sm:$0x1] %vm1823, 0
    %s1827 = scalar_lea.vmem [#allocation2], 72
    %1828 = vst.msk [vmem:[%s1827] sm:$0xf] %vm1821, 0
    %1829 = vst.msk [vmem:[%s1827 + $0x4] sm:$0x1] %vm1823, 0
    %1830 = vst.msk [vmem:[%s1827 + $0x50] sm:$0xf] %vm1821, 0
    %1831 = vst.msk [vmem:[%s1827 + $0x54] sm:$0x1] %vm1823, 0
    %vm1832 = vcmask 253952
    %vm1833 = vsmask.f32 256
    %vm1834 = vmand %vm1832, %vm1833
    %v1835 = vld [vmem:[#allocation2] sm:$0x1]
    %v1836 = vsel %vm1834, 0, %v1835
    %1837 = vst [vmem:[#allocation2] sm:$0x1] %v1836
    %v1838 = vld [vmem:[#allocation2 + $0x8] sm:$0x1]
    %v1839 = vsel %vm1834, 0, %v1838
    %1840 = vst [vmem:[#allocation2 + $0x8] sm:$0x1] %v1839
    %v1841 = vld [vmem:[#allocation2 + $0x10] sm:$0x1]
    %v1842 = vsel %vm1834, 0, %v1841
    %1843 = vst [vmem:[#allocation2 + $0x10] sm:$0x1] %v1842
    %v1844 = vld [vmem:[#allocation2 + $0x18] sm:$0x1]
    %v1845 = vsel %vm1834, 0, %v1844
    %1846 = vst [vmem:[#allocation2 + $0x18] sm:$0x1] %v1845
    %v1847 = vld [vmem:[#allocation2 + $0x20] sm:$0x1]
    %v1848 = vsel %vm1834, 0, %v1847
    %1849 = vst [vmem:[#allocation2 + $0x20] sm:$0x1] %v1848
    %v1850 = vld [vmem:[#allocation2 + $0x28] sm:$0x1]
    %v1851 = vsel %vm1834, 0, %v1850
    %1852 = vst [vmem:[#allocation2 + $0x28] sm:$0x1] %v1851
    %v1853 = vld [vmem:[#allocation2 + $0x30] sm:$0x1]
    %v1854 = vsel %vm1834, 0, %v1853
    %1855 = vst [vmem:[#allocation2 + $0x30] sm:$0x1] %v1854
    %v1856 = vld [vmem:[#allocation2 + $0x38] sm:$0x1]
    %v1857 = vsel %vm1834, 0, %v1856
    %1858 = vst [vmem:[#allocation2 + $0x38] sm:$0x1] %v1857
    %v1859 = vld [vmem:[#allocation2 + $0x40] sm:$0x1]
    %v1860 = vsel %vm1834, 0, %v1859
    %1861 = vst [vmem:[#allocation2 + $0x40] sm:$0x1] %v1860
    %v1862 = vld [vmem:[#allocation2 + $0x48] sm:$0x1]
    %v1863 = vsel %vm1834, 0, %v1862
    %1864 = vst [vmem:[#allocation2 + $0x48] sm:$0x1] %v1863
    %v1865 = vld [vmem:[#allocation2 + $0x50] sm:$0x1]
    %v1866 = vsel %vm1834, 0, %v1865
    %1867 = vst [vmem:[#allocation2 + $0x50] sm:$0x1] %v1866
    %v1868 = vld [vmem:[#allocation2 + $0x58] sm:$0x1]
    %v1869 = vsel %vm1834, 0, %v1868
    %1870 = vst [vmem:[#allocation2 + $0x58] sm:$0x1] %v1869
    %v1871 = vld [vmem:[#allocation2 + $0x60] sm:$0x1]
    %v1872 = vsel %vm1834, 0, %v1871
    %1873 = vst [vmem:[#allocation2 + $0x60] sm:$0x1] %v1872
    %v1874 = vld [vmem:[#allocation2 + $0x68] sm:$0x1]
    %v1875 = vsel %vm1834, 0, %v1874
    %1876 = vst [vmem:[#allocation2 + $0x68] sm:$0x1] %v1875
    %v1877 = vld [vmem:[#allocation2 + $0x70] sm:$0x1]
    %v1878 = vsel %vm1834, 0, %v1877
    %1879 = vst [vmem:[#allocation2 + $0x70] sm:$0x1] %v1878
    %v1880 = vld [vmem:[#allocation2 + $0x78] sm:$0x1]
    %v1881 = vsel %vm1834, 0, %v1880
    %1882 = vst [vmem:[#allocation2 + $0x78] sm:$0x1] %v1881
    %v1883 = vld [vmem:[#allocation2 + $0x80] sm:$0x1]
    %v1884 = vsel %vm1834, 0, %v1883
    %1885 = vst [vmem:[#allocation2 + $0x80] sm:$0x1] %v1884
    %v1886 = vld [vmem:[#allocation2 + $0x88] sm:$0x1]
    %v1887 = vsel %vm1834, 0, %v1886
    %1888 = vst [vmem:[#allocation2 + $0x88] sm:$0x1] %v1887
    %v1889 = vld [vmem:[#allocation2 + $0x90] sm:$0x1]
    %v1890 = vsel %vm1834, 0, %v1889
    %1891 = vst [vmem:[#allocation2 + $0x90] sm:$0x1] %v1890
    %v1892 = vld [vmem:[#allocation2 + $0x98] sm:$0x1]
    %v1893 = vsel %vm1834, 0, %v1892
    %1894 = vst [vmem:[#allocation2 + $0x98] sm:$0x1] %v1893
    %vm1895 = vsmask.f32 7938
    %vm1896 = vmand %vm1832, %vm1895
    %v1897 = vld [vmem:[#allocation2 + $0x4] sm:$0x1]
    %v1898 = vsel %vm1896, 0, %v1897
    %1899 = vst [vmem:[#allocation2 + $0x4] sm:$0x1] %v1898
    %v1900 = vld [vmem:[#allocation2 + $0xc] sm:$0x1]
    %v1901 = vsel %vm1896, 0, %v1900
    %1902 = vst [vmem:[#allocation2 + $0xc] sm:$0x1] %v1901
    %v1903 = vld [vmem:[#allocation2 + $0x14] sm:$0x1]
    %v1904 = vsel %vm1896, 0, %v1903
    %1905 = vst [vmem:[#allocation2 + $0x14] sm:$0x1] %v1904
    %v1906 = vld [vmem:[#allocation2 + $0x1c] sm:$0x1]
    %v1907 = vsel %vm1896, 0, %v1906
    %1908 = vst [vmem:[#allocation2 + $0x1c] sm:$0x1] %v1907
    %v1909 = vld [vmem:[#allocation2 + $0x24] sm:$0x1]
    %v1910 = vsel %vm1896, 0, %v1909
    %1911 = vst [vmem:[#allocation2 + $0x24] sm:$0x1] %v1910
    %v1912 = vld [vmem:[#allocation2 + $0x2c] sm:$0x1]
    %v1913 = vsel %vm1896, 0, %v1912
    %1914 = vst [vmem:[#allocation2 + $0x2c] sm:$0x1] %v1913
    %v1915 = vld [vmem:[#allocation2 + $0x34] sm:$0x1]
    %v1916 = vsel %vm1896, 0, %v1915
    %1917 = vst [vmem:[#allocation2 + $0x34] sm:$0x1] %v1916
    %v1918 = vld [vmem:[#allocation2 + $0x3c] sm:$0x1]
    %v1919 = vsel %vm1896, 0, %v1918
    %1920 = vst [vmem:[#allocation2 + $0x3c] sm:$0x1] %v1919
    %v1921 = vld [vmem:[#allocation2 + $0x44] sm:$0x1]
    %v1922 = vsel %vm1896, 0, %v1921
    %1923 = vst [vmem:[#allocation2 + $0x44] sm:$0x1] %v1922
    %v1924 = vld [vmem:[#allocation2 + $0x4c] sm:$0x1]
    %v1925 = vsel %vm1896, 0, %v1924
    %1926 = vst [vmem:[#allocation2 + $0x4c] sm:$0x1] %v1925
    %v1927 = vld [vmem:[#allocation2 + $0x54] sm:$0x1]
    %v1928 = vsel %vm1896, 0, %v1927
    %1929 = vst [vmem:[#allocation2 + $0x54] sm:$0x1] %v1928
    %v1930 = vld [vmem:[#allocation2 + $0x5c] sm:$0x1]
    %v1931 = vsel %vm1896, 0, %v1930
    %1932 = vst [vmem:[#allocation2 + $0x5c] sm:$0x1] %v1931
    %v1933 = vld [vmem:[#allocation2 + $0x64] sm:$0x1]
    %v1934 = vsel %vm1896, 0, %v1933
    %1935 = vst [vmem:[#allocation2 + $0x64] sm:$0x1] %v1934
    %v1936 = vld [vmem:[#allocation2 + $0x6c] sm:$0x1]
    %v1937 = vsel %vm1896, 0, %v1936
    %1938 = vst [vmem:[#allocation2 + $0x6c] sm:$0x1] %v1937
    %v1939 = vld [vmem:[#allocation2 + $0x74] sm:$0x1]
    %v1940 = vsel %vm1896, 0, %v1939
    %1941 = vst [vmem:[#allocation2 + $0x74] sm:$0x1] %v1940
    %v1942 = vld [vmem:[#allocation2 + $0x7c] sm:$0x1]
    %v1943 = vsel %vm1896, 0, %v1942
    %1944 = vst [vmem:[#allocation2 + $0x7c] sm:$0x1] %v1943
    %v1945 = vld [vmem:[#allocation2 + $0x84] sm:$0x1]
    %v1946 = vsel %vm1896, 0, %v1945
    %1947 = vst [vmem:[#allocation2 + $0x84] sm:$0x1] %v1946
    %v1948 = vld [vmem:[#allocation2 + $0x8c] sm:$0x1]
    %v1949 = vsel %vm1896, 0, %v1948
    %1950 = vst [vmem:[#allocation2 + $0x8c] sm:$0x1] %v1949
    %v1951 = vld [vmem:[#allocation2 + $0x94] sm:$0x1]
    %v1952 = vsel %vm1896, 0, %v1951
    %1953 = vst [vmem:[#allocation2 + $0x94] sm:$0x1] %v1952
    %v1954 = vld [vmem:[#allocation2 + $0x9c] sm:$0x1]
    %v1955 = vsel %vm1896, 0, %v1954
    %1956 = vst [vmem:[#allocation2 + $0x9c] sm:$0x1] %v1955
    %v1957 = vpack.c.bf16 %v931, %v931
    %v1958 = vpack.c.bf16 %v938, %v938
    %v1959 = vpack.c.bf16 %v945, %v945
    %v1960 = vpack.c.bf16 %v952, %v952
    %v1961 = vpack.c.bf16 %v959, %v959
    %v1962 = vpack.c.bf16 %v966, %v966
    %v1963 = vpack.c.bf16 %v973, %v973
    %v1964 = vpack.c.bf16 %v980, %v980
    %v1965 = vpack.c.bf16 %v987, %v987
    %v1966 = vpack.c.bf16 %v994, %v994
    %v1967 = vpack.c.bf16 %v1001, %v1001
    %v1968 = vpack.c.bf16 %v1008, %v1008
    %v1969 = vpack.c.bf16 %v1015, %v1015
    %v1970 = vpack.c.bf16 %v1022, %v1022
    %v1971 = vpack.c.bf16 %v1029, %v1029
    %v1972 = vpack.c.bf16 %v1036, %v1036
    %v1973 = vpack.c.bf16 %v1043, %v1043
    %v1974 = vpack.c.bf16 %v1050, %v1050
    %v1975 = vpack.c.bf16 %v1057, %v1057
    %v1976 = vpack.c.bf16 %v1064, %v1064
    %v1977 = vpack.c.bf16 %v1071, %v1071
    %v1978 = vpack.c.bf16 %v1078, %v1078
    %v1979 = vpack.c.bf16 %v1085, %v1085
    %v1980 = vpack.c.bf16 %v1092, %v1092
    %v1981 = vpack.c.bf16 %v1099, %v1099
    %v1982 = vpack.c.bf16 %v1106, %v1106
    %v1983 = vpack.c.bf16 %v1113, %v1113
    %v1984 = vpack.c.bf16 %v1120, %v1120
    %v1985 = vpack.c.bf16 %v1127, %v1127
    %v1986 = vpack.c.bf16 %v1134, %v1134
    %v1987 = vpack.c.bf16 %v1141, %v1141
    %v1988 = vpack.c.bf16 %v1148, %v1148
    %v1989 = vpack.c.bf16 %v1155, %v1155
    %v1990 = vpack.c.bf16 %v1162, %v1162
    %v1991 = vpack.c.bf16 %v1169, %v1169
    %v1992 = vpack.c.bf16 %v1176, %v1176
    %v1993 = vpack.c.bf16 %v1183, %v1183
    %v1994 = vpack.c.bf16 %v1190, %v1190
    %v1995 = vpack.c.bf16 %v1197, %v1197
    %v1996 = vpack.c.bf16 %v1204, %v1204
    %v1997 = vpack.c.bf16 %v1211, %v1211
    %v1998 = vpack.c.bf16 %v1218, %v1218
    %v1999 = vpack.c.bf16 %v1225, %v1225
    %v2000 = vpack.c.bf16 %v1232, %v1232
    %v2001 = vpack.c.bf16 %v1239, %v1239
    %v2002 = vpack.c.bf16 %v1246, %v1246
    %v2003 = vpack.c.bf16 %v1253, %v1253
    %v2004 = vpack.c.bf16 %v1260, %v1260
    %v2005 = vpack.c.bf16 %v1267, %v1267
    %v2006 = vpack.c.bf16 %v1274, %v1274
    %v2007 = vpack.c.bf16 %v1281, %v1281
    %v2008 = vpack.c.bf16 %v1288, %v1288
    %v2009 = vpack.c.bf16 %v1295, %v1295
    %v2010 = vpack.c.bf16 %v1302, %v1302
    %v2011 = vpack.c.bf16 %v1309, %v1309
    %v2012 = vpack.c.bf16 %v1316, %v1316
    %v2013 = vpack.c.bf16 %v1323, %v1323
    %v2014 = vpack.c.bf16 %v1330, %v1330
    %v2015 = vpack.c.bf16 %v1337, %v1337
    %v2016 = vpack.c.bf16 %v1344, %v1344
    %v2017 = vpack.c.bf16 %v1351, %v1351
    %v2018 = vpack.c.bf16 %v1358, %v1358
    %v2019 = vpack.c.bf16 %v1365, %v1365
    %v2020 = vpack.c.bf16 %v1372, %v1372
    %v2021 = vpack.c.bf16 %v1379, %v1379
    %v2022 = vpack.c.bf16 %v1386, %v1386
    %v2023 = vpack.c.bf16 %v1393, %v1393
    %v2024 = vpack.c.bf16 %v1400, %v1400
    %v2025 = vpack.c.bf16 %v1407, %v1407
    %v2026 = vpack.c.bf16 %v1414, %v1414
    %v2027 = vpack.c.bf16 %v1421, %v1421
    %v2028 = vpack.c.bf16 %v1428, %v1428
    %v2029 = vpack.c.bf16 %v1435, %v1435
    %v2030 = vpack.c.bf16 %v1442, %v1442
    %v2031 = vpack.c.bf16 %v1449, %v1449
    %v2032 = vpack.c.bf16 %v1456, %v1456
    %v2033 = vpack.c.bf16 %v1463, %v1463
    %v2034 = vpack.c.bf16 %v1470, %v1470
    %v2035 = vpack.c.bf16 %v1477, %v1477
    %v2036 = vpack.c.bf16 %v1484, %v1484
    %v2037 = vpack.c.bf16 %v1491, %v1491
    %v2038 = vpack.c.bf16 %v1498, %v1498
    %v2039 = vpack.c.bf16 %v1505, %v1505
    %v2040 = vpack.c.bf16 %v1512, %v1512
    %v2041 = vpack.c.bf16 %v1519, %v1519
    %v2042 = vpack.c.bf16 %v1526, %v1526
    %v2043 = vpack.c.bf16 %v1533, %v1533
    %v2044 = vpack.c.bf16 %v1540, %v1540
    %v2045 = vpack.c.bf16 %v1547, %v1547
    %v2046 = vpack.c.bf16 %v1554, %v1554
    %v2047 = vpack.c.bf16 %v1561, %v1561
    %v2048 = vpack.c.bf16 %v1568, %v1568
    %v2049 = vpack.c.bf16 %v1575, %v1575
    %v2050 = vpack.c.bf16 %v1582, %v1582
    %v2051 = vpack.c.bf16 %v1589, %v1589
    %v2052 = vpack.c.bf16 %v1596, %v1596
    %v2053 = vpack.c.bf16 %v1603, %v1603
    %v2054 = vpack.c.bf16 %v1610, %v1610
    %v2055 = vpack.c.bf16 %v1617, %v1617
    %v2056 = vpack.c.bf16 %v1624, %v1624
    %v2057 = vpack.c.bf16 %v1631, %v1631
    %v2058 = vpack.c.bf16 %v1638, %v1638
    %v2059 = vpack.c.bf16 %v1645, %v1645
    %v2060 = vpack.c.bf16 %v1652, %v1652
    %v2061 = vpack.c.bf16 %v1659, %v1659
    %v2062 = vpack.c.bf16 %v1666, %v1666
    %v2063 = vpack.c.bf16 %v1673, %v1673
    %v2064 = vpack.c.bf16 %v1680, %v1680
    %v2065 = vpack.c.bf16 %v1687, %v1687
    %v2066 = vpack.c.bf16 %v1694, %v1694
    %v2067 = vpack.c.bf16 %v1701, %v1701
    %v2068 = vpack.c.bf16 %v1708, %v1708
    %v2069 = vpack.c.bf16 %v1715, %v1715
    %v2070 = vpack.c.bf16 %v1722, %v1722
    %v2071 = vpack.c.bf16 %v1729, %v1729
    %v2072 = vpack.c.bf16 %v1736, %v1736
    %v2073 = vpack.c.bf16 %v1743, %v1743
    %v2074 = vpack.c.bf16 %v1750, %v1750
    %v2075 = vpack.c.bf16 %v1757, %v1757
    %v2076 = vpack.c.bf16 %v1764, %v1764
    %v2077 = vpack.c.bf16 %v1771, %v1771
    %v2078 = vpack.c.bf16 %v1778, %v1778
    %v2079 = vpack.c.bf16 %v1785, %v1785
    %v2080 = vpack.c.bf16 %v1792, %v1792
    %v2081 = vpack.c.bf16 %v1799, %v1799
    %v2082 = vpack.c.bf16 %v1806, %v1806
    %v2083 = vpack.c.bf16 %v1813, %v1813
    %v2084 = vpack.c.bf16 %v1820, %v1820
    %v2213 = vunpack.c.l.b16 %v1957
    %v2214 = vunpack.c.l.b16 %v1958
    %v2215 = vunpack.c.l.b16 %v1959
    %v2216 = vunpack.c.l.b16 %v1960
    %v2217 = vunpack.c.l.b16 %v1961
    %v2218 = vunpack.c.l.b16 %v1962
    %v2219 = vunpack.c.l.b16 %v1963
    %v2220 = vunpack.c.l.b16 %v1964
    %v2221 = vunpack.c.l.b16 %v1965
    %v2222 = vunpack.c.l.b16 %v1966
    %v2223 = vunpack.c.l.b16 %v1967
    %v2224 = vunpack.c.l.b16 %v1968
    %v2225 = vunpack.c.l.b16 %v1969
    %v2226 = vunpack.c.l.b16 %v1970
    %v2227 = vunpack.c.l.b16 %v1971
    %v2228 = vunpack.c.l.b16 %v1972
    %v2229 = vunpack.c.l.b16 %v1973
    %v2230 = vunpack.c.l.b16 %v1974
    %v2231 = vunpack.c.l.b16 %v1975
    %v2232 = vunpack.c.l.b16 %v1976
    %v2233 = vunpack.c.l.b16 %v1977
    %v2234 = vunpack.c.l.b16 %v1978
    %v2235 = vunpack.c.l.b16 %v1979
    %v2236 = vunpack.c.l.b16 %v1980
    %v2237 = vunpack.c.l.b16 %v1981
    %v2238 = vunpack.c.l.b16 %v1982
    %v2239 = vunpack.c.l.b16 %v1983
    %v2240 = vunpack.c.l.b16 %v1984
    %v2241 = vunpack.c.l.b16 %v1985
    %v2242 = vunpack.c.l.b16 %v1986
    %v2243 = vunpack.c.l.b16 %v1987
    %v2244 = vunpack.c.l.b16 %v1988
    %v2245 = vunpack.c.l.b16 %v1989
    %v2246 = vunpack.c.l.b16 %v1990
    %v2247 = vunpack.c.l.b16 %v1991
    %v2248 = vunpack.c.l.b16 %v1992
    %v2249 = vunpack.c.l.b16 %v1993
    %v2250 = vunpack.c.l.b16 %v1994
    %v2251 = vunpack.c.l.b16 %v1995
    %v2252 = vunpack.c.l.b16 %v1996
    %v2253 = vunpack.c.l.b16 %v1997
    %v2254 = vunpack.c.l.b16 %v1998
    %v2255 = vunpack.c.l.b16 %v1999
    %v2256 = vunpack.c.l.b16 %v2000
    %v2257 = vunpack.c.l.b16 %v2001
    %v2258 = vunpack.c.l.b16 %v2002
    %v2259 = vunpack.c.l.b16 %v2003
    %v2260 = vunpack.c.l.b16 %v2004
    %v2261 = vunpack.c.l.b16 %v2005
    %v2262 = vunpack.c.l.b16 %v2006
    %v2263 = vunpack.c.l.b16 %v2007
    %v2264 = vunpack.c.l.b16 %v2008
    %v2265 = vunpack.c.l.b16 %v2009
    %v2266 = vunpack.c.l.b16 %v2010
    %v2267 = vunpack.c.l.b16 %v2011
    %v2268 = vunpack.c.l.b16 %v2012
    %v2269 = vunpack.c.l.b16 %v2013
    %v2270 = vunpack.c.l.b16 %v2014
    %v2271 = vunpack.c.l.b16 %v2015
    %v2272 = vunpack.c.l.b16 %v2016
    %v2273 = vunpack.c.l.b16 %v2017
    %v2274 = vunpack.c.l.b16 %v2018
    %v2275 = vunpack.c.l.b16 %v2019
    %v2276 = vunpack.c.l.b16 %v2020
    %v2277 = vunpack.c.l.b16 %v2021
    %v2278 = vunpack.c.l.b16 %v2022
    %v2279 = vunpack.c.l.b16 %v2023
    %v2280 = vunpack.c.l.b16 %v2024
    %v2281 = vunpack.c.l.b16 %v2025
    %v2282 = vunpack.c.l.b16 %v2026
    %v2283 = vunpack.c.l.b16 %v2027
    %v2284 = vunpack.c.l.b16 %v2028
    %v2285 = vunpack.c.l.b16 %v2029
    %v2286 = vunpack.c.l.b16 %v2030
    %v2287 = vunpack.c.l.b16 %v2031
    %v2288 = vunpack.c.l.b16 %v2032
    %v2289 = vunpack.c.l.b16 %v2033
    %v2290 = vunpack.c.l.b16 %v2034
    %v2291 = vunpack.c.l.b16 %v2035
    %v2292 = vunpack.c.l.b16 %v2036
    %v2293 = vunpack.c.l.b16 %v2037
    %v2294 = vunpack.c.l.b16 %v2038
    %v2295 = vunpack.c.l.b16 %v2039
    %v2296 = vunpack.c.l.b16 %v2040
    %v2297 = vunpack.c.l.b16 %v2041
    %v2298 = vunpack.c.l.b16 %v2042
    %v2299 = vunpack.c.l.b16 %v2043
    %v2300 = vunpack.c.l.b16 %v2044
    %v2301 = vunpack.c.l.b16 %v2045
    %v2302 = vunpack.c.l.b16 %v2046
    %v2303 = vunpack.c.l.b16 %v2047
    %v2304 = vunpack.c.l.b16 %v2048
    %v2305 = vunpack.c.l.b16 %v2049
    %v2306 = vunpack.c.l.b16 %v2050
    %v2307 = vunpack.c.l.b16 %v2051
    %v2308 = vunpack.c.l.b16 %v2052
    %v2309 = vunpack.c.l.b16 %v2053
    %v2310 = vunpack.c.l.b16 %v2054
    %v2311 = vunpack.c.l.b16 %v2055
    %v2312 = vunpack.c.l.b16 %v2056
    %v2313 = vunpack.c.l.b16 %v2057
    %v2314 = vunpack.c.l.b16 %v2058
    %v2315 = vunpack.c.l.b16 %v2059
    %v2316 = vunpack.c.l.b16 %v2060
    %v2317 = vunpack.c.l.b16 %v2061
    %v2318 = vunpack.c.l.b16 %v2062
    %v2319 = vunpack.c.l.b16 %v2063
    %v2320 = vunpack.c.l.b16 %v2064
    %v2321 = vunpack.c.l.b16 %v2065
    %v2322 = vunpack.c.l.b16 %v2066
    %v2323 = vunpack.c.l.b16 %v2067
    %v2324 = vunpack.c.l.b16 %v2068
    %v2325 = vunpack.c.l.b16 %v2069
    %v2326 = vunpack.c.l.b16 %v2070
    %v2327 = vunpack.c.l.b16 %v2071
    %v2328 = vunpack.c.l.b16 %v2072
    %v2329 = vunpack.c.l.b16 %v2073
    %v2330 = vunpack.c.l.b16 %v2074
    %v2331 = vunpack.c.l.b16 %v2075
    %v2332 = vunpack.c.l.b16 %v2076
    %v2333 = vunpack.c.l.b16 %v2077
    %v2334 = vunpack.c.l.b16 %v2078
    %v2335 = vunpack.c.l.b16 %v2079
    %v2336 = vunpack.c.l.b16 %v2080
    %v2337 = vunpack.c.l.b16 %v2081
    %v2338 = vunpack.c.l.b16 %v2082
    %v2339 = vunpack.c.l.b16 %v2083
    %v2340 = vunpack.c.l.b16 %v2084
    %vm2341 = vcmask 1042434
    %v2342 = vsel %vm2341, %v2214, %v2213
    %vm2343 = vcmask 1043459
    %v2344 = vsel %vm2343, %v2215, %v2342
    %vm2345 = vcmask 1044484
    %v2346 = vsel %vm2345, %v2216, %v2344
    %vm2347 = vcmask 1045509
    %v2348 = vsel %vm2347, %v2217, %v2346
    %vm2349 = vcmask 1046534
    %v2350 = vsel %vm2349, %v2218, %v2348
    %vm2351 = vcmask 1047559
    %v2352 = vsel %vm2351, %v2219, %v2350
    %v2353 = vsel %vm2341, %v2222, %v2221
    %v2354 = vsel %vm2343, %v2223, %v2353
    %v2355 = vsel %vm2345, %v2224, %v2354
    %v2356 = vsel %vm2347, %v2225, %v2355
    %v2357 = vsel %vm2349, %v2226, %v2356
    %v2358 = vsel %vm2351, %v2227, %v2357
    %v2359 = vsel %vm2341, %v2230, %v2229
    %v2360 = vsel %vm2343, %v2231, %v2359
    %v2361 = vsel %vm2345, %v2232, %v2360
    %v2362 = vsel %vm2347, %v2233, %v2361
    %v2363 = vsel %vm2349, %v2234, %v2362
    %v2364 = vsel %vm2351, %v2235, %v2363
    %v2365 = vsel %vm2341, %v2238, %v2237
    %v2366 = vsel %vm2343, %v2239, %v2365
    %v2367 = vsel %vm2345, %v2240, %v2366
    %v2368 = vsel %vm2347, %v2241, %v2367
    %v2369 = vsel %vm2349, %v2242, %v2368
    %v2370 = vsel %vm2351, %v2243, %v2369
    %v2371 = vsel %vm2341, %v2246, %v2245
    %v2372 = vsel %vm2343, %v2247, %v2371
    %v2373 = vsel %vm2345, %v2248, %v2372
    %v2374 = vsel %vm2347, %v2249, %v2373
    %v2375 = vsel %vm2349, %v2250, %v2374
    %v2376 = vsel %vm2351, %v2251, %v2375
    %v2377 = vsel %vm2341, %v2254, %v2253
    %v2378 = vsel %vm2343, %v2255, %v2377
    %v2379 = vsel %vm2345, %v2256, %v2378
    %v2380 = vsel %vm2347, %v2257, %v2379
    %v2381 = vsel %vm2349, %v2258, %v2380
    %v2382 = vsel %vm2351, %v2259, %v2381
    %v2383 = vsel %vm2341, %v2262, %v2261
    %v2384 = vsel %vm2343, %v2263, %v2383
    %v2385 = vsel %vm2345, %v2264, %v2384
    %v2386 = vsel %vm2347, %v2265, %v2385
    %v2387 = vsel %vm2349, %v2266, %v2386
    %v2388 = vsel %vm2351, %v2267, %v2387
    %v2389 = vsel %vm2341, %v2270, %v2269
    %v2390 = vsel %vm2343, %v2271, %v2389
    %v2391 = vsel %vm2345, %v2272, %v2390
    %v2392 = vsel %vm2347, %v2273, %v2391
    %v2393 = vsel %vm2349, %v2274, %v2392
    %v2394 = vsel %vm2351, %v2275, %v2393
    %v2395 = vsel %vm2341, %v2278, %v2277
    %v2396 = vsel %vm2343, %v2279, %v2395
    %v2397 = vsel %vm2345, %v2280, %v2396
    %v2398 = vsel %vm2347, %v2281, %v2397
    %v2399 = vsel %vm2349, %v2282, %v2398
    %v2400 = vsel %vm2351, %v2283, %v2399
    %v2401 = vsel %vm2341, %v2286, %v2285
    %v2402 = vsel %vm2343, %v2287, %v2401
    %v2403 = vsel %vm2345, %v2288, %v2402
    %v2404 = vsel %vm2347, %v2289, %v2403
    %v2405 = vsel %vm2349, %v2290, %v2404
    %v2406 = vsel %vm2351, %v2291, %v2405
    %v2407 = vsel %vm2341, %v2294, %v2293
    %v2408 = vsel %vm2343, %v2295, %v2407
    %v2409 = vsel %vm2345, %v2296, %v2408
    %v2410 = vsel %vm2347, %v2297, %v2409
    %v2411 = vsel %vm2349, %v2298, %v2410
    %v2412 = vsel %vm2351, %v2299, %v2411
    %v2413 = vsel %vm2341, %v2302, %v2301
    %v2414 = vsel %vm2343, %v2303, %v2413
    %v2415 = vsel %vm2345, %v2304, %v2414
    %v2416 = vsel %vm2347, %v2305, %v2415
    %v2417 = vsel %vm2349, %v2306, %v2416
    %v2418 = vsel %vm2351, %v2307, %v2417
    %v2419 = vsel %vm2341, %v2310, %v2309
    %v2420 = vsel %vm2343, %v2311, %v2419
    %v2421 = vsel %vm2345, %v2312, %v2420
    %v2422 = vsel %vm2347, %v2313, %v2421
    %v2423 = vsel %vm2349, %v2314, %v2422
    %v2424 = vsel %vm2351, %v2315, %v2423
    %v2425 = vsel %vm2341, %v2318, %v2317
    %v2426 = vsel %vm2343, %v2319, %v2425
    %v2427 = vsel %vm2345, %v2320, %v2426
    %v2428 = vsel %vm2347, %v2321, %v2427
    %v2429 = vsel %vm2349, %v2322, %v2428
    %v2430 = vsel %vm2351, %v2323, %v2429
    %v2431 = vsel %vm2341, %v2326, %v2325
    %v2432 = vsel %vm2343, %v2327, %v2431
    %v2433 = vsel %vm2345, %v2328, %v2432
    %v2434 = vsel %vm2347, %v2329, %v2433
    %v2435 = vsel %vm2349, %v2330, %v2434
    %v2436 = vsel %vm2351, %v2331, %v2435
    %v2437 = vsel %vm2341, %v2334, %v2333
    %v2438 = vsel %vm2343, %v2335, %v2437
    %v2439 = vsel %vm2345, %v2336, %v2438
    %v2440 = vsel %vm2347, %v2337, %v2439
    %v2441 = vsel %vm2349, %v2338, %v2440
    %v2442 = vsel %vm2351, %v2339, %v2441
    %v2443 = vpack.c.b16 %v2352, %v2352
    %v2444 = vpack.c.b16 %v2220, %v2220
    %v2445 = vpack.c.b16 %v2358, %v2358
    %v2446 = vpack.c.b16 %v2228, %v2228
    %v2447 = vpack.c.b16 %v2364, %v2364
    %v2448 = vpack.c.b16 %v2236, %v2236
    %v2449 = vpack.c.b16 %v2370, %v2370
    %v2450 = vpack.c.b16 %v2244, %v2244
    %v2451 = vpack.c.b16 %v2376, %v2376
    %v2452 = vpack.c.b16 %v2252, %v2252
    %v2453 = vpack.c.b16 %v2382, %v2382
    %v2454 = vpack.c.b16 %v2260, %v2260
    %v2455 = vpack.c.b16 %v2388, %v2388
    %v2456 = vpack.c.b16 %v2268, %v2268
    %v2457 = vpack.c.b16 %v2394, %v2394
    %v2458 = vpack.c.b16 %v2276, %v2276
    %v2459 = vpack.c.b16 %v2400, %v2400
    %v2460 = vpack.c.b16 %v2284, %v2284
    %v2461 = vpack.c.b16 %v2406, %v2406
    %v2462 = vpack.c.b16 %v2292, %v2292
    %v2463 = vpack.c.b16 %v2412, %v2412
    %v2464 = vpack.c.b16 %v2300, %v2300
    %v2465 = vpack.c.b16 %v2418, %v2418
    %v2466 = vpack.c.b16 %v2308, %v2308
    %v2467 = vpack.c.b16 %v2424, %v2424
    %v2468 = vpack.c.b16 %v2316, %v2316
    %v2469 = vpack.c.b16 %v2430, %v2430
    %v2470 = vpack.c.b16 %v2324, %v2324
    %v2471 = vpack.c.b16 %v2436, %v2436
    %v2472 = vpack.c.b16 %v2332, %v2332
    %v2473 = vpack.c.b16 %v2442, %v2442
    %v2474 = vpack.c.b16 %v2340, %v2340
    %s2507 = scalar_lea.vmem [#allocation2], 8
    %vm2508 = vcmask 257024
    %vm2509 = vmand %vm2508, %vm1895
    %v2510 = vld [vmem:[%s2507] sm:$0xf]
    %v2511 = vsel %vm2509, %v2443, %v2510
    %2512 = vst [vmem:[%s2507] sm:$0xf] %v2511
    %v2513 = vld [vmem:[%s2507 + $0x4] sm:$0x1]
    %v2514 = vsel %vm1834, %v2444, %v2513
    %2515 = vst [vmem:[%s2507 + $0x4] sm:$0x1] %v2514
    %v2516 = vld [vmem:[%s2507 + $0x8] sm:$0xf]
    %v2517 = vsel %vm2509, %v2445, %v2516
    %2518 = vst [vmem:[%s2507 + $0x8] sm:$0xf] %v2517
    %v2519 = vld [vmem:[%s2507 + $0xc] sm:$0x1]
    %v2520 = vsel %vm1834, %v2446, %v2519
    %2521 = vst [vmem:[%s2507 + $0xc] sm:$0x1] %v2520
    %v2522 = vld [vmem:[%s2507 + $0x10] sm:$0xf]
    %v2523 = vsel %vm2509, %v2447, %v2522
    %2524 = vst [vmem:[%s2507 + $0x10] sm:$0xf] %v2523
    %v2525 = vld [vmem:[%s2507 + $0x14] sm:$0x1]
    %v2526 = vsel %vm1834, %v2448, %v2525
    %2527 = vst [vmem:[%s2507 + $0x14] sm:$0x1] %v2526
    %v2528 = vld [vmem:[%s2507 + $0x18] sm:$0xf]
    %v2529 = vsel %vm2509, %v2449, %v2528
    %2530 = vst [vmem:[%s2507 + $0x18] sm:$0xf] %v2529
    %v2531 = vld [vmem:[%s2507 + $0x1c] sm:$0x1]
    %v2532 = vsel %vm1834, %v2450, %v2531
    %2533 = vst [vmem:[%s2507 + $0x1c] sm:$0x1] %v2532
    %v2534 = vld [vmem:[%s2507 + $0x20] sm:$0xf]
    %v2535 = vsel %vm2509, %v2451, %v2534
    %2536 = vst [vmem:[%s2507 + $0x20] sm:$0xf] %v2535
    %v2537 = vld [vmem:[%s2507 + $0x24] sm:$0x1]
    %v2538 = vsel %vm1834, %v2452, %v2537
    %2539 = vst [vmem:[%s2507 + $0x24] sm:$0x1] %v2538
    %v2540 = vld [vmem:[%s2507 + $0x28] sm:$0xf]
    %v2541 = vsel %vm2509, %v2453, %v2540
    %2542 = vst [vmem:[%s2507 + $0x28] sm:$0xf] %v2541
    %v2543 = vld [vmem:[%s2507 + $0x2c] sm:$0x1]
    %v2544 = vsel %vm1834, %v2454, %v2543
    %2545 = vst [vmem:[%s2507 + $0x2c] sm:$0x1] %v2544
    %v2546 = vld [vmem:[%s2507 + $0x30] sm:$0xf]
    %v2547 = vsel %vm2509, %v2455, %v2546
    %2548 = vst [vmem:[%s2507 + $0x30] sm:$0xf] %v2547
    %v2549 = vld [vmem:[%s2507 + $0x34] sm:$0x1]
    %v2550 = vsel %vm1834, %v2456, %v2549
    %2551 = vst [vmem:[%s2507 + $0x34] sm:$0x1] %v2550
    %v2552 = vld [vmem:[%s2507 + $0x38] sm:$0xf]
    %v2553 = vsel %vm2509, %v2457, %v2552
    %2554 = vst [vmem:[%s2507 + $0x38] sm:$0xf] %v2553
    %v2555 = vld [vmem:[%s2507 + $0x3c] sm:$0x1]
    %v2556 = vsel %vm1834, %v2458, %v2555
    %2557 = vst [vmem:[%s2507 + $0x3c] sm:$0x1] %v2556
    %v2558 = vld [vmem:[%s2507 + $0x50] sm:$0xf]
    %v2559 = vsel %vm2509, %v2459, %v2558
    %2560 = vst [vmem:[%s2507 + $0x50] sm:$0xf] %v2559
    %v2561 = vld [vmem:[%s2507 + $0x54] sm:$0x1]
    %v2562 = vsel %vm1834, %v2460, %v2561
    %2563 = vst [vmem:[%s2507 + $0x54] sm:$0x1] %v2562
    %v2564 = vld [vmem:[%s2507 + $0x58] sm:$0xf]
    %v2565 = vsel %vm2509, %v2461, %v2564
    %2566 = vst [vmem:[%s2507 + $0x58] sm:$0xf] %v2565
    %v2567 = vld [vmem:[%s2507 + $0x5c] sm:$0x1]
    %v2568 = vsel %vm1834, %v2462, %v2567
    %2569 = vst [vmem:[%s2507 + $0x5c] sm:$0x1] %v2568
    %v2570 = vld [vmem:[%s2507 + $0x60] sm:$0xf]
    %v2571 = vsel %vm2509, %v2463, %v2570
    %2572 = vst [vmem:[%s2507 + $0x60] sm:$0xf] %v2571
    %v2573 = vld [vmem:[%s2507 + $0x64] sm:$0x1]
    %v2574 = vsel %vm1834, %v2464, %v2573
    %2575 = vst [vmem:[%s2507 + $0x64] sm:$0x1] %v2574
    %v2576 = vld [vmem:[%s2507 + $0x68] sm:$0xf]
    %v2577 = vsel %vm2509, %v2465, %v2576
    %2578 = vst [vmem:[%s2507 + $0x68] sm:$0xf] %v2577
    %v2579 = vld [vmem:[%s2507 + $0x6c] sm:$0x1]
    %v2580 = vsel %vm1834, %v2466, %v2579
    %2581 = vst [vmem:[%s2507 + $0x6c] sm:$0x1] %v2580
    %v2582 = vld [vmem:[%s2507 + $0x70] sm:$0xf]
    %v2583 = vsel %vm2509, %v2467, %v2582
    %2584 = vst [vmem:[%s2507 + $0x70] sm:$0xf] %v2583
    %v2585 = vld [vmem:[%s2507 + $0x74] sm:$0x1]
    %v2586 = vsel %vm1834, %v2468, %v2585
    %2587 = vst [vmem:[%s2507 + $0x74] sm:$0x1] %v2586
    %v2588 = vld [vmem:[%s2507 + $0x78] sm:$0xf]
    %v2589 = vsel %vm2509, %v2469, %v2588
    %2590 = vst [vmem:[%s2507 + $0x78] sm:$0xf] %v2589
    %v2591 = vld [vmem:[%s2507 + $0x7c] sm:$0x1]
    %v2592 = vsel %vm1834, %v2470, %v2591
    %2593 = vst [vmem:[%s2507 + $0x7c] sm:$0x1] %v2592
    %v2594 = vld [vmem:[%s2507 + $0x80] sm:$0xf]
    %v2595 = vsel %vm2509, %v2471, %v2594
    %2596 = vst [vmem:[%s2507 + $0x80] sm:$0xf] %v2595
    %v2597 = vld [vmem:[%s2507 + $0x84] sm:$0x1]
    %v2598 = vsel %vm1834, %v2472, %v2597
    %2599 = vst [vmem:[%s2507 + $0x84] sm:$0x1] %v2598
    %v2600 = vld [vmem:[%s2507 + $0x88] sm:$0xf]
    %v2601 = vsel %vm2509, %v2473, %v2600
    %2602 = vst [vmem:[%s2507 + $0x88] sm:$0xf] %v2601
    %v2603 = vld [vmem:[%s2507 + $0x8c] sm:$0x1]
    %v2604 = vsel %vm1834, %v2474, %v2603
    %2605 = vst [vmem:[%s2507 + $0x8c] sm:$0x1] %v2604
    %v2606 = vld [vmem:[#allocation2] sm:$0xf]
    %v2607 = vld [vmem:[#allocation2 + $0x8] sm:$0xf]
    %v2608 = vld [vmem:[#allocation2 + $0x10] sm:$0xf]
    %v2609 = vld [vmem:[#allocation2 + $0x18] sm:$0xf]
    %v2610 = vld [vmem:[#allocation2 + $0x20] sm:$0xf]
    %v2611 = vld [vmem:[#allocation2 + $0x28] sm:$0xf]
    %v2612 = vld [vmem:[#allocation2 + $0x30] sm:$0xf]
    %v2613 = vld [vmem:[#allocation2 + $0x38] sm:$0xf]
    %v2614 = vld [vmem:[#allocation2 + $0x40] sm:$0xf]
    %v2615 = vld [vmem:[#allocation2 + $0x48] sm:$0xf]
    %v2624 = vunpack.c.l.b16 %v2606
    %v2625 = vunpack.c.l.b16 %v2607
    %v2626 = vunpack.c.l.b16 %v2608
    %v2627 = vunpack.c.l.b16 %v2609
    %v2628 = vunpack.c.l.b16 %v2610
    %v2629 = vunpack.c.l.b16 %v2611
    %v2630 = vunpack.c.l.b16 %v2612
    %v2631 = vunpack.c.l.b16 %v2613
    %v2632 = vpack.c.b16 %v2625, %v2624
    %v2633 = vpack.c.b16 %v2627, %v2626
    %v2634 = vpack.c.b16 %v2629, %v2628
    %v2635 = vpack.c.b16 %v2631, %v2630
    %v2637 = vunpack.c.l.b16 %v2614
    %v2638 = vpack.c.b16 %v2626, %v2625
    %v2639 = vpack.c.b16 %v2628, %v2627
    %v2640 = vpack.c.b16 %v2630, %v2629
    %v2641 = vpack.c.b16 %v2637, %v2631
    %2642 = vrot.lane.b32.xlu0 %v2638, 32
    %v2643 = vpop.permute.xlu0 %2642
    %2644 = vrot.lane.b32.xlu0 %v2639, 32
    %v2645 = vpop.permute.xlu0 %2644
    %2646 = vrot.lane.b32.xlu0 %v2640, 32
    %v2647 = vpop.permute.xlu0 %2646
    %2648 = vrot.lane.b32.xlu0 %v2641, 32
    %v2649 = vpop.permute.xlu0 %2648
    %v2651 = vunpack.c.l.b16 %v2615
    %v2652 = vpack.c.b16 %v2651, %v2637
    %2653 = vrot.lane.b32.xlu0 %v2633, 64
    %v2654 = vpop.permute.xlu0 %2653
    %2655 = vrot.lane.b32.xlu0 %v2634, 64
    %v2656 = vpop.permute.xlu0 %2655
    %2657 = vrot.lane.b32.xlu0 %v2635, 64
    %v2658 = vpop.permute.xlu0 %2657
    %2659 = vrot.lane.b32.xlu0 %v2652, 64
    %v2660 = vpop.permute.xlu0 %2659
    %v2663 = vsel %vm603, %v2632, %v2643
    %v2666 = vsel %vm603, %v2633, %v2645
    %v2669 = vsel %vm603, %v2634, %v2647
    %v2672 = vsel %vm603, %v2635, %v2649
    %vm2673 = vcmask 523264
    %v2675 = vsel %vm2673, %v2663, %v2654
    %v2677 = vsel %vm2673, %v2666, %v2656
    %v2679 = vsel %vm2673, %v2669, %v2658
    %v2681 = vsel %vm2673, %v2672, %v2660
    %v2686 = vunpack.c.l.b16 %v2675
    %v2687 = vunpack.c.h.b16 %v2675
    %v2688 = vunpack.c.l.b16 %v2677
    %v2689 = vunpack.c.h.b16 %v2677
    %v2690 = vunpack.c.l.b16 %v2679
    %v2691 = vunpack.c.h.b16 %v2679
    %v2692 = vunpack.c.l.b16 %v2681
    %v2693 = vunpack.c.h.b16 %v2681
    %v2694 = vpack.c.b16 %v2686, %v2686
    %v2695 = vpack.c.b16 %v2687, %v2687
    %v2696 = vpack.c.b16 %v2688, %v2688
    %v2697 = vpack.c.b16 %v2689, %v2689
    %v2698 = vpack.c.b16 %v2690, %v2690
    %v2699 = vpack.c.b16 %v2691, %v2691
    %v2700 = vpack.c.b16 %v2692, %v2692
    %v2701 = vpack.c.b16 %v2693, %v2693
    %vm2710 = vcmask 781312
    %2711 = vst.msk [vmem:[#allocation3] sm:$0xf] %vm2710, %v2694
    %2712 = vst.msk [vmem:[#allocation3 + $0xc] sm:$0xf] %vm2710, %v2695
    %2713 = vst.msk [vmem:[#allocation3 + $0x18] sm:$0xf] %vm2710, %v2696
    %2714 = vst.msk [vmem:[#allocation3 + $0x24] sm:$0xf] %vm2710, %v2697
    %2715 = vst.msk [vmem:[#allocation3 + $0x30] sm:$0xf] %vm2710, %v2698
    %2716 = vst.msk [vmem:[#allocation3 + $0x3c] sm:$0xf] %vm2710, %v2699
    %2717 = vst.msk [vmem:[#allocation3 + $0x48] sm:$0xf] %vm2710, %v2700
    %2718 = vst.msk [vmem:[#allocation3 + $0x54] sm:$0xf] %vm2710, %v2701
    %v2719 = vld [vmem:[#allocation2] sm:$0xf]
    %v2720 = vld [vmem:[#allocation2 + $0x4] sm:$0x1]
    %v2721 = vld [vmem:[#allocation2 + $0x8] sm:$0xf]
    %v2722 = vld [vmem:[#allocation2 + $0xc] sm:$0x1]
    %v2723 = vld [vmem:[#allocation2 + $0x10] sm:$0xf]
    %v2724 = vld [vmem:[#allocation2 + $0x14] sm:$0x1]
    %v2725 = vld [vmem:[#allocation2 + $0x18] sm:$0xf]
    %v2726 = vld [vmem:[#allocation2 + $0x1c] sm:$0x1]
    %v2727 = vld [vmem:[#allocation2 + $0x20] sm:$0xf]
    %v2728 = vld [vmem:[#allocation2 + $0x24] sm:$0x1]
    %v2729 = vld [vmem:[#allocation2 + $0x28] sm:$0xf]
    %v2730 = vld [vmem:[#allocation2 + $0x2c] sm:$0x1]
    %v2731 = vld [vmem:[#allocation2 + $0x30] sm:$0xf]
    %v2732 = vld [vmem:[#allocation2 + $0x34] sm:$0x1]
    %v2733 = vld [vmem:[#allocation2 + $0x38] sm:$0xf]
    %v2734 = vld [vmem:[#allocation2 + $0x3c] sm:$0x1]
    %v2735 = vld [vmem:[#allocation2 + $0x40] sm:$0xf]
    %v2736 = vld [vmem:[#allocation2 + $0x44] sm:$0x1]
    %v2737 = vld [vmem:[#allocation2 + $0x48] sm:$0xf]
    %v2738 = vld [vmem:[#allocation2 + $0x4c] sm:$0x1]
    %vm2739 = vsmask.f32 3328
    %vm2740 = vsmask.f32 7440
    %vm2741 = vmor %vm2739, %vm2740
    %v2743 = vshrl.u32 %v2719, 16
    %v2745 = vrot.slane %v2743, 4
    %v2746 = vshll.u32 %v2719, 16
    %v2748 = vrot.slane %v2746, 5
    %v2749 = vor.u32 %v2745, %v2748
    %v2750 = vrot.slane %v2749, 4
    %v2752 = vshll.u32 %v2720, 16
    %v2754 = vrot.slane %v2752, 5
    %v2755 = vsel %vm2741, %v2750, %v2754
    %v2757 = vshrl.u32 %v2721, 16
    %v2759 = vrot.slane %v2757, 4
    %v2760 = vshll.u32 %v2721, 16
    %v2762 = vrot.slane %v2760, 5
    %v2763 = vor.u32 %v2759, %v2762
    %v2764 = vrot.slane %v2763, 4
    %v2766 = vshll.u32 %v2722, 16
    %v2768 = vrot.slane %v2766, 5
    %v2769 = vsel %vm2741, %v2764, %v2768
    %v2771 = vshrl.u32 %v2723, 16
    %v2773 = vrot.slane %v2771, 4
    %v2774 = vshll.u32 %v2723, 16
    %v2776 = vrot.slane %v2774, 5
    %v2777 = vor.u32 %v2773, %v2776
    %v2778 = vrot.slane %v2777, 4
    %v2780 = vshll.u32 %v2724, 16
    %v2782 = vrot.slane %v2780, 5
    %v2783 = vsel %vm2741, %v2778, %v2782
    %v2785 = vshrl.u32 %v2725, 16
    %v2787 = vrot.slane %v2785, 4
    %v2788 = vshll.u32 %v2725, 16
    %v2790 = vrot.slane %v2788, 5
    %v2791 = vor.u32 %v2787, %v2790
    %v2792 = vrot.slane %v2791, 4
    %v2794 = vshll.u32 %v2726, 16
    %v2796 = vrot.slane %v2794, 5
    %v2797 = vsel %vm2741, %v2792, %v2796
    %v2799 = vshrl.u32 %v2727, 16
    %v2801 = vrot.slane %v2799, 4
    %v2802 = vshll.u32 %v2727, 16
    %v2804 = vrot.slane %v2802, 5
    %v2805 = vor.u32 %v2801, %v2804
    %v2806 = vrot.slane %v2805, 4
    %v2808 = vshll.u32 %v2728, 16
    %v2810 = vrot.slane %v2808, 5
    %v2811 = vsel %vm2741, %v2806, %v2810
    %v2813 = vshrl.u32 %v2729, 16
    %v2815 = vrot.slane %v2813, 4
    %v2816 = vshll.u32 %v2729, 16
    %v2818 = vrot.slane %v2816, 5
    %v2819 = vor.u32 %v2815, %v2818
    %v2820 = vrot.slane %v2819, 4
    %v2822 = vshll.u32 %v2730, 16
    %v2824 = vrot.slane %v2822, 5
    %v2825 = vsel %vm2741, %v2820, %v2824
    %v2827 = vshrl.u32 %v2731, 16
    %v2829 = vrot.slane %v2827, 4
    %v2830 = vshll.u32 %v2731, 16
    %v2832 = vrot.slane %v2830, 5
    %v2833 = vor.u32 %v2829, %v2832
    %v2834 = vrot.slane %v2833, 4
    %v2836 = vshll.u32 %v2732, 16
    %v2838 = vrot.slane %v2836, 5
    %v2839 = vsel %vm2741, %v2834, %v2838
    %v2841 = vshrl.u32 %v2733, 16
    %v2843 = vrot.slane %v2841, 4
    %v2844 = vshll.u32 %v2733, 16
    %v2846 = vrot.slane %v2844, 5
    %v2847 = vor.u32 %v2843, %v2846
    %v2848 = vrot.slane %v2847, 4
    %v2850 = vshll.u32 %v2734, 16
    %v2852 = vrot.slane %v2850, 5
    %v2853 = vsel %vm2741, %v2848, %v2852
    %v2855 = vshrl.u32 %v2735, 16
    %v2857 = vrot.slane %v2855, 4
    %v2858 = vshll.u32 %v2735, 16
    %v2860 = vrot.slane %v2858, 5
    %v2861 = vor.u32 %v2857, %v2860
    %v2862 = vrot.slane %v2861, 4
    %v2864 = vshll.u32 %v2736, 16
    %v2866 = vrot.slane %v2864, 5
    %v2867 = vsel %vm2741, %v2862, %v2866
    %v2869 = vshrl.u32 %v2737, 16
    %v2871 = vrot.slane %v2869, 4
    %v2872 = vshll.u32 %v2737, 16
    %v2874 = vrot.slane %v2872, 5
    %v2875 = vor.u32 %v2871, %v2874
    %v2876 = vrot.slane %v2875, 4
    %v2878 = vshll.u32 %v2738, 16
    %v2880 = vrot.slane %v2878, 5
    %v2881 = vsel %vm2741, %v2876, %v2880
    %v2882 = vunpack.c.l.b16 %v2755
    %v2883 = vunpack.c.l.b16 %v2769
    %v2884 = vunpack.c.l.b16 %v2783
    %v2885 = vunpack.c.l.b16 %v2797
    %v2886 = vunpack.c.l.b16 %v2811
    %v2887 = vunpack.c.l.b16 %v2825
    %v2888 = vunpack.c.l.b16 %v2839
    %v2889 = vunpack.c.l.b16 %v2853
    %v2890 = vpack.c.b16 %v2883, %v2882
    %v2891 = vpack.c.b16 %v2885, %v2884
    %v2892 = vpack.c.b16 %v2887, %v2886
    %v2893 = vpack.c.b16 %v2889, %v2888
    %v2894 = vunpack.c.l.b16 %v2867
    %v2895 = vpack.c.b16 %v2884, %v2883
    %v2896 = vpack.c.b16 %v2886, %v2885
    %v2897 = vpack.c.b16 %v2888, %v2887
    %v2898 = vpack.c.b16 %v2894, %v2889
    %2899 = vrot.lane.b32.xlu0 %v2895, 32
    %v2900 = vpop.permute.xlu0 %2899
    %2901 = vrot.lane.b32.xlu0 %v2896, 32
    %v2902 = vpop.permute.xlu0 %2901
    %2903 = vrot.lane.b32.xlu0 %v2897, 32
    %v2904 = vpop.permute.xlu0 %2903
    %2905 = vrot.lane.b32.xlu0 %v2898, 32
    %v2906 = vpop.permute.xlu0 %2905
    %v2907 = vunpack.c.l.b16 %v2881
    %v2908 = vpack.c.b16 %v2907, %v2894
    %2909 = vrot.lane.b32.xlu0 %v2891, 64
    %v2910 = vpop.permute.xlu0 %2909
    %2911 = vrot.lane.b32.xlu0 %v2892, 64
    %v2912 = vpop.permute.xlu0 %2911
    %2913 = vrot.lane.b32.xlu0 %v2893, 64
    %v2914 = vpop.permute.xlu0 %2913
    %2915 = vrot.lane.b32.xlu0 %v2908, 64
    %v2916 = vpop.permute.xlu0 %2915
    %v2919 = vsel %vm603, %v2890, %v2900
    %v2922 = vsel %vm603, %v2891, %v2902
    %v2925 = vsel %vm603, %v2892, %v2904
    %v2928 = vsel %vm603, %v2893, %v2906
    %v2930 = vsel %vm2673, %v2919, %v2910
    %v2932 = vsel %vm2673, %v2922, %v2912
    %v2934 = vsel %vm2673, %v2925, %v2914
    %v2936 = vsel %vm2673, %v2928, %v2916
    %v2941 = vunpack.c.l.b16 %v2930
    %v2942 = vunpack.c.h.b16 %v2930
    %v2943 = vunpack.c.l.b16 %v2932
    %v2944 = vunpack.c.h.b16 %v2932
    %v2945 = vunpack.c.l.b16 %v2934
    %v2946 = vunpack.c.h.b16 %v2934
    %v2947 = vunpack.c.l.b16 %v2936
    %v2948 = vunpack.c.h.b16 %v2936
    %v2949 = vpack.c.b16 %v2941, %v2941
    %v2950 = vpack.c.b16 %v2942, %v2942
    %v2951 = vpack.c.b16 %v2943, %v2943
    %v2952 = vpack.c.b16 %v2944, %v2944
    %v2953 = vpack.c.b16 %v2945, %v2945
    %v2954 = vpack.c.b16 %v2946, %v2946
    %v2955 = vpack.c.b16 %v2947, %v2947
    %v2956 = vpack.c.b16 %v2948, %v2948
    %2957 = vrot.lane.b32.xlu0 %v2949, 96
    %v2958 = vpop.permute.xlu0 %2957
    %2959 = vrot.lane.b32.xlu0 %v2950, 96
    %v2960 = vpop.permute.xlu0 %2959
    %2961 = vrot.lane.b32.xlu0 %v2951, 96
    %v2962 = vpop.permute.xlu0 %2961
    %2963 = vrot.lane.b32.xlu0 %v2952, 96
    %v2964 = vpop.permute.xlu0 %2963
    %2965 = vrot.lane.b32.xlu0 %v2953, 96
    %v2966 = vpop.permute.xlu0 %2965
    %2967 = vrot.lane.b32.xlu0 %v2954, 96
    %v2968 = vpop.permute.xlu0 %2967
    %2969 = vrot.lane.b32.xlu0 %v2955, 96
    %v2970 = vpop.permute.xlu0 %2969
    %2971 = vrot.lane.b32.xlu0 %v2956, 96
    %v2972 = vpop.permute.xlu0 %2971
    %v2973 = vrot.slane %v2958, 4
    %v2974 = vrot.slane %v2960, 4
    %v2975 = vrot.slane %v2962, 4
    %v2976 = vrot.slane %v2964, 4
    %v2977 = vrot.slane %v2966, 4
    %v2978 = vrot.slane %v2968, 4
    %v2979 = vrot.slane %v2970, 4
    %v2980 = vrot.slane %v2972, 4
    %vm2981 = vcmask 785408
    %v2982 = vsel %vm2981, %v2973, %v2958
    %v2983 = vsel %vm2981, %v2974, %v2960
    %v2984 = vsel %vm2981, %v2975, %v2962
    %v2985 = vsel %vm2981, %v2976, %v2964
    %v2986 = vsel %vm2981, %v2977, %v2966
    %v2987 = vsel %vm2981, %v2978, %v2968
    %v2988 = vsel %vm2981, %v2979, %v2970
    %v2989 = vsel %vm2981, %v2980, %v2972
    %vm2998 = vcmask 1044224
    %vm2999 = vcmask 523268
    %vm3000 = vmor %vm2999, %vm2998
    %3001 = vst.msk [vmem:[#allocation3] sm:$0xff] %vm3000, %v2982
    %3002 = vst.msk [vmem:[#allocation3 + $0xc] sm:$0xff] %vm3000, %v2983
    %3003 = vst.msk [vmem:[#allocation3 + $0x18] sm:$0xff] %vm3000, %v2984
    %3004 = vst.msk [vmem:[#allocation3 + $0x24] sm:$0xff] %vm3000, %v2985
    %3005 = vst.msk [vmem:[#allocation3 + $0x30] sm:$0xff] %vm3000, %v2986
    %3006 = vst.msk [vmem:[#allocation3 + $0x3c] sm:$0xff] %vm3000, %v2987
    %3007 = vst.msk [vmem:[#allocation3 + $0x48] sm:$0xff] %vm3000, %v2988
    %3008 = vst.msk [vmem:[#allocation3 + $0x54] sm:$0xff] %vm3000, %v2989
    %v3009 = vld [vmem:[#allocation2] sm:$0xe]
    %v3010 = vld [vmem:[#allocation2 + $0x4] sm:$0x1]
    %v3011 = vld [vmem:[#allocation2 + $0x8] sm:$0xe]
    %v3012 = vld [vmem:[#allocation2 + $0xc] sm:$0x1]
    %v3013 = vld [vmem:[#allocation2 + $0x10] sm:$0xe]
    %v3014 = vld [vmem:[#allocation2 + $0x14] sm:$0x1]
    %v3015 = vld [vmem:[#allocation2 + $0x18] sm:$0xe]
    %v3016 = vld [vmem:[#allocation2 + $0x1c] sm:$0x1]
    %v3017 = vld [vmem:[#allocation2 + $0x20] sm:$0xe]
    %v3018 = vld [vmem:[#allocation2 + $0x24] sm:$0x1]
    %v3019 = vld [vmem:[#allocation2 + $0x28] sm:$0xe]
    %v3020 = vld [vmem:[#allocation2 + $0x2c] sm:$0x1]
    %v3021 = vld [vmem:[#allocation2 + $0x30] sm:$0xe]
    %v3022 = vld [vmem:[#allocation2 + $0x34] sm:$0x1]
    %v3023 = vld [vmem:[#allocation2 + $0x38] sm:$0xe]
    %v3024 = vld [vmem:[#allocation2 + $0x3c] sm:$0x1]
    %v3025 = vld [vmem:[#allocation2 + $0x40] sm:$0xe]
    %v3026 = vld [vmem:[#allocation2 + $0x44] sm:$0x1]
    %v3027 = vld [vmem:[#allocation2 + $0x48] sm:$0xe]
    %v3028 = vld [vmem:[#allocation2 + $0x4c] sm:$0x1]
    %vm3049 = vcmask 1042432
    %vm3050 = vcmask 1046532
    %vm3051 = vmor %vm3049, %vm3050
    %v3052 = vrot.slane %v3009, 5
    %v3053 = vrot.slane %v3052, 4
    %v3054 = vrot.slane %v3010, 5
    %v3055 = vsel %vm3051, %v3053, %v3054
    %v3056 = vrot.slane %v3011, 5
    %v3057 = vrot.slane %v3056, 4
    %v3058 = vrot.slane %v3012, 5
    %v3059 = vsel %vm3051, %v3057, %v3058
    %v3060 = vrot.slane %v3013, 5
    %v3061 = vrot.slane %v3060, 4
    %v3062 = vrot.slane %v3014, 5
    %v3063 = vsel %vm3051, %v3061, %v3062
    %v3064 = vrot.slane %v3015, 5
    %v3065 = vrot.slane %v3064, 4
    %v3066 = vrot.slane %v3016, 5
    %v3067 = vsel %vm3051, %v3065, %v3066
    %v3068 = vrot.slane %v3017, 5
    %v3069 = vrot.slane %v3068, 4
    %v3070 = vrot.slane %v3018, 5
    %v3071 = vsel %vm3051, %v3069, %v3070
    %v3072 = vrot.slane %v3019, 5
    %v3073 = vrot.slane %v3072, 4
    %v3074 = vrot.slane %v3020, 5
    %v3075 = vsel %vm3051, %v3073, %v3074
    %v3076 = vrot.slane %v3021, 5
    %v3077 = vrot.slane %v3076, 4
    %v3078 = vrot.slane %v3022, 5
    %v3079 = vsel %vm3051, %v3077, %v3078
    %v3080 = vrot.slane %v3023, 5
    %v3081 = vrot.slane %v3080, 4
    %v3082 = vrot.slane %v3024, 5
    %v3083 = vsel %vm3051, %v3081, %v3082
    %v3084 = vrot.slane %v3025, 5
    %v3085 = vrot.slane %v3084, 4
    %v3086 = vrot.slane %v3026, 5
    %v3087 = vsel %vm3051, %v3085, %v3086
    %v3088 = vrot.slane %v3027, 5
    %v3089 = vrot.slane %v3088, 4
    %v3090 = vrot.slane %v3028, 5
    %v3091 = vsel %vm3051, %v3089, %v3090
    %v3092 = vunpack.c.l.b16 %v3055
    %v3093 = vunpack.c.l.b16 %v3059
    %v3094 = vunpack.c.l.b16 %v3063
    %v3095 = vunpack.c.l.b16 %v3067
    %v3096 = vunpack.c.l.b16 %v3071
    %v3097 = vunpack.c.l.b16 %v3075
    %v3098 = vunpack.c.l.b16 %v3079
    %v3099 = vunpack.c.l.b16 %v3083
    %v3100 = vpack.c.b16 %v3093, %v3092
    %v3101 = vpack.c.b16 %v3095, %v3094
    %v3102 = vpack.c.b16 %v3097, %v3096
    %v3103 = vpack.c.b16 %v3099, %v3098
    %v3104 = vunpack.c.l.b16 %v3087
    %v3105 = vpack.c.b16 %v3094, %v3093
    %v3106 = vpack.c.b16 %v3096, %v3095
    %v3107 = vpack.c.b16 %v3098, %v3097
    %v3108 = vpack.c.b16 %v3104, %v3099
    %3109 = vrot.lane.b32.xlu0 %v3105, 32
    %v3110 = vpop.permute.xlu0 %3109
    %3111 = vrot.lane.b32.xlu0 %v3106, 32
    %v3112 = vpop.permute.xlu0 %3111
    %3113 = vrot.lane.b32.xlu0 %v3107, 32
    %v3114 = vpop.permute.xlu0 %3113
    %3115 = vrot.lane.b32.xlu0 %v3108, 32
    %v3116 = vpop.permute.xlu0 %3115
    %v3117 = vunpack.c.l.b16 %v3091
    %v3118 = vpack.c.b16 %v3117, %v3104
    %3119 = vrot.lane.b32.xlu0 %v3101, 64
    %v3120 = vpop.permute.xlu0 %3119
    %3121 = vrot.lane.b32.xlu0 %v3102, 64
    %v3122 = vpop.permute.xlu0 %3121
    %3123 = vrot.lane.b32.xlu0 %v3103, 64
    %v3124 = vpop.permute.xlu0 %3123
    %3125 = vrot.lane.b32.xlu0 %v3118, 64
    %v3126 = vpop.permute.xlu0 %3125
    %v3129 = vsel %vm603, %v3100, %v3110
    %v3132 = vsel %vm603, %v3101, %v3112
    %v3135 = vsel %vm603, %v3102, %v3114
    %v3138 = vsel %vm603, %v3103, %v3116
    %v3140 = vsel %vm2673, %v3129, %v3120
    %v3142 = vsel %vm2673, %v3132, %v3122
    %v3144 = vsel %vm2673, %v3135, %v3124
    %v3146 = vsel %vm2673, %v3138, %v3126
    %v3151 = vunpack.c.l.b16 %v3140
    %v3152 = vunpack.c.h.b16 %v3140
    %v3153 = vunpack.c.l.b16 %v3142
    %v3154 = vunpack.c.h.b16 %v3142
    %v3155 = vunpack.c.l.b16 %v3144
    %v3156 = vunpack.c.h.b16 %v3144
    %v3157 = vunpack.c.l.b16 %v3146
    %v3158 = vunpack.c.h.b16 %v3146
    %v3159 = vpack.c.b16 %v3151, %v3151
    %v3160 = vpack.c.b16 %v3152, %v3152
    %v3161 = vpack.c.b16 %v3153, %v3153
    %v3162 = vpack.c.b16 %v3154, %v3154
    %v3163 = vpack.c.b16 %v3155, %v3155
    %v3164 = vpack.c.b16 %v3156, %v3156
    %v3165 = vpack.c.b16 %v3157, %v3157
    %v3166 = vpack.c.b16 %v3158, %v3158
    %3167 = vrot.lane.b32.xlu0 %v3159, 64
    %v3168 = vpop.permute.xlu0 %3167
    %3169 = vrot.lane.b32.xlu0 %v3160, 64
    %v3170 = vpop.permute.xlu0 %3169
    %3171 = vrot.lane.b32.xlu0 %v3161, 64
    %v3172 = vpop.permute.xlu0 %3171
    %3173 = vrot.lane.b32.xlu0 %v3162, 64
    %v3174 = vpop.permute.xlu0 %3173
    %3175 = vrot.lane.b32.xlu0 %v3163, 64
    %v3176 = vpop.permute.xlu0 %3175
    %3177 = vrot.lane.b32.xlu0 %v3164, 64
    %v3178 = vpop.permute.xlu0 %3177
    %3179 = vrot.lane.b32.xlu0 %v3165, 64
    %v3180 = vpop.permute.xlu0 %3179
    %3181 = vrot.lane.b32.xlu0 %v3166, 64
    %v3182 = vpop.permute.xlu0 %3181
    %v3183 = vrot.slane %v3168, 4
    %v3184 = vrot.slane %v3170, 4
    %v3185 = vrot.slane %v3172, 4
    %v3186 = vrot.slane %v3174, 4
    %v3187 = vrot.slane %v3176, 4
    %v3188 = vrot.slane %v3178, 4
    %v3189 = vrot.slane %v3180, 4
    %v3190 = vrot.slane %v3182, 4
    %vm3191 = vcmask 523264
    %v3192 = vsel %vm3191, %v3183, %v3168
    %v3193 = vsel %vm3191, %v3184, %v3170
    %v3194 = vsel %vm3191, %v3185, %v3172
    %v3195 = vsel %vm3191, %v3186, %v3174
    %v3196 = vsel %vm3191, %v3187, %v3176
    %v3197 = vsel %vm3191, %v3188, %v3178
    %v3198 = vsel %vm3191, %v3189, %v3180
    %v3199 = vsel %vm3191, %v3190, %v3182
    %vm3208 = vcmask 1043968
    %vm3209 = vcmask 261124
    %vm3210 = vmor %vm3209, %vm3208
    %3211 = vst.msk [vmem:[#allocation3 + $0x4] sm:$0xff] %vm3210, %v3192
    %3212 = vst.msk [vmem:[#allocation3 + $0x10] sm:$0xff] %vm3210, %v3193
    %3213 = vst.msk [vmem:[#allocation3 + $0x1c] sm:$0xff] %vm3210, %v3194
    %3214 = vst.msk [vmem:[#allocation3 + $0x28] sm:$0xff] %vm3210, %v3195
    %3215 = vst.msk [vmem:[#allocation3 + $0x34] sm:$0xff] %vm3210, %v3196
    %3216 = vst.msk [vmem:[#allocation3 + $0x40] sm:$0xff] %vm3210, %v3197
    %3217 = vst.msk [vmem:[#allocation3 + $0x4c] sm:$0xff] %vm3210, %v3198
    %3218 = vst.msk [vmem:[#allocation3 + $0x58] sm:$0xff] %vm3210, %v3199
    %s3219 = scalar_lea.vmem [#allocation2], 80
    %v3220 = vld [vmem:[%s3219] sm:$0xf]
    %v3221 = vld [vmem:[%s3219 + $0x8] sm:$0xf]
    %v3222 = vld [vmem:[%s3219 + $0x10] sm:$0xf]
    %v3223 = vld [vmem:[%s3219 + $0x18] sm:$0xf]
    %v3224 = vld [vmem:[%s3219 + $0x20] sm:$0xf]
    %v3225 = vld [vmem:[%s3219 + $0x28] sm:$0xf]
    %v3226 = vld [vmem:[%s3219 + $0x30] sm:$0xf]
    %v3227 = vld [vmem:[%s3219 + $0x38] sm:$0xf]
    %v3228 = vld [vmem:[%s3219 + $0x40] sm:$0xf]
    %v3229 = vld [vmem:[%s3219 + $0x48] sm:$0xf]
    %v3238 = vunpack.c.l.b16 %v3220
    %v3239 = vunpack.c.l.b16 %v3221
    %v3240 = vunpack.c.l.b16 %v3222
    %v3241 = vunpack.c.l.b16 %v3223
    %v3242 = vunpack.c.l.b16 %v3224
    %v3243 = vunpack.c.l.b16 %v3225
    %v3244 = vunpack.c.l.b16 %v3226
    %v3245 = vunpack.c.l.b16 %v3227
    %v3246 = vpack.c.b16 %v3239, %v3238
    %v3247 = vpack.c.b16 %v3241, %v3240
    %v3248 = vpack.c.b16 %v3243, %v3242
    %v3249 = vpack.c.b16 %v3245, %v3244
    %v3251 = vunpack.c.l.b16 %v3228
    %v3252 = vpack.c.b16 %v3240, %v3239
    %v3253 = vpack.c.b16 %v3242, %v3241
    %v3254 = vpack.c.b16 %v3244, %v3243
    %v3255 = vpack.c.b16 %v3251, %v3245
    %3256 = vrot.lane.b32.xlu0 %v3252, 32
    %v3257 = vpop.permute.xlu0 %3256
    %3258 = vrot.lane.b32.xlu0 %v3253, 32
    %v3259 = vpop.permute.xlu0 %3258
    %3260 = vrot.lane.b32.xlu0 %v3254, 32
    %v3261 = vpop.permute.xlu0 %3260
    %3262 = vrot.lane.b32.xlu0 %v3255, 32
    %v3263 = vpop.permute.xlu0 %3262
    %v3265 = vunpack.c.l.b16 %v3229
    %v3266 = vpack.c.b16 %v3265, %v3251
    %3267 = vrot.lane.b32.xlu0 %v3247, 64
    %v3268 = vpop.permute.xlu0 %3267
    %3269 = vrot.lane.b32.xlu0 %v3248, 64
    %v3270 = vpop.permute.xlu0 %3269
    %3271 = vrot.lane.b32.xlu0 %v3249, 64
    %v3272 = vpop.permute.xlu0 %3271
    %3273 = vrot.lane.b32.xlu0 %v3266, 64
    %v3274 = vpop.permute.xlu0 %3273
    %v3277 = vsel %vm603, %v3246, %v3257
    %v3280 = vsel %vm603, %v3247, %v3259
    %v3283 = vsel %vm603, %v3248, %v3261
    %v3286 = vsel %vm603, %v3249, %v3263
    %v3288 = vsel %vm2673, %v3277, %v3268
    %v3290 = vsel %vm2673, %v3280, %v3270
    %v3292 = vsel %vm2673, %v3283, %v3272
    %v3294 = vsel %vm2673, %v3286, %v3274
    %v3299 = vunpack.c.l.b16 %v3288
    %v3300 = vunpack.c.h.b16 %v3288
    %v3301 = vunpack.c.l.b16 %v3290
    %v3302 = vunpack.c.h.b16 %v3290
    %v3303 = vunpack.c.l.b16 %v3292
    %v3304 = vunpack.c.h.b16 %v3292
    %v3305 = vunpack.c.l.b16 %v3294
    %v3306 = vunpack.c.h.b16 %v3294
    %v3307 = vpack.c.b16 %v3299, %v3299
    %v3308 = vpack.c.b16 %v3300, %v3300
    %v3309 = vpack.c.b16 %v3301, %v3301
    %v3310 = vpack.c.b16 %v3302, %v3302
    %v3311 = vpack.c.b16 %v3303, %v3303
    %v3312 = vpack.c.b16 %v3304, %v3304
    %v3313 = vpack.c.b16 %v3305, %v3305
    %v3314 = vpack.c.b16 %v3306, %v3306
    %3323 = vst.msk [vmem:[#allocation3 + $0x60] sm:$0xf] %vm2710, %v3307
    %3324 = vst.msk [vmem:[#allocation3 + $0x6c] sm:$0xf] %vm2710, %v3308
    %3325 = vst.msk [vmem:[#allocation3 + $0x78] sm:$0xf] %vm2710, %v3309
    %3326 = vst.msk [vmem:[#allocation3 + $0x84] sm:$0xf] %vm2710, %v3310
    %3327 = vst.msk [vmem:[#allocation3 + $0x90] sm:$0xf] %vm2710, %v3311
    %3328 = vst.msk [vmem:[#allocation3 + $0x9c] sm:$0xf] %vm2710, %v3312
    %3329 = vst.msk [vmem:[#allocation3 + $0xa8] sm:$0xf] %vm2710, %v3313
    %3330 = vst.msk [vmem:[#allocation3 + $0xb4] sm:$0xf] %vm2710, %v3314
    %v3331 = vld [vmem:[%s3219] sm:$0xf]
    %v3332 = vld [vmem:[%s3219 + $0x4] sm:$0x1]
    %v3333 = vld [vmem:[%s3219 + $0x8] sm:$0xf]
    %v3334 = vld [vmem:[%s3219 + $0xc] sm:$0x1]
    %v3335 = vld [vmem:[%s3219 + $0x10] sm:$0xf]
    %v3336 = vld [vmem:[%s3219 + $0x14] sm:$0x1]
    %v3337 = vld [vmem:[%s3219 + $0x18] sm:$0xf]
    %v3338 = vld [vmem:[%s3219 + $0x1c] sm:$0x1]
    %v3339 = vld [vmem:[%s3219 + $0x20] sm:$0xf]
    %v3340 = vld [vmem:[%s3219 + $0x24] sm:$0x1]
    %v3341 = vld [vmem:[%s3219 + $0x28] sm:$0xf]
    %v3342 = vld [vmem:[%s3219 + $0x2c] sm:$0x1]
    %v3343 = vld [vmem:[%s3219 + $0x30] sm:$0xf]
    %v3344 = vld [vmem:[%s3219 + $0x34] sm:$0x1]
    %v3345 = vld [vmem:[%s3219 + $0x38] sm:$0xf]
    %v3346 = vld [vmem:[%s3219 + $0x3c] sm:$0x1]
    %v3347 = vld [vmem:[%s3219 + $0x40] sm:$0xf]
    %v3348 = vld [vmem:[%s3219 + $0x44] sm:$0x1]
    %v3349 = vld [vmem:[%s3219 + $0x48] sm:$0xf]
    %v3350 = vld [vmem:[%s3219 + $0x4c] sm:$0x1]
    %v3352 = vshrl.u32 %v3331, 16
    %v3354 = vrot.slane %v3352, 4
    %v3355 = vshll.u32 %v3331, 16
    %v3357 = vrot.slane %v3355, 5
    %v3358 = vor.u32 %v3354, %v3357
    %v3359 = vrot.slane %v3358, 4
    %v3361 = vshll.u32 %v3332, 16
    %v3363 = vrot.slane %v3361, 5
    %v3364 = vsel %vm2741, %v3359, %v3363
    %v3366 = vshrl.u32 %v3333, 16
    %v3368 = vrot.slane %v3366, 4
    %v3369 = vshll.u32 %v3333, 16
    %v3371 = vrot.slane %v3369, 5
    %v3372 = vor.u32 %v3368, %v3371
    %v3373 = vrot.slane %v3372, 4
    %v3375 = vshll.u32 %v3334, 16
    %v3377 = vrot.slane %v3375, 5
    %v3378 = vsel %vm2741, %v3373, %v3377
    %v3380 = vshrl.u32 %v3335, 16
    %v3382 = vrot.slane %v3380, 4
    %v3383 = vshll.u32 %v3335, 16
    %v3385 = vrot.slane %v3383, 5
    %v3386 = vor.u32 %v3382, %v3385
    %v3387 = vrot.slane %v3386, 4
    %v3389 = vshll.u32 %v3336, 16
    %v3391 = vrot.slane %v3389, 5
    %v3392 = vsel %vm2741, %v3387, %v3391
    %v3394 = vshrl.u32 %v3337, 16
    %v3396 = vrot.slane %v3394, 4
    %v3397 = vshll.u32 %v3337, 16
    %v3399 = vrot.slane %v3397, 5
    %v3400 = vor.u32 %v3396, %v3399
    %v3401 = vrot.slane %v3400, 4
    %v3403 = vshll.u32 %v3338, 16
    %v3405 = vrot.slane %v3403, 5
    %v3406 = vsel %vm2741, %v3401, %v3405
    %v3408 = vshrl.u32 %v3339, 16
    %v3410 = vrot.slane %v3408, 4
    %v3411 = vshll.u32 %v3339, 16
    %v3413 = vrot.slane %v3411, 5
    %v3414 = vor.u32 %v3410, %v3413
    %v3415 = vrot.slane %v3414, 4
    %v3417 = vshll.u32 %v3340, 16
    %v3419 = vrot.slane %v3417, 5
    %v3420 = vsel %vm2741, %v3415, %v3419
    %v3422 = vshrl.u32 %v3341, 16
    %v3424 = vrot.slane %v3422, 4
    %v3425 = vshll.u32 %v3341, 16
    %v3427 = vrot.slane %v3425, 5
    %v3428 = vor.u32 %v3424, %v3427
    %v3429 = vrot.slane %v3428, 4
    %v3431 = vshll.u32 %v3342, 16
    %v3433 = vrot.slane %v3431, 5
    %v3434 = vsel %vm2741, %v3429, %v3433
    %v3436 = vshrl.u32 %v3343, 16
    %v3438 = vrot.slane %v3436, 4
    %v3439 = vshll.u32 %v3343, 16
    %v3441 = vrot.slane %v3439, 5
    %v3442 = vor.u32 %v3438, %v3441
    %v3443 = vrot.slane %v3442, 4
    %v3445 = vshll.u32 %v3344, 16
    %v3447 = vrot.slane %v3445, 5
    %v3448 = vsel %vm2741, %v3443, %v3447
    %v3450 = vshrl.u32 %v3345, 16
    %v3452 = vrot.slane %v3450, 4
    %v3453 = vshll.u32 %v3345, 16
    %v3455 = vrot.slane %v3453, 5
    %v3456 = vor.u32 %v3452, %v3455
    %v3457 = vrot.slane %v3456, 4
    %v3459 = vshll.u32 %v3346, 16
    %v3461 = vrot.slane %v3459, 5
    %v3462 = vsel %vm2741, %v3457, %v3461
    %v3464 = vshrl.u32 %v3347, 16
    %v3466 = vrot.slane %v3464, 4
    %v3467 = vshll.u32 %v3347, 16
    %v3469 = vrot.slane %v3467, 5
    %v3470 = vor.u32 %v3466, %v3469
    %v3471 = vrot.slane %v3470, 4
    %v3473 = vshll.u32 %v3348, 16
    %v3475 = vrot.slane %v3473, 5
    %v3476 = vsel %vm2741, %v3471, %v3475
    %v3478 = vshrl.u32 %v3349, 16
    %v3480 = vrot.slane %v3478, 4
    %v3481 = vshll.u32 %v3349, 16
    %v3483 = vrot.slane %v3481, 5
    %v3484 = vor.u32 %v3480, %v3483
    %v3485 = vrot.slane %v3484, 4
    %v3487 = vshll.u32 %v3350, 16
    %v3489 = vrot.slane %v3487, 5
    %v3490 = vsel %vm2741, %v3485, %v3489
    %v3491 = vunpack.c.l.b16 %v3364
    %v3492 = vunpack.c.l.b16 %v3378
    %v3493 = vunpack.c.l.b16 %v3392
    %v3494 = vunpack.c.l.b16 %v3406
    %v3495 = vunpack.c.l.b16 %v3420
    %v3496 = vunpack.c.l.b16 %v3434
    %v3497 = vunpack.c.l.b16 %v3448
    %v3498 = vunpack.c.l.b16 %v3462
    %v3499 = vpack.c.b16 %v3492, %v3491
    %v3500 = vpack.c.b16 %v3494, %v3493
    %v3501 = vpack.c.b16 %v3496, %v3495
    %v3502 = vpack.c.b16 %v3498, %v3497
    %v3503 = vunpack.c.l.b16 %v3476
    %v3504 = vpack.c.b16 %v3493, %v3492
    %v3505 = vpack.c.b16 %v3495, %v3494
    %v3506 = vpack.c.b16 %v3497, %v3496
    %v3507 = vpack.c.b16 %v3503, %v3498
    %3508 = vrot.lane.b32.xlu0 %v3504, 32
    %v3509 = vpop.permute.xlu0 %3508
    %3510 = vrot.lane.b32.xlu0 %v3505, 32
    %v3511 = vpop.permute.xlu0 %3510
    %3512 = vrot.lane.b32.xlu0 %v3506, 32
    %v3513 = vpop.permute.xlu0 %3512
    %3514 = vrot.lane.b32.xlu0 %v3507, 32
    %v3515 = vpop.permute.xlu0 %3514
    %v3516 = vunpack.c.l.b16 %v3490
    %v3517 = vpack.c.b16 %v3516, %v3503
    %3518 = vrot.lane.b32.xlu0 %v3500, 64
    %v3519 = vpop.permute.xlu0 %3518
    %3520 = vrot.lane.b32.xlu0 %v3501, 64
    %v3521 = vpop.permute.xlu0 %3520
    %3522 = vrot.lane.b32.xlu0 %v3502, 64
    %v3523 = vpop.permute.xlu0 %3522
    %3524 = vrot.lane.b32.xlu0 %v3517, 64
    %v3525 = vpop.permute.xlu0 %3524
    %v3528 = vsel %vm603, %v3499, %v3509
    %v3531 = vsel %vm603, %v3500, %v3511
    %v3534 = vsel %vm603, %v3501, %v3513
    %v3537 = vsel %vm603, %v3502, %v3515
    %v3539 = vsel %vm2673, %v3528, %v3519
    %v3541 = vsel %vm2673, %v3531, %v3521
    %v3543 = vsel %vm2673, %v3534, %v3523
    %v3545 = vsel %vm2673, %v3537, %v3525
    %v3550 = vunpack.c.l.b16 %v3539
    %v3551 = vunpack.c.h.b16 %v3539
    %v3552 = vunpack.c.l.b16 %v3541
    %v3553 = vunpack.c.h.b16 %v3541
    %v3554 = vunpack.c.l.b16 %v3543
    %v3555 = vunpack.c.h.b16 %v3543
    %v3556 = vunpack.c.l.b16 %v3545
    %v3557 = vunpack.c.h.b16 %v3545
    %v3558 = vpack.c.b16 %v3550, %v3550
    %v3559 = vpack.c.b16 %v3551, %v3551
    %v3560 = vpack.c.b16 %v3552, %v3552
    %v3561 = vpack.c.b16 %v3553, %v3553
    %v3562 = vpack.c.b16 %v3554, %v3554
    %v3563 = vpack.c.b16 %v3555, %v3555
    %v3564 = vpack.c.b16 %v3556, %v3556
    %v3565 = vpack.c.b16 %v3557, %v3557
    %3566 = vrot.lane.b32.xlu0 %v3558, 96
    %v3567 = vpop.permute.xlu0 %3566
    %3568 = vrot.lane.b32.xlu0 %v3559, 96
    %v3569 = vpop.permute.xlu0 %3568
    %3570 = vrot.lane.b32.xlu0 %v3560, 96
    %v3571 = vpop.permute.xlu0 %3570
    %3572 = vrot.lane.b32.xlu0 %v3561, 96
    %v3573 = vpop.permute.xlu0 %3572
    %3574 = vrot.lane.b32.xlu0 %v3562, 96
    %v3575 = vpop.permute.xlu0 %3574
    %3576 = vrot.lane.b32.xlu0 %v3563, 96
    %v3577 = vpop.permute.xlu0 %3576
    %3578 = vrot.lane.b32.xlu0 %v3564, 96
    %v3579 = vpop.permute.xlu0 %3578
    %3580 = vrot.lane.b32.xlu0 %v3565, 96
    %v3581 = vpop.permute.xlu0 %3580
    %v3582 = vrot.slane %v3567, 4
    %v3583 = vrot.slane %v3569, 4
    %v3584 = vrot.slane %v3571, 4
    %v3585 = vrot.slane %v3573, 4
    %v3586 = vrot.slane %v3575, 4
    %v3587 = vrot.slane %v3577, 4
    %v3588 = vrot.slane %v3579, 4
    %v3589 = vrot.slane %v3581, 4
    %v3590 = vsel %vm2981, %v3582, %v3567
    %v3591 = vsel %vm2981, %v3583, %v3569
    %v3592 = vsel %vm2981, %v3584, %v3571
    %v3593 = vsel %vm2981, %v3585, %v3573
    %v3594 = vsel %vm2981, %v3586, %v3575
    %v3595 = vsel %vm2981, %v3587, %v3577
    %v3596 = vsel %vm2981, %v3588, %v3579
    %v3597 = vsel %vm2981, %v3589, %v3581
    %3606 = vst.msk [vmem:[#allocation3 + $0x60] sm:$0xff] %vm3000, %v3590
    %3607 = vst.msk [vmem:[#allocation3 + $0x6c] sm:$0xff] %vm3000, %v3591
    %3608 = vst.msk [vmem:[#allocation3 + $0x78] sm:$0xff] %vm3000, %v3592
    %3609 = vst.msk [vmem:[#allocation3 + $0x84] sm:$0xff] %vm3000, %v3593
    %3610 = vst.msk [vmem:[#allocation3 + $0x90] sm:$0xff] %vm3000, %v3594
    %3611 = vst.msk [vmem:[#allocation3 + $0x9c] sm:$0xff] %vm3000, %v3595
    %3612 = vst.msk [vmem:[#allocation3 + $0xa8] sm:$0xff] %vm3000, %v3596
    %3613 = vst.msk [vmem:[#allocation3 + $0xb4] sm:$0xff] %vm3000, %v3597
    %v3614 = vld [vmem:[%s3219] sm:$0xe]
    %v3615 = vld [vmem:[%s3219 + $0x4] sm:$0x1]
    %v3616 = vld [vmem:[%s3219 + $0x8] sm:$0xe]
    %v3617 = vld [vmem:[%s3219 + $0xc] sm:$0x1]
    %v3618 = vld [vmem:[%s3219 + $0x10] sm:$0xe]
    %v3619 = vld [vmem:[%s3219 + $0x14] sm:$0x1]
    %v3620 = vld [vmem:[%s3219 + $0x18] sm:$0xe]
    %v3621 = vld [vmem:[%s3219 + $0x1c] sm:$0x1]
    %v3622 = vld [vmem:[%s3219 + $0x20] sm:$0xe]
    %v3623 = vld [vmem:[%s3219 + $0x24] sm:$0x1]
    %v3624 = vld [vmem:[%s3219 + $0x28] sm:$0xe]
    %v3625 = vld [vmem:[%s3219 + $0x2c] sm:$0x1]
    %v3626 = vld [vmem:[%s3219 + $0x30] sm:$0xe]
    %v3627 = vld [vmem:[%s3219 + $0x34] sm:$0x1]
    %v3628 = vld [vmem:[%s3219 + $0x38] sm:$0xe]
    %v3629 = vld [vmem:[%s3219 + $0x3c] sm:$0x1]
    %v3630 = vld [vmem:[%s3219 + $0x40] sm:$0xe]
    %v3631 = vld [vmem:[%s3219 + $0x44] sm:$0x1]
    %v3632 = vld [vmem:[%s3219 + $0x48] sm:$0xe]
    %v3633 = vld [vmem:[%s3219 + $0x4c] sm:$0x1]
    %v3654 = vrot.slane %v3614, 5
    %v3655 = vrot.slane %v3654, 4
    %v3656 = vrot.slane %v3615, 5
    %v3657 = vsel %vm3051, %v3655, %v3656
    %v3658 = vrot.slane %v3616, 5
    %v3659 = vrot.slane %v3658, 4
    %v3660 = vrot.slane %v3617, 5
    %v3661 = vsel %vm3051, %v3659, %v3660
    %v3662 = vrot.slane %v3618, 5
    %v3663 = vrot.slane %v3662, 4
    %v3664 = vrot.slane %v3619, 5
    %v3665 = vsel %vm3051, %v3663, %v3664
    %v3666 = vrot.slane %v3620, 5
    %v3667 = vrot.slane %v3666, 4
    %v3668 = vrot.slane %v3621, 5
    %v3669 = vsel %vm3051, %v3667, %v3668
    %v3670 = vrot.slane %v3622, 5
    %v3671 = vrot.slane %v3670, 4
    %v3672 = vrot.slane %v3623, 5
    %v3673 = vsel %vm3051, %v3671, %v3672
    %v3674 = vrot.slane %v3624, 5
    %v3675 = vrot.slane %v3674, 4
    %v3676 = vrot.slane %v3625, 5
    %v3677 = vsel %vm3051, %v3675, %v3676
    %v3678 = vrot.slane %v3626, 5
    %v3679 = vrot.slane %v3678, 4
    %v3680 = vrot.slane %v3627, 5
    %v3681 = vsel %vm3051, %v3679, %v3680
    %v3682 = vrot.slane %v3628, 5
    %v3683 = vrot.slane %v3682, 4
    %v3684 = vrot.slane %v3629, 5
    %v3685 = vsel %vm3051, %v3683, %v3684
    %v3686 = vrot.slane %v3630, 5
    %v3687 = vrot.slane %v3686, 4
    %v3688 = vrot.slane %v3631, 5
    %v3689 = vsel %vm3051, %v3687, %v3688
    %v3690 = vrot.slane %v3632, 5
    %v3691 = vrot.slane %v3690, 4
    %v3692 = vrot.slane %v3633, 5
    %v3693 = vsel %vm3051, %v3691, %v3692
    %v3694 = vunpack.c.l.b16 %v3657
    %v3695 = vunpack.c.l.b16 %v3661
    %v3696 = vunpack.c.l.b16 %v3665
    %v3697 = vunpack.c.l.b16 %v3669
    %v3698 = vunpack.c.l.b16 %v3673
    %v3699 = vunpack.c.l.b16 %v3677
    %v3700 = vunpack.c.l.b16 %v3681
    %v3701 = vunpack.c.l.b16 %v3685
    %v3702 = vpack.c.b16 %v3695, %v3694
    %v3703 = vpack.c.b16 %v3697, %v3696
    %v3704 = vpack.c.b16 %v3699, %v3698
    %v3705 = vpack.c.b16 %v3701, %v3700
    %v3706 = vunpack.c.l.b16 %v3689
    %v3707 = vpack.c.b16 %v3696, %v3695
    %v3708 = vpack.c.b16 %v3698, %v3697
    %v3709 = vpack.c.b16 %v3700, %v3699
    %v3710 = vpack.c.b16 %v3706, %v3701
    %3711 = vrot.lane.b32.xlu0 %v3707, 32
    %v3712 = vpop.permute.xlu0 %3711
    %3713 = vrot.lane.b32.xlu0 %v3708, 32
    %v3714 = vpop.permute.xlu0 %3713
    %3715 = vrot.lane.b32.xlu0 %v3709, 32
    %v3716 = vpop.permute.xlu0 %3715
    %3717 = vrot.lane.b32.xlu0 %v3710, 32
    %v3718 = vpop.permute.xlu0 %3717
    %v3719 = vunpack.c.l.b16 %v3693
    %v3720 = vpack.c.b16 %v3719, %v3706
    %3721 = vrot.lane.b32.xlu0 %v3703, 64
    %v3722 = vpop.permute.xlu0 %3721
    %3723 = vrot.lane.b32.xlu0 %v3704, 64
    %v3724 = vpop.permute.xlu0 %3723
    %3725 = vrot.lane.b32.xlu0 %v3705, 64
    %v3726 = vpop.permute.xlu0 %3725
    %3727 = vrot.lane.b32.xlu0 %v3720, 64
    %v3728 = vpop.permute.xlu0 %3727
    %v3731 = vsel %vm603, %v3702, %v3712
    %v3734 = vsel %vm603, %v3703, %v3714
    %v3737 = vsel %vm603, %v3704, %v3716
    %v3740 = vsel %vm603, %v3705, %v3718
    %v3742 = vsel %vm2673, %v3731, %v3722
    %v3744 = vsel %vm2673, %v3734, %v3724
    %v3746 = vsel %vm2673, %v3737, %v3726
    %v3748 = vsel %vm2673, %v3740, %v3728
    %v3753 = vunpack.c.l.b16 %v3742
    %v3754 = vunpack.c.h.b16 %v3742
    %v3755 = vunpack.c.l.b16 %v3744
    %v3756 = vunpack.c.h.b16 %v3744
    %v3757 = vunpack.c.l.b16 %v3746
    %v3758 = vunpack.c.h.b16 %v3746
    %v3759 = vunpack.c.l.b16 %v3748
    %v3760 = vunpack.c.h.b16 %v3748
    %v3761 = vpack.c.b16 %v3753, %v3753
    %v3762 = vpack.c.b16 %v3754, %v3754
    %v3763 = vpack.c.b16 %v3755, %v3755
    %v3764 = vpack.c.b16 %v3756, %v3756
    %v3765 = vpack.c.b16 %v3757, %v3757
    %v3766 = vpack.c.b16 %v3758, %v3758
    %v3767 = vpack.c.b16 %v3759, %v3759
    %v3768 = vpack.c.b16 %v3760, %v3760
    %3769 = vrot.lane.b32.xlu0 %v3761, 64
    %v3770 = vpop.permute.xlu0 %3769
    %3771 = vrot.lane.b32.xlu0 %v3762, 64
    %v3772 = vpop.permute.xlu0 %3771
    %3773 = vrot.lane.b32.xlu0 %v3763, 64
    %v3774 = vpop.permute.xlu0 %3773
    %3775 = vrot.lane.b32.xlu0 %v3764, 64
    %v3776 = vpop.permute.xlu0 %3775
    %3777 = vrot.lane.b32.xlu0 %v3765, 64
    %v3778 = vpop.permute.xlu0 %3777
    %3779 = vrot.lane.b32.xlu0 %v3766, 64
    %v3780 = vpop.permute.xlu0 %3779
    %3781 = vrot.lane.b32.xlu0 %v3767, 64
    %v3782 = vpop.permute.xlu0 %3781
    %3783 = vrot.lane.b32.xlu0 %v3768, 64
    %v3784 = vpop.permute.xlu0 %3783
    %v3785 = vrot.slane %v3770, 4
    %v3786 = vrot.slane %v3772, 4
    %v3787 = vrot.slane %v3774, 4
    %v3788 = vrot.slane %v3776, 4
    %v3789 = vrot.slane %v3778, 4
    %v3790 = vrot.slane %v3780, 4
    %v3791 = vrot.slane %v3782, 4
    %v3792 = vrot.slane %v3784, 4
    %v3793 = vsel %vm3191, %v3785, %v3770
    %v3794 = vsel %vm3191, %v3786, %v3772
    %v3795 = vsel %vm3191, %v3787, %v3774
    %v3796 = vsel %vm3191, %v3788, %v3776
    %v3797 = vsel %vm3191, %v3789, %v3778
    %v3798 = vsel %vm3191, %v3790, %v3780
    %v3799 = vsel %vm3191, %v3791, %v3782
    %v3800 = vsel %vm3191, %v3792, %v3784
    %3809 = vst.msk [vmem:[#allocation3 + $0x64] sm:$0xff] %vm3210, %v3793
    %3810 = vst.msk [vmem:[#allocation3 + $0x70] sm:$0xff] %vm3210, %v3794
    %3811 = vst.msk [vmem:[#allocation3 + $0x7c] sm:$0xff] %vm3210, %v3795
    %3812 = vst.msk [vmem:[#allocation3 + $0x88] sm:$0xff] %vm3210, %v3796
    %3813 = vst.msk [vmem:[#allocation3 + $0x94] sm:$0xff] %vm3210, %v3797
    %3814 = vst.msk [vmem:[#allocation3 + $0xa0] sm:$0xff] %vm3210, %v3798
    %3815 = vst.msk [vmem:[#allocation3 + $0xac] sm:$0xff] %vm3210, %v3799
    %3816 = vst.msk [vmem:[#allocation3 + $0xb8] sm:$0xff] %vm3210, %v3800
    %v3817 = vld [vmem:[#allocation3] sm:$0xff]
    %v3818 = vld [vmem:[#allocation3 + $0x8] sm:$0xf]
    %v3819 = vld [vmem:[#allocation3 + $0xc] sm:$0xff]
    %v3820 = vld [vmem:[#allocation3 + $0x14] sm:$0xf]
    %v3821 = vld [vmem:[#allocation3 + $0x18] sm:$0xff]
    %v3822 = vld [vmem:[#allocation3 + $0x20] sm:$0xf]
    %v3823 = vld [vmem:[#allocation3 + $0x24] sm:$0xff]
    %v3824 = vld [vmem:[#allocation3 + $0x2c] sm:$0xf]
    %v3825 = vld [vmem:[#allocation3 + $0x30] sm:$0xff]
    %v3826 = vld [vmem:[#allocation3 + $0x38] sm:$0xf]
    %v3827 = vld [vmem:[#allocation3 + $0x3c] sm:$0xff]
    %v3828 = vld [vmem:[#allocation3 + $0x44] sm:$0xf]
    %v3829 = vld [vmem:[#allocation3 + $0x48] sm:$0xff]
    %v3830 = vld [vmem:[#allocation3 + $0x50] sm:$0xf]
    %v3831 = vld [vmem:[#allocation3 + $0x54] sm:$0xff]
    %v3832 = vld [vmem:[#allocation3 + $0x5c] sm:$0xf]
    %v3833 = vld [vmem:[#allocation3 + $0x60] sm:$0xff]
    %v3834 = vld [vmem:[#allocation3 + $0x68] sm:$0xf]
    %v3835 = vld [vmem:[#allocation3 + $0x6c] sm:$0xff]
    %v3836 = vld [vmem:[#allocation3 + $0x74] sm:$0xf]
    %v3837 = vld [vmem:[#allocation3 + $0x78] sm:$0xff]
    %v3838 = vld [vmem:[#allocation3 + $0x80] sm:$0xf]
    %v3839 = vld [vmem:[#allocation3 + $0x84] sm:$0xff]
    %v3840 = vld [vmem:[#allocation3 + $0x8c] sm:$0xf]
    %v3841 = vld [vmem:[#allocation3 + $0x90] sm:$0xff]
    %v3842 = vld [vmem:[#allocation3 + $0x98] sm:$0xf]
    %v3843 = vld [vmem:[#allocation3 + $0x9c] sm:$0xff]
    %v3844 = vld [vmem:[#allocation3 + $0xa4] sm:$0xf]
    %v3845 = vld [vmem:[#allocation3 + $0xa8] sm:$0xff]
    %v3846 = vld [vmem:[#allocation3 + $0xb0] sm:$0xf]
    %v3847 = vld [vmem:[#allocation3 + $0xb4] sm:$0xff]
    %v3848 = vld [vmem:[#allocation3 + $0xbc] sm:$0xf]
    %v3849 = vld [vmem:[%s2] sm:$0xf]
    %v3850 = vld [vmem:[%s2 + $0x4] sm:$0xf]
    %v3851 = vld [vmem:[%s2 + $0x8] sm:$0xf]
    %v3852 = vld [vmem:[%s2 + $0xc] sm:$0xf]
    %v3853 = vld [vmem:[%s2 + $0x10] sm:$0xf]
    %v3854 = vld [vmem:[%s2 + $0x14] sm:$0xf]
    %v3855 = vld [vmem:[%s2 + $0x18] sm:$0xf]
    %v3856 = vld [vmem:[%s2 + $0x1c] sm:$0xf]
    %v3857 = vld [vmem:[%s2 + $0x20] sm:$0xf]
    %v3858 = vld [vmem:[%s2 + $0x24] sm:$0xf]
    %v3859 = vld [vmem:[%s2 + $0x28] sm:$0xf]
    %v3860 = vld [vmem:[%s2 + $0x2c] sm:$0xf]
    %v3861 = vld [vmem:[%s2 + $0x30] sm:$0xf]
    %v3862 = vld [vmem:[%s2 + $0x34] sm:$0xf]
    %v3863 = vld [vmem:[%s2 + $0x38] sm:$0xf]
    %v3864 = vld [vmem:[%s2 + $0x3c] sm:$0xf]
    %v3865 = vld [vmem:[%s2 + $0x40] sm:$0xf]
    %v3866 = vld [vmem:[%s2 + $0x44] sm:$0xf]
    %v3867 = vld [vmem:[%s2 + $0x48] sm:$0xf]
    %v3868 = vld [vmem:[%s2 + $0x4c] sm:$0xf]
    %v3869 = vld [vmem:[%s2 + $0x50] sm:$0xf]
    %v3870 = vld [vmem:[%s2 + $0x54] sm:$0xf]
    %v3871 = vld [vmem:[%s2 + $0x58] sm:$0xf]
    %v3872 = vld [vmem:[%s2 + $0x5c] sm:$0xf]
    %v3873 = vld [vmem:[%s2 + $0x60] sm:$0xf]
    %v3874 = vld [vmem:[%s2 + $0x64] sm:$0xf]
    %v3875 = vld [vmem:[%s2 + $0x68] sm:$0xf]
    %v3876 = vld [vmem:[%s2 + $0x6c] sm:$0xf]
    %v3877 = vld [vmem:[%s2 + $0x70] sm:$0xf]
    %v3878 = vld [vmem:[%s2 + $0x74] sm:$0xf]
    %v3879 = vld [vmem:[%s2 + $0x78] sm:$0xf]
    %v3880 = vld [vmem:[%s2 + $0x7c] sm:$0xf]
    %v3881 = vld [vmem:[%s2 + $0x80] sm:$0xf]
    %v3882 = vld [vmem:[%s2 + $0x84] sm:$0xf]
    %v3883 = vld [vmem:[%s2 + $0x88] sm:$0xf]
    %v3884 = vld [vmem:[%s2 + $0x8c] sm:$0xf]
    %v3917 = vunpack.c.l.b16 %v3817
    %v3918 = vunpack.c.h.b16 %v3817
    %v3919 = vunpack.c.l.b16 %v3818
    %v3920 = vunpack.c.l.b16 %v3819
    %v3921 = vunpack.c.h.b16 %v3819
    %v3922 = vunpack.c.l.b16 %v3820
    %v3923 = vunpack.c.l.b16 %v3821
    %v3924 = vunpack.c.h.b16 %v3821
    %v3925 = vunpack.c.l.b16 %v3822
    %v3926 = vunpack.c.l.b16 %v3823
    %v3927 = vunpack.c.h.b16 %v3823
    %v3928 = vunpack.c.l.b16 %v3824
    %v3929 = vunpack.c.l.b16 %v3825
    %v3930 = vunpack.c.h.b16 %v3825
    %v3931 = vunpack.c.l.b16 %v3826
    %v3932 = vunpack.c.l.b16 %v3827
    %v3933 = vunpack.c.h.b16 %v3827
    %v3934 = vunpack.c.l.b16 %v3828
    %v3935 = vunpack.c.l.b16 %v3829
    %v3936 = vunpack.c.h.b16 %v3829
    %v3937 = vunpack.c.l.b16 %v3830
    %v3938 = vunpack.c.l.b16 %v3831
    %v3939 = vunpack.c.h.b16 %v3831
    %v3940 = vunpack.c.l.b16 %v3832
    %v3941 = vunpack.c.l.b16 %v3833
    %v3942 = vunpack.c.h.b16 %v3833
    %v3943 = vunpack.c.l.b16 %v3834
    %v3944 = vunpack.c.l.b16 %v3835
    %v3945 = vunpack.c.h.b16 %v3835
    %v3946 = vunpack.c.l.b16 %v3836
    %v3947 = vunpack.c.l.b16 %v3837
    %v3948 = vunpack.c.h.b16 %v3837
    %v3949 = vunpack.c.l.b16 %v3838
    %v3950 = vunpack.c.l.b16 %v3839
    %v3951 = vunpack.c.h.b16 %v3839
    %v3952 = vunpack.c.l.b16 %v3840
    %v3953 = vunpack.c.l.b16 %v3841
    %v3954 = vunpack.c.h.b16 %v3841
    %v3955 = vunpack.c.l.b16 %v3842
    %v3956 = vunpack.c.l.b16 %v3843
    %v3957 = vunpack.c.h.b16 %v3843
    %v3958 = vunpack.c.l.b16 %v3844
    %v3959 = vunpack.c.l.b16 %v3845
    %v3960 = vunpack.c.h.b16 %v3845
    %v3961 = vunpack.c.l.b16 %v3846
    %v3962 = vunpack.c.l.b16 %v3847
    %v3963 = vunpack.c.h.b16 %v3847
    %v3964 = vunpack.c.l.b16 %v3848
    %v3965 = vpack.c.b16 %v3920, %v3917
    %v3966 = vpack.c.b16 %v3921, %v3918
    %v3967 = vpack.c.b16 %v3922, %v3919
    %v3968 = vpack.c.b16 %v3926, %v3923
    %v3969 = vpack.c.b16 %v3927, %v3924
    %v3970 = vpack.c.b16 %v3928, %v3925
    %v3971 = vpack.c.b16 %v3932, %v3929
    %v3972 = vpack.c.b16 %v3933, %v3930
    %v3973 = vpack.c.b16 %v3934, %v3931
    %v3974 = vpack.c.b16 %v3938, %v3935
    %v3975 = vpack.c.b16 %v3939, %v3936
    %v3976 = vpack.c.b16 %v3940, %v3937
    %v3977 = vpack.c.b16 %v3944, %v3941
    %v3978 = vpack.c.b16 %v3945, %v3942
    %v3979 = vpack.c.b16 %v3946, %v3943
    %v3980 = vpack.c.b16 %v3950, %v3947
    %v3981 = vpack.c.b16 %v3951, %v3948
    %v3982 = vpack.c.b16 %v3952, %v3949
    %v3983 = vpack.c.b16 %v3956, %v3953
    %v3984 = vpack.c.b16 %v3957, %v3954
    %v3985 = vpack.c.b16 %v3958, %v3955
    %v3986 = vpack.c.b16 %v3962, %v3959
    %v3987 = vpack.c.b16 %v3963, %v3960
    %v3988 = vpack.c.b16 %v3964, %v3961
    %v4041 = vunpack.c.l.b16 %v3849
    %v4042 = vunpack.c.l.b16 %v3850
    %v4043 = vunpack.c.l.b16 %v3851
    %v4044 = vunpack.c.l.b16 %v3852
    %v4045 = vunpack.c.l.b16 %v3853
    %v4046 = vunpack.c.l.b16 %v3854
    %v4047 = vunpack.c.l.b16 %v3855
    %v4048 = vunpack.c.l.b16 %v3856
    %v4049 = vunpack.c.l.b16 %v3857
    %v4050 = vunpack.c.l.b16 %v3858
    %v4051 = vunpack.c.l.b16 %v3859
    %v4052 = vunpack.c.l.b16 %v3860
    %v4053 = vunpack.c.l.b16 %v3861
    %v4054 = vunpack.c.l.b16 %v3862
    %v4055 = vunpack.c.l.b16 %v3863
    %v4056 = vunpack.c.l.b16 %v3864
    %v4057 = vunpack.c.l.b16 %v3865
    %v4058 = vunpack.c.l.b16 %v3866
    %v4059 = vunpack.c.l.b16 %v3867
    %v4060 = vunpack.c.l.b16 %v3868
    %v4061 = vunpack.c.l.b16 %v3869
    %v4062 = vunpack.c.l.b16 %v3870
    %v4063 = vunpack.c.l.b16 %v3871
    %v4064 = vunpack.c.l.b16 %v3872
    %v4065 = vunpack.c.l.b16 %v3873
    %v4066 = vunpack.c.l.b16 %v3874
    %v4067 = vunpack.c.l.b16 %v3875
    %v4068 = vunpack.c.l.b16 %v3876
    %v4069 = vunpack.c.l.b16 %v3877
    %v4070 = vunpack.c.l.b16 %v3878
    %v4071 = vunpack.c.l.b16 %v3879
    %v4072 = vunpack.c.l.b16 %v3880
    %v4073 = vunpack.c.l.b16 %v3881
    %v4074 = vunpack.c.l.b16 %v3882
    %v4075 = vunpack.c.l.b16 %v3883
    %v4076 = vunpack.c.l.b16 %v3884
    %v4077 = vpack.c.b16 %v4042, %v4041
    %v4078 = vpack.c.b16 %v4044, %v4043
    %v4079 = vpack.c.b16 %v4046, %v4045
    %v4080 = vpack.c.b16 %v4048, %v4047
    %v4081 = vpack.c.b16 %v4050, %v4049
    %v4082 = vpack.c.b16 %v4052, %v4051
    %v4083 = vpack.c.b16 %v4054, %v4053
    %v4084 = vpack.c.b16 %v4056, %v4055
    %v4085 = vpack.c.b16 %v4058, %v4057
    %v4086 = vpack.c.b16 %v4060, %v4059
    %v4087 = vpack.c.b16 %v4062, %v4061
    %v4088 = vpack.c.b16 %v4064, %v4063
    %v4089 = vpack.c.b16 %v4066, %v4065
    %v4090 = vpack.c.b16 %v4068, %v4067
    %v4091 = vpack.c.b16 %v4070, %v4069
    %v4092 = vpack.c.b16 %v4072, %v4071
    %v4093 = vpack.c.b16 %v4074, %v4073
    %v4094 = vpack.c.b16 %v4076, %v4075
    %4113 = vrot.lane.b32.xlu0 %v93, 96
    %v4114 = vpop.permute.xlu0 %4113
    %v4117 = vsel %vm603, %v3967, 0
    %v4120 = vsel %vm603, %v3970, 0
    %v4123 = vsel %vm603, %v3973, 0
    %v4126 = vsel %vm603, %v3976, 0
    %v4129 = vsel %vm603, %v3979, 0
    %v4132 = vsel %vm603, %v3982, 0
    %v4135 = vsel %vm603, %v3985, 0
    %v4138 = vsel %vm603, %v3988, 0
    %4140 = vmatpush.bf16.msra.mxu0 %v4084
    %4141 = vmatpush.bf16.msra.mxu0 %v4083
    %4142 = vmatpush.bf16.msra.mxu0 %v4082
    %4143 = vmatpush.bf16.msra.mxu0 %v4081
    %4144 = vmatpush.bf16.msra.mxu0 %v4080
    %4145 = vmatpush.bf16.msra.mxu0 %v4079
    %4146 = vmatpush.bf16.msra.mxu0 %v4078
    %4147 = vmatpush.bf16.msra.mxu0 %v4077
    %4148 = vmatmul.bf16.gmra.mxu0 %v3965
    %v4149 = vpop.f32.mrf.mxu0
    %v4150 = vadd.f32 %v4114, %v4149
    %v4151 = vpop.f32.mrf.mxu0
    %v4152 = vadd.f32 %v4114, %v4151
    %4153 = vmatmul.bf16.gmra.mxu0 %v3968
    %v4154 = vpop.f32.mrf.mxu0
    %v4155 = vadd.f32 %v4114, %v4154
    %v4156 = vpop.f32.mrf.mxu0
    %v4157 = vadd.f32 %v4114, %v4156
    %4158 = vmatmul.bf16.gmra.mxu0 %v3971
    %v4159 = vpop.f32.mrf.mxu0
    %v4160 = vadd.f32 %v4114, %v4159
    %v4161 = vpop.f32.mrf.mxu0
    %v4162 = vadd.f32 %v4114, %v4161
    %4163 = vmatmul.bf16.gmra.mxu0 %v3974
    %v4164 = vpop.f32.mrf.mxu0
    %v4165 = vadd.f32 %v4114, %v4164
    %v4166 = vpop.f32.mrf.mxu0
    %v4167 = vadd.f32 %v4114, %v4166
    %4168 = vmatmul.bf16.gmra.mxu0 %v3977
    %v4169 = vpop.f32.mrf.mxu0
    %v4170 = vadd.f32 %v4114, %v4169
    %v4171 = vpop.f32.mrf.mxu0
    %v4172 = vadd.f32 %v4114, %v4171
    %4173 = vmatmul.bf16.gmra.mxu0 %v3980
    %v4174 = vpop.f32.mrf.mxu0
    %v4175 = vadd.f32 %v4114, %v4174
    %v4176 = vpop.f32.mrf.mxu0
    %v4177 = vadd.f32 %v4114, %v4176
    %4178 = vmatmul.bf16.gmra.mxu0 %v3983
    %v4179 = vpop.f32.mrf.mxu0
    %v4180 = vadd.f32 %v4114, %v4179
    %v4181 = vpop.f32.mrf.mxu0
    %v4182 = vadd.f32 %v4114, %v4181
    %4183 = vmatmul.bf16.gmra.mxu0 %v3986
    %v4184 = vpop.f32.mrf.mxu0
    %v4185 = vadd.f32 %v4114, %v4184
    %v4186 = vpop.f32.mrf.mxu0
    %v4187 = vadd.f32 %v4114, %v4186
    %4188 = vdwg.mxu0
    %4189 = vmatpush.bf16.msra.mxu0 %v4092
    %4190 = vmatpush.bf16.msra.mxu0 %v4091
    %4191 = vmatpush.bf16.msra.mxu0 %v4090
    %4192 = vmatpush.bf16.msra.mxu0 %v4089
    %4193 = vmatpush.bf16.msra.mxu0 %v4088
    %4194 = vmatpush.bf16.msra.mxu0 %v4087
    %4195 = vmatpush.bf16.msra.mxu0 %v4086
    %4196 = vmatpush.bf16.msra.mxu0 %v4085
    %4197 = vmatmul.bf16.gmra.mxu0 %v3966
    %v4198 = vpop.f32.mrf.mxu0
    %v4199 = vadd.f32 %v4150, %v4198
    %v4200 = vpop.f32.mrf.mxu0
    %v4201 = vadd.f32 %v4152, %v4200
    %4202 = vmatmul.bf16.gmra.mxu0 %v3969
    %v4203 = vpop.f32.mrf.mxu0
    %v4204 = vadd.f32 %v4155, %v4203
    %v4205 = vpop.f32.mrf.mxu0
    %v4206 = vadd.f32 %v4157, %v4205
    %4207 = vmatmul.bf16.gmra.mxu0 %v3972
    %v4208 = vpop.f32.mrf.mxu0
    %v4209 = vadd.f32 %v4160, %v4208
    %v4210 = vpop.f32.mrf.mxu0
    %v4211 = vadd.f32 %v4162, %v4210
    %4212 = vmatmul.bf16.gmra.mxu0 %v3975
    %v4213 = vpop.f32.mrf.mxu0
    %v4214 = vadd.f32 %v4165, %v4213
    %v4215 = vpop.f32.mrf.mxu0
    %v4216 = vadd.f32 %v4167, %v4215
    %4217 = vmatmul.bf16.gmra.mxu0 %v3978
    %v4218 = vpop.f32.mrf.mxu0
    %v4219 = vadd.f32 %v4170, %v4218
    %v4220 = vpop.f32.mrf.mxu0
    %v4221 = vadd.f32 %v4172, %v4220
    %4222 = vmatmul.bf16.gmra.mxu0 %v3981
    %v4223 = vpop.f32.mrf.mxu0
    %v4224 = vadd.f32 %v4175, %v4223
    %v4225 = vpop.f32.mrf.mxu0
    %v4226 = vadd.f32 %v4177, %v4225
    %4227 = vmatmul.bf16.gmra.mxu0 %v3984
    %v4228 = vpop.f32.mrf.mxu0
    %v4229 = vadd.f32 %v4180, %v4228
    %v4230 = vpop.f32.mrf.mxu0
    %v4231 = vadd.f32 %v4182, %v4230
    %4232 = vmatmul.bf16.gmra.mxu0 %v3987
    %v4233 = vpop.f32.mrf.mxu0
    %v4234 = vadd.f32 %v4185, %v4233
    %v4235 = vpop.f32.mrf.mxu0
    %v4236 = vadd.f32 %v4187, %v4235
    %4237 = vdwg.mxu0
    %4238 = vmatpush.bf16.msra.mxu0 0
    %4239 = vmatpush.bf16.msra.mxu0 0
    %4240 = vmatpush.bf16.msra.mxu0 0
    %4241 = vmatpush.bf16.msra.mxu0 0
    %4242 = vmatpush.bf16.msra.mxu0 0
    %4243 = vmatpush.bf16.msra.mxu0 0
    %4244 = vmatpush.bf16.msra.mxu0 %v4094
    %4245 = vmatpush.bf16.msra.mxu0 %v4093
    %4246 = vmatmul.bf16.gmra.mxu0 %v4117
    %v4247 = vpop.f32.mrf.mxu0
    %v4248 = vadd.f32 %v4199, %v4247
    %v4249 = vpop.f32.mrf.mxu0
    %v4250 = vadd.f32 %v4201, %v4249
    %4251 = vmatmul.bf16.gmra.mxu0 %v4120
    %v4252 = vpop.f32.mrf.mxu0
    %v4253 = vadd.f32 %v4204, %v4252
    %v4254 = vpop.f32.mrf.mxu0
    %v4255 = vadd.f32 %v4206, %v4254
    %4256 = vmatmul.bf16.gmra.mxu0 %v4123
    %v4257 = vpop.f32.mrf.mxu0
    %v4258 = vadd.f32 %v4209, %v4257
    %v4259 = vpop.f32.mrf.mxu0
    %v4260 = vadd.f32 %v4211, %v4259
    %4261 = vmatmul.bf16.gmra.mxu0 %v4126
    %v4262 = vpop.f32.mrf.mxu0
    %v4263 = vadd.f32 %v4214, %v4262
    %v4264 = vpop.f32.mrf.mxu0
    %v4265 = vadd.f32 %v4216, %v4264
    %4266 = vmatmul.bf16.gmra.mxu0 %v4129
    %v4267 = vpop.f32.mrf.mxu0
    %v4268 = vadd.f32 %v4219, %v4267
    %v4269 = vpop.f32.mrf.mxu0
    %v4270 = vadd.f32 %v4221, %v4269
    %4271 = vmatmul.bf16.gmra.mxu0 %v4132
    %v4272 = vpop.f32.mrf.mxu0
    %v4273 = vadd.f32 %v4224, %v4272
    %v4274 = vpop.f32.mrf.mxu0
    %v4275 = vadd.f32 %v4226, %v4274
    %4276 = vmatmul.bf16.gmra.mxu0 %v4135
    %v4277 = vpop.f32.mrf.mxu0
    %v4278 = vadd.f32 %v4229, %v4277
    %v4279 = vpop.f32.mrf.mxu0
    %v4280 = vadd.f32 %v4231, %v4279
    %4281 = vmatmul.bf16.gmra.mxu0 %v4138
    %v4282 = vpop.f32.mrf.mxu0
    %v4283 = vadd.f32 %v4234, %v4282
    %v4284 = vpop.f32.mrf.mxu0
    %v4285 = vadd.f32 %v4236, %v4284
    %4286 = vdwg.mxu0
    %v4287 = vmax.f32 %v4248, 0.0
    %v4288 = vmax.f32 %v4250, 0.0
    %v4289 = vmax.f32 %v4253, 0.0
    %v4290 = vmax.f32 %v4255, 0.0
    %v4291 = vmax.f32 %v4258, 0.0
    %v4292 = vmax.f32 %v4260, 0.0
    %v4293 = vmax.f32 %v4263, 0.0
    %v4294 = vmax.f32 %v4265, 0.0
    %v4295 = vmax.f32 %v4268, 0.0
    %v4296 = vmax.f32 %v4270, 0.0
    %v4297 = vmax.f32 %v4273, 0.0
    %v4298 = vmax.f32 %v4275, 0.0
    %v4299 = vmax.f32 %v4278, 0.0
    %v4300 = vmax.f32 %v4280, 0.0
    %v4301 = vmax.f32 %v4283, 0.0
    %v4302 = vmax.f32 %v4285, 0.0
    %v4303 = vsel %vm2673, %v4287, -inf
    %v4304 = vsel %vm2673, %v4288, -inf
    %v4305 = vmax.f32 %v4303, %v4304
    %v4306 = vsel %vm2673, %v4289, -inf
    %v4307 = vsel %vm2673, %v4290, -inf
    %v4308 = vmax.f32 %v4306, %v4307
    %v4309 = vsel %vm2673, %v4291, -inf
    %v4310 = vsel %vm2673, %v4292, -inf
    %v4311 = vmax.f32 %v4309, %v4310
    %v4312 = vsel %vm2673, %v4293, -inf
    %v4313 = vsel %vm2673, %v4294, -inf
    %v4314 = vmax.f32 %v4312, %v4313
    %v4315 = vsel %vm2673, %v4295, -inf
    %v4316 = vsel %vm2673, %v4296, -inf
    %v4317 = vmax.f32 %v4315, %v4316
    %v4318 = vsel %vm2673, %v4297, -inf
    %v4319 = vsel %vm2673, %v4298, -inf
    %v4320 = vmax.f32 %v4318, %v4319
    %v4321 = vsel %vm2673, %v4299, -inf
    %v4322 = vsel %vm2673, %v4300, -inf
    %v4323 = vmax.f32 %v4321, %v4322
    %v4324 = vsel %vm2673, %v4301, -inf
    %v4325 = vsel %vm2673, %v4302, -inf
    %v4326 = vmax.f32 %v4324, %v4325
    %v4335 = vrot.slane %v4305, 2
    %v4336 = vrot.slane %v4305, 4
    %v4337 = vrot.slane %v4305, 6
    %v4338 = vrot.slane %v4308, 2
    %v4339 = vrot.slane %v4308, 4
    %v4340 = vrot.slane %v4308, 6
    %v4341 = vrot.slane %v4311, 2
    %v4342 = vrot.slane %v4311, 4
    %v4343 = vrot.slane %v4311, 6
    %v4344 = vrot.slane %v4314, 2
    %v4345 = vrot.slane %v4314, 4
    %v4346 = vrot.slane %v4314, 6
    %v4347 = vrot.slane %v4317, 2
    %v4348 = vrot.slane %v4317, 4
    %v4349 = vrot.slane %v4317, 6
    %v4350 = vrot.slane %v4320, 2
    %v4351 = vrot.slane %v4320, 4
    %v4352 = vrot.slane %v4320, 6
    %v4353 = vrot.slane %v4323, 2
    %v4354 = vrot.slane %v4323, 4
    %v4355 = vrot.slane %v4323, 6
    %v4356 = vrot.slane %v4326, 2
    %v4357 = vrot.slane %v4326, 4
    %v4358 = vrot.slane %v4326, 6
    %vm4383 = vcmask 517120
    %v4384 = vsel %vm4383, %v4305, -inf
    %v4385 = vrot.slane %v4384, 4
    %v4386 = vmax.f32 %v4384, %v4385
    %v4387 = vrot.slane %v4386, 2
    %v4388 = vmax.f32 %v4386, %v4387
    %v4389 = vrot.slane %v4388, 1
    %v4390 = vmax.f32 %v4388, %v4389
    %v4391 = vsel %vm4383, %v4335, -inf
    %v4392 = vrot.slane %v4391, 4
    %v4393 = vmax.f32 %v4391, %v4392
    %v4394 = vrot.slane %v4393, 2
    %v4395 = vmax.f32 %v4393, %v4394
    %v4396 = vrot.slane %v4395, 1
    %v4397 = vmax.f32 %v4395, %v4396
    %v4398 = vsel %vm4383, %v4336, -inf
    %v4399 = vrot.slane %v4398, 4
    %v4400 = vmax.f32 %v4398, %v4399
    %v4401 = vrot.slane %v4400, 2
    %v4402 = vmax.f32 %v4400, %v4401
    %v4403 = vrot.slane %v4402, 1
    %v4404 = vmax.f32 %v4402, %v4403
    %v4405 = vsel %vm4383, %v4337, -inf
    %v4406 = vrot.slane %v4405, 4
    %v4407 = vmax.f32 %v4405, %v4406
    %v4408 = vrot.slane %v4407, 2
    %v4409 = vmax.f32 %v4407, %v4408
    %v4410 = vrot.slane %v4409, 1
    %v4411 = vmax.f32 %v4409, %v4410
    %v4412 = vsel %vm4383, %v4308, -inf
    %v4413 = vrot.slane %v4412, 4
    %v4414 = vmax.f32 %v4412, %v4413
    %v4415 = vrot.slane %v4414, 2
    %v4416 = vmax.f32 %v4414, %v4415
    %v4417 = vrot.slane %v4416, 1
    %v4418 = vmax.f32 %v4416, %v4417
    %v4419 = vsel %vm4383, %v4338, -inf
    %v4420 = vrot.slane %v4419, 4
    %v4421 = vmax.f32 %v4419, %v4420
    %v4422 = vrot.slane %v4421, 2
    %v4423 = vmax.f32 %v4421, %v4422
    %v4424 = vrot.slane %v4423, 1
    %v4425 = vmax.f32 %v4423, %v4424
    %v4426 = vsel %vm4383, %v4339, -inf
    %v4427 = vrot.slane %v4426, 4
    %v4428 = vmax.f32 %v4426, %v4427
    %v4429 = vrot.slane %v4428, 2
    %v4430 = vmax.f32 %v4428, %v4429
    %v4431 = vrot.slane %v4430, 1
    %v4432 = vmax.f32 %v4430, %v4431
    %v4433 = vsel %vm4383, %v4340, -inf
    %v4434 = vrot.slane %v4433, 4
    %v4435 = vmax.f32 %v4433, %v4434
    %v4436 = vrot.slane %v4435, 2
    %v4437 = vmax.f32 %v4435, %v4436
    %v4438 = vrot.slane %v4437, 1
    %v4439 = vmax.f32 %v4437, %v4438
    %v4440 = vsel %vm4383, %v4311, -inf
    %v4441 = vrot.slane %v4440, 4
    %v4442 = vmax.f32 %v4440, %v4441
    %v4443 = vrot.slane %v4442, 2
    %v4444 = vmax.f32 %v4442, %v4443
    %v4445 = vrot.slane %v4444, 1
    %v4446 = vmax.f32 %v4444, %v4445
    %v4447 = vsel %vm4383, %v4341, -inf
    %v4448 = vrot.slane %v4447, 4
    %v4449 = vmax.f32 %v4447, %v4448
    %v4450 = vrot.slane %v4449, 2
    %v4451 = vmax.f32 %v4449, %v4450
    %v4452 = vrot.slane %v4451, 1
    %v4453 = vmax.f32 %v4451, %v4452
    %v4454 = vsel %vm4383, %v4342, -inf
    %v4455 = vrot.slane %v4454, 4
    %v4456 = vmax.f32 %v4454, %v4455
    %v4457 = vrot.slane %v4456, 2
    %v4458 = vmax.f32 %v4456, %v4457
    %v4459 = vrot.slane %v4458, 1
    %v4460 = vmax.f32 %v4458, %v4459
    %v4461 = vsel %vm4383, %v4343, -inf
    %v4462 = vrot.slane %v4461, 4
    %v4463 = vmax.f32 %v4461, %v4462
    %v4464 = vrot.slane %v4463, 2
    %v4465 = vmax.f32 %v4463, %v4464
    %v4466 = vrot.slane %v4465, 1
    %v4467 = vmax.f32 %v4465, %v4466
    %v4468 = vsel %vm4383, %v4314, -inf
    %v4469 = vrot.slane %v4468, 4
    %v4470 = vmax.f32 %v4468, %v4469
    %v4471 = vrot.slane %v4470, 2
    %v4472 = vmax.f32 %v4470, %v4471
    %v4473 = vrot.slane %v4472, 1
    %v4474 = vmax.f32 %v4472, %v4473
    %v4475 = vsel %vm4383, %v4344, -inf
    %v4476 = vrot.slane %v4475, 4
    %v4477 = vmax.f32 %v4475, %v4476
    %v4478 = vrot.slane %v4477, 2
    %v4479 = vmax.f32 %v4477, %v4478
    %v4480 = vrot.slane %v4479, 1
    %v4481 = vmax.f32 %v4479, %v4480
    %v4482 = vsel %vm4383, %v4345, -inf
    %v4483 = vrot.slane %v4482, 4
    %v4484 = vmax.f32 %v4482, %v4483
    %v4485 = vrot.slane %v4484, 2
    %v4486 = vmax.f32 %v4484, %v4485
    %v4487 = vrot.slane %v4486, 1
    %v4488 = vmax.f32 %v4486, %v4487
    %v4489 = vsel %vm4383, %v4346, -inf
    %v4490 = vrot.slane %v4489, 4
    %v4491 = vmax.f32 %v4489, %v4490
    %v4492 = vrot.slane %v4491, 2
    %v4493 = vmax.f32 %v4491, %v4492
    %v4494 = vrot.slane %v4493, 1
    %v4495 = vmax.f32 %v4493, %v4494
    %v4496 = vsel %vm4383, %v4317, -inf
    %v4497 = vrot.slane %v4496, 4
    %v4498 = vmax.f32 %v4496, %v4497
    %v4499 = vrot.slane %v4498, 2
    %v4500 = vmax.f32 %v4498, %v4499
    %v4501 = vrot.slane %v4500, 1
    %v4502 = vmax.f32 %v4500, %v4501
    %v4503 = vsel %vm4383, %v4347, -inf
    %v4504 = vrot.slane %v4503, 4
    %v4505 = vmax.f32 %v4503, %v4504
    %v4506 = vrot.slane %v4505, 2
    %v4507 = vmax.f32 %v4505, %v4506
    %v4508 = vrot.slane %v4507, 1
    %v4509 = vmax.f32 %v4507, %v4508
    %v4510 = vsel %vm4383, %v4348, -inf
    %v4511 = vrot.slane %v4510, 4
    %v4512 = vmax.f32 %v4510, %v4511
    %v4513 = vrot.slane %v4512, 2
    %v4514 = vmax.f32 %v4512, %v4513
    %v4515 = vrot.slane %v4514, 1
    %v4516 = vmax.f32 %v4514, %v4515
    %v4517 = vsel %vm4383, %v4349, -inf
    %v4518 = vrot.slane %v4517, 4
    %v4519 = vmax.f32 %v4517, %v4518
    %v4520 = vrot.slane %v4519, 2
    %v4521 = vmax.f32 %v4519, %v4520
    %v4522 = vrot.slane %v4521, 1
    %v4523 = vmax.f32 %v4521, %v4522
    %v4524 = vsel %vm4383, %v4320, -inf
    %v4525 = vrot.slane %v4524, 4
    %v4526 = vmax.f32 %v4524, %v4525
    %v4527 = vrot.slane %v4526, 2
    %v4528 = vmax.f32 %v4526, %v4527
    %v4529 = vrot.slane %v4528, 1
    %v4530 = vmax.f32 %v4528, %v4529
    %v4531 = vsel %vm4383, %v4350, -inf
    %v4532 = vrot.slane %v4531, 4
    %v4533 = vmax.f32 %v4531, %v4532
    %v4534 = vrot.slane %v4533, 2
    %v4535 = vmax.f32 %v4533, %v4534
    %v4536 = vrot.slane %v4535, 1
    %v4537 = vmax.f32 %v4535, %v4536
    %v4538 = vsel %vm4383, %v4351, -inf
    %v4539 = vrot.slane %v4538, 4
    %v4540 = vmax.f32 %v4538, %v4539
    %v4541 = vrot.slane %v4540, 2
    %v4542 = vmax.f32 %v4540, %v4541
    %v4543 = vrot.slane %v4542, 1
    %v4544 = vmax.f32 %v4542, %v4543
    %v4545 = vsel %vm4383, %v4352, -inf
    %v4546 = vrot.slane %v4545, 4
    %v4547 = vmax.f32 %v4545, %v4546
    %v4548 = vrot.slane %v4547, 2
    %v4549 = vmax.f32 %v4547, %v4548
    %v4550 = vrot.slane %v4549, 1
    %v4551 = vmax.f32 %v4549, %v4550
    %v4552 = vsel %vm4383, %v4323, -inf
    %v4553 = vrot.slane %v4552, 4
    %v4554 = vmax.f32 %v4552, %v4553
    %v4555 = vrot.slane %v4554, 2
    %v4556 = vmax.f32 %v4554, %v4555
    %v4557 = vrot.slane %v4556, 1
    %v4558 = vmax.f32 %v4556, %v4557
    %v4559 = vsel %vm4383, %v4353, -inf
    %v4560 = vrot.slane %v4559, 4
    %v4561 = vmax.f32 %v4559, %v4560
    %v4562 = vrot.slane %v4561, 2
    %v4563 = vmax.f32 %v4561, %v4562
    %v4564 = vrot.slane %v4563, 1
    %v4565 = vmax.f32 %v4563, %v4564
    %v4566 = vsel %vm4383, %v4354, -inf
    %v4567 = vrot.slane %v4566, 4
    %v4568 = vmax.f32 %v4566, %v4567
    %v4569 = vrot.slane %v4568, 2
    %v4570 = vmax.f32 %v4568, %v4569
    %v4571 = vrot.slane %v4570, 1
    %v4572 = vmax.f32 %v4570, %v4571
    %v4573 = vsel %vm4383, %v4355, -inf
    %v4574 = vrot.slane %v4573, 4
    %v4575 = vmax.f32 %v4573, %v4574
    %v4576 = vrot.slane %v4575, 2
    %v4577 = vmax.f32 %v4575, %v4576
    %v4578 = vrot.slane %v4577, 1
    %v4579 = vmax.f32 %v4577, %v4578
    %v4580 = vsel %vm4383, %v4326, -inf
    %v4581 = vrot.slane %v4580, 4
    %v4582 = vmax.f32 %v4580, %v4581
    %v4583 = vrot.slane %v4582, 2
    %v4584 = vmax.f32 %v4582, %v4583
    %v4585 = vrot.slane %v4584, 1
    %v4586 = vmax.f32 %v4584, %v4585
    %v4587 = vsel %vm4383, %v4356, -inf
    %v4588 = vrot.slane %v4587, 4
    %v4589 = vmax.f32 %v4587, %v4588
    %v4590 = vrot.slane %v4589, 2
    %v4591 = vmax.f32 %v4589, %v4590
    %v4592 = vrot.slane %v4591, 1
    %v4593 = vmax.f32 %v4591, %v4592
    %v4594 = vsel %vm4383, %v4357, -inf
    %v4595 = vrot.slane %v4594, 4
    %v4596 = vmax.f32 %v4594, %v4595
    %v4597 = vrot.slane %v4596, 2
    %v4598 = vmax.f32 %v4596, %v4597
    %v4599 = vrot.slane %v4598, 1
    %v4600 = vmax.f32 %v4598, %v4599
    %v4601 = vsel %vm4383, %v4358, -inf
    %v4602 = vrot.slane %v4601, 4
    %v4603 = vmax.f32 %v4601, %v4602
    %v4604 = vrot.slane %v4603, 2
    %v4605 = vmax.f32 %v4603, %v4604
    %v4606 = vrot.slane %v4605, 1
    %v4607 = vmax.f32 %v4605, %v4606
    %vm4608 = vcmask 518144
    %4609 = vst.msk [vmem:[#allocation4] sm:$0x7] %vm4608, 0
    %4610 = vst.msk [vmem:[#allocation4 + $0x18] sm:$0x7] %vm4608, 0
    %s4611 = scalar_lea.vmem [#allocation4], 20
    %4612 = vst.msk [vmem:[%s4611] sm:$0x7] %vm4608, 0
    %4613 = vst.msk [vmem:[%s4611 + $0x18] sm:$0x7] %vm4608, 0
    %vm4614 = vcmask 516096
    %vm4615 = vmand %vm4614, %vm1833
    %v4616 = vld [vmem:[#allocation4] sm:$0x1]
    %v4617 = vsel %vm4615, 0, %v4616
    %4618 = vst [vmem:[#allocation4] sm:$0x1] %v4617
    %v4619 = vld [vmem:[#allocation4 + $0x4] sm:$0x1]
    %v4620 = vsel %vm4615, 0, %v4619
    %4621 = vst [vmem:[#allocation4 + $0x4] sm:$0x1] %v4620
    %v4622 = vld [vmem:[#allocation4 + $0x8] sm:$0x1]
    %v4623 = vsel %vm4615, 0, %v4622
    %4624 = vst [vmem:[#allocation4 + $0x8] sm:$0x1] %v4623
    %v4625 = vld [vmem:[#allocation4 + $0xc] sm:$0x1]
    %v4626 = vsel %vm4615, 0, %v4625
    %4627 = vst [vmem:[#allocation4 + $0xc] sm:$0x1] %v4626
    %v4628 = vld [vmem:[#allocation4 + $0x10] sm:$0x1]
    %v4629 = vsel %vm4615, 0, %v4628
    %4630 = vst [vmem:[#allocation4 + $0x10] sm:$0x1] %v4629
    %v4631 = vld [vmem:[#allocation4 + $0x14] sm:$0x1]
    %v4632 = vsel %vm4615, 0, %v4631
    %4633 = vst [vmem:[#allocation4 + $0x14] sm:$0x1] %v4632
    %v4634 = vld [vmem:[#allocation4 + $0x18] sm:$0x1]
    %v4635 = vsel %vm4615, 0, %v4634
    %4636 = vst [vmem:[#allocation4 + $0x18] sm:$0x1] %v4635
    %v4637 = vld [vmem:[#allocation4 + $0x1c] sm:$0x1]
    %v4638 = vsel %vm4615, 0, %v4637
    %4639 = vst [vmem:[#allocation4 + $0x1c] sm:$0x1] %v4638
    %v4640 = vld [vmem:[#allocation4 + $0x20] sm:$0x1]
    %v4641 = vsel %vm4615, 0, %v4640
    %4642 = vst [vmem:[#allocation4 + $0x20] sm:$0x1] %v4641
    %v4643 = vld [vmem:[#allocation4 + $0x24] sm:$0x1]
    %v4644 = vsel %vm4615, 0, %v4643
    %4645 = vst [vmem:[#allocation4 + $0x24] sm:$0x1] %v4644
    %v4646 = vld [vmem:[#allocation4 + $0x28] sm:$0x1]
    %v4647 = vsel %vm4615, 0, %v4646
    %4648 = vst [vmem:[#allocation4 + $0x28] sm:$0x1] %v4647
    %v4649 = vld [vmem:[#allocation4 + $0x2c] sm:$0x1]
    %v4650 = vsel %vm4615, 0, %v4649
    %4651 = vst [vmem:[#allocation4 + $0x2c] sm:$0x1] %v4650
    %vm4652 = vcmask 518146
    %vm4653 = vsmask.f32 7946
    %vm4654 = vmand %vm4652, %vm4653
    %v4655 = vld [vmem:[#allocation4] sm:$0x4]
    %v4656 = vsel %vm4654, 0, %v4655
    %4657 = vst [vmem:[#allocation4] sm:$0x4] %v4656
    %v4658 = vld [vmem:[#allocation4 + $0x4] sm:$0x4]
    %v4659 = vsel %vm4654, 0, %v4658
    %4660 = vst [vmem:[#allocation4 + $0x4] sm:$0x4] %v4659
    %v4661 = vld [vmem:[#allocation4 + $0x8] sm:$0x4]
    %v4662 = vsel %vm4654, 0, %v4661
    %4663 = vst [vmem:[#allocation4 + $0x8] sm:$0x4] %v4662
    %v4664 = vld [vmem:[#allocation4 + $0xc] sm:$0x4]
    %v4665 = vsel %vm4654, 0, %v4664
    %4666 = vst [vmem:[#allocation4 + $0xc] sm:$0x4] %v4665
    %v4667 = vld [vmem:[#allocation4 + $0x10] sm:$0x4]
    %v4668 = vsel %vm4654, 0, %v4667
    %4669 = vst [vmem:[#allocation4 + $0x10] sm:$0x4] %v4668
    %v4670 = vld [vmem:[#allocation4 + $0x14] sm:$0x4]
    %v4671 = vsel %vm4654, 0, %v4670
    %4672 = vst [vmem:[#allocation4 + $0x14] sm:$0x4] %v4671
    %v4673 = vld [vmem:[#allocation4 + $0x18] sm:$0x4]
    %v4674 = vsel %vm4654, 0, %v4673
    %4675 = vst [vmem:[#allocation4 + $0x18] sm:$0x4] %v4674
    %v4676 = vld [vmem:[#allocation4 + $0x1c] sm:$0x4]
    %v4677 = vsel %vm4654, 0, %v4676
    %4678 = vst [vmem:[#allocation4 + $0x1c] sm:$0x4] %v4677
    %v4679 = vld [vmem:[#allocation4 + $0x20] sm:$0x4]
    %v4680 = vsel %vm4654, 0, %v4679
    %4681 = vst [vmem:[#allocation4 + $0x20] sm:$0x4] %v4680
    %v4682 = vld [vmem:[#allocation4 + $0x24] sm:$0x4]
    %v4683 = vsel %vm4654, 0, %v4682
    %4684 = vst [vmem:[#allocation4 + $0x24] sm:$0x4] %v4683
    %v4685 = vld [vmem:[#allocation4 + $0x28] sm:$0x4]
    %v4686 = vsel %vm4654, 0, %v4685
    %4687 = vst [vmem:[#allocation4 + $0x28] sm:$0x4] %v4686
    %v4688 = vld [vmem:[#allocation4 + $0x2c] sm:$0x4]
    %v4689 = vsel %vm4654, 0, %v4688
    %4690 = vst [vmem:[#allocation4 + $0x2c] sm:$0x4] %v4689
    %v4691 = vpack.c.bf16 %v4390, %v4390
    %v4692 = vpack.c.bf16 %v4397, %v4397
    %v4693 = vpack.c.bf16 %v4404, %v4404
    %v4694 = vpack.c.bf16 %v4411, %v4411
    %v4695 = vpack.c.bf16 %v4418, %v4418
    %v4696 = vpack.c.bf16 %v4425, %v4425
    %v4697 = vpack.c.bf16 %v4432, %v4432
    %v4698 = vpack.c.bf16 %v4439, %v4439
    %v4699 = vpack.c.bf16 %v4446, %v4446
    %v4700 = vpack.c.bf16 %v4453, %v4453
    %v4701 = vpack.c.bf16 %v4460, %v4460
    %v4702 = vpack.c.bf16 %v4467, %v4467
    %v4703 = vpack.c.bf16 %v4474, %v4474
    %v4704 = vpack.c.bf16 %v4481, %v4481
    %v4705 = vpack.c.bf16 %v4488, %v4488
    %v4706 = vpack.c.bf16 %v4495, %v4495
    %v4707 = vpack.c.bf16 %v4502, %v4502
    %v4708 = vpack.c.bf16 %v4509, %v4509
    %v4709 = vpack.c.bf16 %v4516, %v4516
    %v4710 = vpack.c.bf16 %v4523, %v4523
    %v4711 = vpack.c.bf16 %v4530, %v4530
    %v4712 = vpack.c.bf16 %v4537, %v4537
    %v4713 = vpack.c.bf16 %v4544, %v4544
    %v4714 = vpack.c.bf16 %v4551, %v4551
    %v4715 = vpack.c.bf16 %v4558, %v4558
    %v4716 = vpack.c.bf16 %v4565, %v4565
    %v4717 = vpack.c.bf16 %v4572, %v4572
    %v4718 = vpack.c.bf16 %v4579, %v4579
    %v4719 = vpack.c.bf16 %v4586, %v4586
    %v4720 = vpack.c.bf16 %v4593, %v4593
    %v4721 = vpack.c.bf16 %v4600, %v4600
    %v4722 = vpack.c.bf16 %v4607, %v4607
    %v4755 = vunpack.c.l.b16 %v4691
    %v4756 = vunpack.c.l.b16 %v4692
    %v4757 = vunpack.c.l.b16 %v4693
    %v4758 = vunpack.c.l.b16 %v4694
    %v4759 = vunpack.c.l.b16 %v4695
    %v4760 = vunpack.c.l.b16 %v4696
    %v4761 = vunpack.c.l.b16 %v4697
    %v4762 = vunpack.c.l.b16 %v4698
    %v4763 = vunpack.c.l.b16 %v4699
    %v4764 = vunpack.c.l.b16 %v4700
    %v4765 = vunpack.c.l.b16 %v4701
    %v4766 = vunpack.c.l.b16 %v4702
    %v4767 = vunpack.c.l.b16 %v4703
    %v4768 = vunpack.c.l.b16 %v4704
    %v4769 = vunpack.c.l.b16 %v4705
    %v4770 = vunpack.c.l.b16 %v4706
    %v4771 = vunpack.c.l.b16 %v4707
    %v4772 = vunpack.c.l.b16 %v4708
    %v4773 = vunpack.c.l.b16 %v4709
    %v4774 = vunpack.c.l.b16 %v4710
    %v4775 = vunpack.c.l.b16 %v4711
    %v4776 = vunpack.c.l.b16 %v4712
    %v4777 = vunpack.c.l.b16 %v4713
    %v4778 = vunpack.c.l.b16 %v4714
    %v4779 = vunpack.c.l.b16 %v4715
    %v4780 = vunpack.c.l.b16 %v4716
    %v4781 = vunpack.c.l.b16 %v4717
    %v4782 = vunpack.c.l.b16 %v4718
    %v4783 = vunpack.c.l.b16 %v4719
    %v4784 = vunpack.c.l.b16 %v4720
    %v4785 = vunpack.c.l.b16 %v4721
    %v4786 = vunpack.c.l.b16 %v4722
    %v4787 = vsel %vm2341, %v4756, %v4755
    %v4788 = vsel %vm2343, %v4757, %v4787
    %v4789 = vsel %vm2345, %v4758, %v4788
    %v4790 = vsel %vm2341, %v4760, %v4759
    %v4791 = vsel %vm2343, %v4761, %v4790
    %v4792 = vsel %vm2345, %v4762, %v4791
    %v4793 = vsel %vm2341, %v4764, %v4763
    %v4794 = vsel %vm2343, %v4765, %v4793
    %v4795 = vsel %vm2345, %v4766, %v4794
    %v4796 = vsel %vm2341, %v4768, %v4767
    %v4797 = vsel %vm2343, %v4769, %v4796
    %v4798 = vsel %vm2345, %v4770, %v4797
    %v4799 = vsel %vm2341, %v4772, %v4771
    %v4800 = vsel %vm2343, %v4773, %v4799
    %v4801 = vsel %vm2345, %v4774, %v4800
    %v4802 = vsel %vm2341, %v4776, %v4775
    %v4803 = vsel %vm2343, %v4777, %v4802
    %v4804 = vsel %vm2345, %v4778, %v4803
    %v4805 = vsel %vm2341, %v4780, %v4779
    %v4806 = vsel %vm2343, %v4781, %v4805
    %v4807 = vsel %vm2345, %v4782, %v4806
    %v4808 = vsel %vm2341, %v4784, %v4783
    %v4809 = vsel %vm2343, %v4785, %v4808
    %v4810 = vsel %vm2345, %v4786, %v4809
    %v4811 = vpack.c.b16 %v4789, %v4789
    %v4812 = vpack.c.b16 %v4792, %v4792
    %v4813 = vpack.c.b16 %v4795, %v4795
    %v4814 = vpack.c.b16 %v4798, %v4798
    %v4815 = vpack.c.b16 %v4801, %v4801
    %v4816 = vpack.c.b16 %v4804, %v4804
    %v4817 = vpack.c.b16 %v4807, %v4807
    %v4818 = vpack.c.b16 %v4810, %v4810
    %s4827 = scalar_lea.vmem [#allocation4], 4
    %vm4828 = vcmask 518144
    %vm4829 = vsmask.f32 2306
    %vm4830 = vmand %vm4828, %vm4829
    %v4831 = vld [vmem:[%s4827] sm:$0x7]
    %v4832 = vsel %vm4830, %v4811, %v4831
    %4833 = vst [vmem:[%s4827] sm:$0x7] %v4832
    %v4834 = vld [vmem:[%s4827 + $0x4] sm:$0x7]
    %v4835 = vsel %vm4830, %v4812, %v4834
    %4836 = vst [vmem:[%s4827 + $0x4] sm:$0x7] %v4835
    %v4837 = vld [vmem:[%s4827 + $0x8] sm:$0x7]
    %v4838 = vsel %vm4830, %v4813, %v4837
    %4839 = vst [vmem:[%s4827 + $0x8] sm:$0x7] %v4838
    %v4840 = vld [vmem:[%s4827 + $0xc] sm:$0x7]
    %v4841 = vsel %vm4830, %v4814, %v4840
    %4842 = vst [vmem:[%s4827 + $0xc] sm:$0x7] %v4841
    %v4843 = vld [vmem:[%s4827 + $0x18] sm:$0x7]
    %v4844 = vsel %vm4830, %v4815, %v4843
    %4845 = vst [vmem:[%s4827 + $0x18] sm:$0x7] %v4844
    %v4846 = vld [vmem:[%s4827 + $0x1c] sm:$0x7]
    %v4847 = vsel %vm4830, %v4816, %v4846
    %4848 = vst [vmem:[%s4827 + $0x1c] sm:$0x7] %v4847
    %v4849 = vld [vmem:[%s4827 + $0x20] sm:$0x7]
    %v4850 = vsel %vm4830, %v4817, %v4849
    %4851 = vst [vmem:[%s4827 + $0x20] sm:$0x7] %v4850
    %v4852 = vld [vmem:[%s4827 + $0x24] sm:$0x7]
    %v4853 = vsel %vm4830, %v4818, %v4852
    %4854 = vst [vmem:[%s4827 + $0x24] sm:$0x7] %v4853
    %v4855 = vld [vmem:[#allocation4] sm:$0x3]
    %v4856 = vld [vmem:[#allocation4 + $0x4] sm:$0x3]
    %v4857 = vld [vmem:[#allocation4 + $0x8] sm:$0x3]
    %v4858 = vld [vmem:[#allocation4 + $0xc] sm:$0x3]
    %v4859 = vld [vmem:[#allocation4 + $0x10] sm:$0x3]
    %v4860 = vld [vmem:[#allocation4 + $0x14] sm:$0x3]
    %4862 = vst [vmem:[#allocation1] ss:$4 sm:$0xff] %v4855
    %s4864 = scalar_lea.vmem [#allocation1], 1
    %4865 = vst [vmem:[%s4864] ss:$4 sm:$0xff] %v4856
    %s4867 = scalar_lea.vmem [#allocation1], 2
    %4868 = vst [vmem:[%s4867] ss:$4 sm:$0xff] %v4857
    %s4870 = scalar_lea.vmem [#allocation1], 3
    %4871 = vst [vmem:[%s4870] ss:$4 sm:$0xff] %v4858
    %v4872 = vld.sshfl [vmem:[#allocation1] sm:$0xff pattern:$0x73625140]
    %4873 = vst [vmem:[#allocation1] ss:$4 sm:$0xff] %v4856
    %s4874 = scalar_lea.vmem [#allocation1], 1
    %4875 = vst [vmem:[%s4874] ss:$4 sm:$0xff] %v4857
    %s4876 = scalar_lea.vmem [#allocation1], 2
    %4877 = vst [vmem:[%s4876] ss:$4 sm:$0xff] %v4858
    %s4879 = scalar_lea.vmem [#allocation1], 3
    %4880 = vst [vmem:[%s4879] ss:$4 sm:$0xff] %v4859
    %v4881 = vld.sshfl [vmem:[#allocation1] sm:$0xff pattern:$0x73625140]
    %4883 = vrot.lane.b32.xlu0 %v4881, 64
    %v4884 = vpop.permute.xlu0 %4883
    %4885 = vst [vmem:[#allocation1] ss:$4 sm:$0xff] %v4857
    %s4886 = scalar_lea.vmem [#allocation1], 1
    %4887 = vst [vmem:[%s4886] ss:$4 sm:$0xff] %v4858
    %s4888 = scalar_lea.vmem [#allocation1], 2
    %4889 = vst [vmem:[%s4888] ss:$4 sm:$0xff] %v4859
    %s4891 = scalar_lea.vmem [#allocation1], 3
    %4892 = vst [vmem:[%s4891] ss:$4 sm:$0xff] %v4860
    %v4893 = vld.sshfl [vmem:[#allocation1] sm:$0xff pattern:$0x73625140]
    %v4896 = vsel %vm2673, %v4872, %v4884
    %v4898 = vunpack.c.l.b16 %v4896
    %v4899 = vunpack.c.l.b16 %v4893
    %v4900 = vunpack.c.h.b16 %v4896
    %v4901 = vunpack.c.h.b16 %v4893
    %v4902 = vpack.c.b16 %v4899, %v4898
    %v4903 = vpack.c.b16 %v4901, %v4900
    %vm4906 = vcmask 1043456
    %vm4907 = vmor %vm2999, %vm4906
    %4908 = vst.msk [vmem:[#allocation5] sm:$0xff] %vm4907, %v4902
    %4909 = vst.msk [vmem:[#allocation5 + $0x14] sm:$0xff] %vm4907, %v4903
    %v4910 = vld [vmem:[#allocation4] sm:$0x7]
    %v4911 = vld [vmem:[#allocation4 + $0x4] sm:$0x7]
    %v4912 = vld [vmem:[#allocation4 + $0x8] sm:$0x7]
    %v4913 = vld [vmem:[#allocation4 + $0xc] sm:$0x7]
    %v4914 = vld [vmem:[#allocation4 + $0x10] sm:$0x7]
    %v4915 = vld [vmem:[#allocation4 + $0x14] sm:$0x7]
    %v4922 = vrot.slane %v4910, 2
    %v4923 = vrot.slane %v4911, 2
    %v4924 = vrot.slane %v4912, 2
    %v4925 = vrot.slane %v4913, 2
    %v4926 = vrot.slane %v4914, 2
    %v4927 = vrot.slane %v4915, 2
    %vm4928 = vcmask 1041408
    %v4931 = vsel %vm4928, %v4910, %v4922
    %vm4932 = vcmask 1043458
    %v4933 = vsel %vm4932, %v4910, %v4922
    %v4935 = vrot.slane %v4933, 2
    %v4938 = vsel %vm4928, %v4911, %v4923
    %v4939 = vsel %vm4932, %v4911, %v4923
    %v4941 = vrot.slane %v4939, 2
    %v4944 = vsel %vm4928, %v4912, %v4924
    %v4945 = vsel %vm4932, %v4912, %v4924
    %v4947 = vrot.slane %v4945, 2
    %v4950 = vsel %vm4928, %v4913, %v4925
    %v4951 = vsel %vm4932, %v4913, %v4925
    %v4953 = vrot.slane %v4951, 2
    %v4956 = vsel %vm4928, %v4914, %v4926
    %v4957 = vsel %vm4932, %v4914, %v4926
    %v4959 = vrot.slane %v4957, 2
    %v4962 = vsel %vm4928, %v4915, %v4927
    %v4963 = vsel %vm4932, %v4915, %v4927
    %v4965 = vrot.slane %v4963, 2
    %vm4966 = vsmask.f32 1280
    %vm4967 = vsmask.f32 3336
    %vm4968 = vmor %vm4966, %vm4967
    %vm4969 = vsmask.f32 5392
    %vm4970 = vmor %vm4968, %vm4969
    %vm4971 = vsmask.f32 7448
    %vm4972 = vmor %vm4970, %vm4971
    %v4973 = vshrl.u32 %v4931, 16
    %v4975 = vrot.slane %v4973, 6
    %v4976 = vshll.u32 %v4931, 16
    %v4978 = vrot.slane %v4976, 7
    %v4979 = vor.u32 %v4975, %v4978
    %v4980 = vrot.slane %v4979, 2
    %v4982 = vshll.u32 %v4935, 16
    %v4984 = vrot.slane %v4982, 7
    %v4985 = vsel %vm4972, %v4980, %v4984
    %v4986 = vshrl.u32 %v4938, 16
    %v4988 = vrot.slane %v4986, 6
    %v4989 = vshll.u32 %v4938, 16
    %v4991 = vrot.slane %v4989, 7
    %v4992 = vor.u32 %v4988, %v4991
    %v4993 = vrot.slane %v4992, 2
    %v4995 = vshll.u32 %v4941, 16
    %v4997 = vrot.slane %v4995, 7
    %v4998 = vsel %vm4972, %v4993, %v4997
    %v4999 = vshrl.u32 %v4944, 16
    %v5001 = vrot.slane %v4999, 6
    %v5002 = vshll.u32 %v4944, 16
    %v5004 = vrot.slane %v5002, 7
    %v5005 = vor.u32 %v5001, %v5004
    %v5006 = vrot.slane %v5005, 2
    %v5008 = vshll.u32 %v4947, 16
    %v5010 = vrot.slane %v5008, 7
    %v5011 = vsel %vm4972, %v5006, %v5010
    %v5012 = vshrl.u32 %v4950, 16
    %v5014 = vrot.slane %v5012, 6
    %v5015 = vshll.u32 %v4950, 16
    %v5017 = vrot.slane %v5015, 7
    %v5018 = vor.u32 %v5014, %v5017
    %v5019 = vrot.slane %v5018, 2
    %v5021 = vshll.u32 %v4953, 16
    %v5023 = vrot.slane %v5021, 7
    %v5024 = vsel %vm4972, %v5019, %v5023
    %v5025 = vshrl.u32 %v4956, 16
    %v5027 = vrot.slane %v5025, 6
    %v5028 = vshll.u32 %v4956, 16
    %v5030 = vrot.slane %v5028, 7
    %v5031 = vor.u32 %v5027, %v5030
    %v5032 = vrot.slane %v5031, 2
    %v5034 = vshll.u32 %v4959, 16
    %v5036 = vrot.slane %v5034, 7
    %v5037 = vsel %vm4972, %v5032, %v5036
    %v5038 = vshrl.u32 %v4962, 16
    %v5040 = vrot.slane %v5038, 6
    %v5041 = vshll.u32 %v4962, 16
    %v5043 = vrot.slane %v5041, 7
    %v5044 = vor.u32 %v5040, %v5043
    %v5045 = vrot.slane %v5044, 2
    %v5047 = vshll.u32 %v4965, 16
    %v5049 = vrot.slane %v5047, 7
    %v5050 = vsel %vm4972, %v5045, %v5049
    %5052 = vst [vmem:[#allocation1] ss:$4 sm:$0xff] %v4985
    %s5054 = scalar_lea.vmem [#allocation1], 1
    %5055 = vst [vmem:[%s5054] ss:$4 sm:$0xff] %v4998
    %s5057 = scalar_lea.vmem [#allocation1], 2
    %5058 = vst [vmem:[%s5057] ss:$4 sm:$0xff] %v5011
    %s5060 = scalar_lea.vmem [#allocation1], 3
    %5061 = vst [vmem:[%s5060] ss:$4 sm:$0xff] %v5024
    %v5062 = vld.sshfl [vmem:[#allocation1] sm:$0xff pattern:$0x73625140]
    %5063 = vst [vmem:[#allocation1] ss:$4 sm:$0xff] %v4998
    %s5064 = scalar_lea.vmem [#allocation1], 1
    %5065 = vst [vmem:[%s5064] ss:$4 sm:$0xff] %v5011
    %s5066 = scalar_lea.vmem [#allocation1], 2
    %5067 = vst [vmem:[%s5066] ss:$4 sm:$0xff] %v5024
    %s5069 = scalar_lea.vmem [#allocation1], 3
    %5070 = vst [vmem:[%s5069] ss:$4 sm:$0xff] %v5037
    %v5071 = vld.sshfl [vmem:[#allocation1] sm:$0xff pattern:$0x73625140]
    %5073 = vrot.lane.b32.xlu0 %v5071, 64
    %v5074 = vpop.permute.xlu0 %5073
    %5075 = vst [vmem:[#allocation1] ss:$4 sm:$0xff] %v5011
    %s5076 = scalar_lea.vmem [#allocation1], 1
    %5077 = vst [vmem:[%s5076] ss:$4 sm:$0xff] %v5024
    %s5078 = scalar_lea.vmem [#allocation1], 2
    %5079 = vst [vmem:[%s5078] ss:$4 sm:$0xff] %v5037
    %s5081 = scalar_lea.vmem [#allocation1], 3
    %5082 = vst [vmem:[%s5081] ss:$4 sm:$0xff] %v5050
    %v5083 = vld.sshfl [vmem:[#allocation1] sm:$0xff pattern:$0x73625140]
    %v5086 = vsel %vm2673, %v5062, %v5074
    %v5088 = vunpack.c.l.b16 %v5086
    %v5089 = vunpack.c.l.b16 %v5083
    %v5090 = vunpack.c.h.b16 %v5086
    %v5091 = vunpack.c.h.b16 %v5083
    %v5092 = vpack.c.b16 %v5089, %v5088
    %v5093 = vpack.c.b16 %v5091, %v5090
    %5094 = vrot.lane.b32.xlu0 %v5092, 64
    %v5095 = vpop.permute.xlu0 %5094
    %5096 = vrot.lane.b32.xlu0 %v5093, 64
    %v5097 = vpop.permute.xlu0 %5096
    %v5098 = vrot.slane %v5095, 4
    %v5099 = vrot.slane %v5097, 4
    %v5100 = vsel %vm3191, %v5098, %v5095
    %v5101 = vsel %vm3191, %v5099, %v5097
    %vm5104 = vcmask 1047556
    %vm5105 = vmor %vm5104, %vm3208
    %5106 = vst.msk [vmem:[#allocation5 + $0x4] sm:$0xff] %vm5105, %v5100
    %5107 = vst.msk [vmem:[#allocation5 + $0x18] sm:$0xff] %vm5105, %v5101
    %v5108 = vld [vmem:[#allocation4] sm:$0x6]
    %v5109 = vld [vmem:[#allocation4 + $0x4] sm:$0x6]
    %v5110 = vld [vmem:[#allocation4 + $0x8] sm:$0x6]
    %v5111 = vld [vmem:[#allocation4 + $0xc] sm:$0x6]
    %v5112 = vld [vmem:[#allocation4 + $0x10] sm:$0x6]
    %v5113 = vld [vmem:[#allocation4 + $0x14] sm:$0x6]
    %v5120 = vrot.slane %v5108, 2
    %v5121 = vrot.slane %v5109, 2
    %v5122 = vrot.slane %v5110, 2
    %v5123 = vrot.slane %v5111, 2
    %v5124 = vrot.slane %v5112, 2
    %v5125 = vrot.slane %v5113, 2
    %v5128 = vsel %vm4928, %v5108, %v5120
    %v5130 = vsel %vm4932, %v5108, %v5120
    %v5132 = vrot.slane %v5130, 2
    %v5135 = vsel %vm4928, %v5109, %v5121
    %v5137 = vsel %vm4932, %v5109, %v5121
    %v5139 = vrot.slane %v5137, 2
    %v5142 = vsel %vm4928, %v5110, %v5122
    %v5144 = vsel %vm4932, %v5110, %v5122
    %v5146 = vrot.slane %v5144, 2
    %v5149 = vsel %vm4928, %v5111, %v5123
    %v5151 = vsel %vm4932, %v5111, %v5123
    %v5153 = vrot.slane %v5151, 2
    %v5156 = vsel %vm4928, %v5112, %v5124
    %v5158 = vsel %vm4932, %v5112, %v5124
    %v5160 = vrot.slane %v5158, 2
    %v5163 = vsel %vm4928, %v5113, %v5125
    %v5165 = vsel %vm4932, %v5113, %v5125
    %v5167 = vrot.slane %v5165, 2
    %vm5168 = vcmask 1040384
    %vm5169 = vcmask 1042434
    %vm5170 = vmor %vm5168, %vm5169
    %vm5171 = vcmask 1044484
    %vm5172 = vmor %vm5170, %vm5171
    %vm5173 = vcmask 1046534
    %vm5174 = vmor %vm5172, %vm5173
    %v5175 = vrot.slane %v5128, 7
    %v5176 = vrot.slane %v5175, 2
    %v5177 = vrot.slane %v5132, 7
    %v5178 = vsel %vm5174, %v5176, %v5177
    %v5179 = vrot.slane %v5135, 7
    %v5180 = vrot.slane %v5179, 2
    %v5181 = vrot.slane %v5139, 7
    %v5182 = vsel %vm5174, %v5180, %v5181
    %v5183 = vrot.slane %v5142, 7
    %v5184 = vrot.slane %v5183, 2
    %v5185 = vrot.slane %v5146, 7
    %v5186 = vsel %vm5174, %v5184, %v5185
    %v5187 = vrot.slane %v5149, 7
    %v5188 = vrot.slane %v5187, 2
    %v5189 = vrot.slane %v5153, 7
    %v5190 = vsel %vm5174, %v5188, %v5189
    %v5191 = vrot.slane %v5156, 7
    %v5192 = vrot.slane %v5191, 2
    %v5193 = vrot.slane %v5160, 7
    %v5194 = vsel %vm5174, %v5192, %v5193
    %v5195 = vrot.slane %v5163, 7
    %v5196 = vrot.slane %v5195, 2
    %v5197 = vrot.slane %v5167, 7
    %v5198 = vsel %vm5174, %v5196, %v5197
    %5200 = vst [vmem:[#allocation1] ss:$4 sm:$0xff] %v5178
    %s5202 = scalar_lea.vmem [#allocation1], 1
    %5203 = vst [vmem:[%s5202] ss:$4 sm:$0xff] %v5182
    %s5205 = scalar_lea.vmem [#allocation1], 2
    %5206 = vst [vmem:[%s5205] ss:$4 sm:$0xff] %v5186
    %s5208 = scalar_lea.vmem [#allocation1], 3
    %5209 = vst [vmem:[%s5208] ss:$4 sm:$0xff] %v5190
    %v5210 = vld.sshfl [vmem:[#allocation1] sm:$0xff pattern:$0x73625140]
    %5211 = vst [vmem:[#allocation1] ss:$4 sm:$0xff] %v5182
    %s5212 = scalar_lea.vmem [#allocation1], 1
    %5213 = vst [vmem:[%s5212] ss:$4 sm:$0xff] %v5186
    %s5214 = scalar_lea.vmem [#allocation1], 2
    %5215 = vst [vmem:[%s5214] ss:$4 sm:$0xff] %v5190
    %s5217 = scalar_lea.vmem [#allocation1], 3
    %5218 = vst [vmem:[%s5217] ss:$4 sm:$0xff] %v5194
    %v5219 = vld.sshfl [vmem:[#allocation1] sm:$0xff pattern:$0x73625140]
    %5221 = vrot.lane.b32.xlu0 %v5219, 64
    %v5222 = vpop.permute.xlu0 %5221
    %5223 = vst [vmem:[#allocation1] ss:$4 sm:$0xff] %v5186
    %s5224 = scalar_lea.vmem [#allocation1], 1
    %5225 = vst [vmem:[%s5224] ss:$4 sm:$0xff] %v5190
    %s5226 = scalar_lea.vmem [#allocation1], 2
    %5227 = vst [vmem:[%s5226] ss:$4 sm:$0xff] %v5194
    %s5229 = scalar_lea.vmem [#allocation1], 3
    %5230 = vst [vmem:[%s5229] ss:$4 sm:$0xff] %v5198
    %v5231 = vld.sshfl [vmem:[#allocation1] sm:$0xff pattern:$0x73625140]
    %v5234 = vsel %vm2673, %v5210, %v5222
    %v5236 = vunpack.c.l.b16 %v5234
    %v5237 = vunpack.c.l.b16 %v5231
    %v5238 = vunpack.c.h.b16 %v5234
    %v5239 = vunpack.c.h.b16 %v5231
    %v5240 = vpack.c.b16 %v5237, %v5236
    %v5241 = vpack.c.b16 %v5239, %v5238
    %5244 = vst.msk [vmem:[#allocation5 + $0xc] sm:$0xff] %vm4907, %v5240
    %5245 = vst.msk [vmem:[#allocation5 + $0x20] sm:$0xff] %vm4907, %v5241
    %s5246 = scalar_lea.vmem [#allocation4], 24
    %v5247 = vld [vmem:[%s5246] sm:$0x3]
    %v5248 = vld [vmem:[%s5246 + $0x4] sm:$0x3]
    %v5249 = vld [vmem:[%s5246 + $0x8] sm:$0x3]
    %v5250 = vld [vmem:[%s5246 + $0xc] sm:$0x3]
    %v5251 = vld [vmem:[%s5246 + $0x10] sm:$0x3]
    %v5252 = vld [vmem:[%s5246 + $0x14] sm:$0x3]
    %5254 = vst [vmem:[#allocation1] ss:$4 sm:$0xff] %v5247
    %s5256 = scalar_lea.vmem [#allocation1], 1
    %5257 = vst [vmem:[%s5256] ss:$4 sm:$0xff] %v5248
    %s5259 = scalar_lea.vmem [#allocation1], 2
    %5260 = vst [vmem:[%s5259] ss:$4 sm:$0xff] %v5249
    %s5262 = scalar_lea.vmem [#allocation1], 3
    %5263 = vst [vmem:[%s5262] ss:$4 sm:$0xff] %v5250
    %v5264 = vld.sshfl [vmem:[#allocation1] sm:$0xff pattern:$0x73625140]
    %5265 = vst [vmem:[#allocation1] ss:$4 sm:$0xff] %v5248
    %s5266 = scalar_lea.vmem [#allocation1], 1
    %5267 = vst [vmem:[%s5266] ss:$4 sm:$0xff] %v5249
    %s5268 = scalar_lea.vmem [#allocation1], 2
    %5269 = vst [vmem:[%s5268] ss:$4 sm:$0xff] %v5250
    %s5271 = scalar_lea.vmem [#allocation1], 3
    %5272 = vst [vmem:[%s5271] ss:$4 sm:$0xff] %v5251
    %v5273 = vld.sshfl [vmem:[#allocation1] sm:$0xff pattern:$0x73625140]
    %5275 = vrot.lane.b32.xlu0 %v5273, 64
    %v5276 = vpop.permute.xlu0 %5275
    %5277 = vst [vmem:[#allocation1] ss:$4 sm:$0xff] %v5249
    %s5278 = scalar_lea.vmem [#allocation1], 1
    %5279 = vst [vmem:[%s5278] ss:$4 sm:$0xff] %v5250
    %s5280 = scalar_lea.vmem [#allocation1], 2
    %5281 = vst [vmem:[%s5280] ss:$4 sm:$0xff] %v5251
    %s5283 = scalar_lea.vmem [#allocation1], 3
    %5284 = vst [vmem:[%s5283] ss:$4 sm:$0xff] %v5252
    %v5285 = vld.sshfl [vmem:[#allocation1] sm:$0xff pattern:$0x73625140]
    %v5288 = vsel %vm2673, %v5264, %v5276
    %v5290 = vunpack.c.l.b16 %v5288
    %v5291 = vunpack.c.l.b16 %v5285
    %v5292 = vunpack.c.h.b16 %v5288
    %v5293 = vunpack.c.h.b16 %v5285
    %v5294 = vpack.c.b16 %v5291, %v5290
    %v5295 = vpack.c.b16 %v5293, %v5292
    %5298 = vst.msk [vmem:[#allocation5 + $0x28] sm:$0xff] %vm4907, %v5294
    %5299 = vst.msk [vmem:[#allocation5 + $0x3c] sm:$0xff] %vm4907, %v5295
    %v5300 = vld [vmem:[%s5246] sm:$0x7]
    %v5301 = vld [vmem:[%s5246 + $0x4] sm:$0x7]
    %v5302 = vld [vmem:[%s5246 + $0x8] sm:$0x7]
    %v5303 = vld [vmem:[%s5246 + $0xc] sm:$0x7]
    %v5304 = vld [vmem:[%s5246 + $0x10] sm:$0x7]
    %v5305 = vld [vmem:[%s5246 + $0x14] sm:$0x7]
    %v5312 = vrot.slane %v5300, 2
    %v5313 = vrot.slane %v5301, 2
    %v5314 = vrot.slane %v5302, 2
    %v5315 = vrot.slane %v5303, 2
    %v5316 = vrot.slane %v5304, 2
    %v5317 = vrot.slane %v5305, 2
    %v5320 = vsel %vm4928, %v5300, %v5312
    %v5321 = vsel %vm4932, %v5300, %v5312
    %v5323 = vrot.slane %v5321, 2
    %v5326 = vsel %vm4928, %v5301, %v5313
    %v5327 = vsel %vm4932, %v5301, %v5313
    %v5329 = vrot.slane %v5327, 2
    %v5332 = vsel %vm4928, %v5302, %v5314
    %v5333 = vsel %vm4932, %v5302, %v5314
    %v5335 = vrot.slane %v5333, 2
    %v5338 = vsel %vm4928, %v5303, %v5315
    %v5339 = vsel %vm4932, %v5303, %v5315
    %v5341 = vrot.slane %v5339, 2
    %v5344 = vsel %vm4928, %v5304, %v5316
    %v5345 = vsel %vm4932, %v5304, %v5316
    %v5347 = vrot.slane %v5345, 2
    %v5350 = vsel %vm4928, %v5305, %v5317
    %v5351 = vsel %vm4932, %v5305, %v5317
    %v5353 = vrot.slane %v5351, 2
    %v5354 = vshrl.u32 %v5320, 16
    %v5356 = vrot.slane %v5354, 6
    %v5357 = vshll.u32 %v5320, 16
    %v5359 = vrot.slane %v5357, 7
    %v5360 = vor.u32 %v5356, %v5359
    %v5361 = vrot.slane %v5360, 2
    %v5363 = vshll.u32 %v5323, 16
    %v5365 = vrot.slane %v5363, 7
    %v5366 = vsel %vm4972, %v5361, %v5365
    %v5367 = vshrl.u32 %v5326, 16
    %v5369 = vrot.slane %v5367, 6
    %v5370 = vshll.u32 %v5326, 16
    %v5372 = vrot.slane %v5370, 7
    %v5373 = vor.u32 %v5369, %v5372
    %v5374 = vrot.slane %v5373, 2
    %v5376 = vshll.u32 %v5329, 16
    %v5378 = vrot.slane %v5376, 7
    %v5379 = vsel %vm4972, %v5374, %v5378
    %v5380 = vshrl.u32 %v5332, 16
    %v5382 = vrot.slane %v5380, 6
    %v5383 = vshll.u32 %v5332, 16
    %v5385 = vrot.slane %v5383, 7
    %v5386 = vor.u32 %v5382, %v5385
    %v5387 = vrot.slane %v5386, 2
    %v5389 = vshll.u32 %v5335, 16
    %v5391 = vrot.slane %v5389, 7
    %v5392 = vsel %vm4972, %v5387, %v5391
    %v5393 = vshrl.u32 %v5338, 16
    %v5395 = vrot.slane %v5393, 6
    %v5396 = vshll.u32 %v5338, 16
    %v5398 = vrot.slane %v5396, 7
    %v5399 = vor.u32 %v5395, %v5398
    %v5400 = vrot.slane %v5399, 2
    %v5402 = vshll.u32 %v5341, 16
    %v5404 = vrot.slane %v5402, 7
    %v5405 = vsel %vm4972, %v5400, %v5404
    %v5406 = vshrl.u32 %v5344, 16
    %v5408 = vrot.slane %v5406, 6
    %v5409 = vshll.u32 %v5344, 16
    %v5411 = vrot.slane %v5409, 7
    %v5412 = vor.u32 %v5408, %v5411
    %v5413 = vrot.slane %v5412, 2
    %v5415 = vshll.u32 %v5347, 16
    %v5417 = vrot.slane %v5415, 7
    %v5418 = vsel %vm4972, %v5413, %v5417
    %v5419 = vshrl.u32 %v5350, 16
    %v5421 = vrot.slane %v5419, 6
    %v5422 = vshll.u32 %v5350, 16
    %v5424 = vrot.slane %v5422, 7
    %v5425 = vor.u32 %v5421, %v5424
    %v5426 = vrot.slane %v5425, 2
    %v5428 = vshll.u32 %v5353, 16
    %v5430 = vrot.slane %v5428, 7
    %v5431 = vsel %vm4972, %v5426, %v5430
    %5433 = vst [vmem:[#allocation1] ss:$4 sm:$0xff] %v5366
    %s5435 = scalar_lea.vmem [#allocation1], 1
    %5436 = vst [vmem:[%s5435] ss:$4 sm:$0xff] %v5379
    %s5438 = scalar_lea.vmem [#allocation1], 2
    %5439 = vst [vmem:[%s5438] ss:$4 sm:$0xff] %v5392
    %s5441 = scalar_lea.vmem [#allocation1], 3
    %5442 = vst [vmem:[%s5441] ss:$4 sm:$0xff] %v5405
    %v5443 = vld.sshfl [vmem:[#allocation1] sm:$0xff pattern:$0x73625140]
    %5444 = vst [vmem:[#allocation1] ss:$4 sm:$0xff] %v5379
    %s5445 = scalar_lea.vmem [#allocation1], 1
    %5446 = vst [vmem:[%s5445] ss:$4 sm:$0xff] %v5392
    %s5447 = scalar_lea.vmem [#allocation1], 2
    %5448 = vst [vmem:[%s5447] ss:$4 sm:$0xff] %v5405
    %s5450 = scalar_lea.vmem [#allocation1], 3
    %5451 = vst [vmem:[%s5450] ss:$4 sm:$0xff] %v5418
    %v5452 = vld.sshfl [vmem:[#allocation1] sm:$0xff pattern:$0x73625140]
    %5454 = vrot.lane.b32.xlu0 %v5452, 64
    %v5455 = vpop.permute.xlu0 %5454
    %5456 = vst [vmem:[#allocation1] ss:$4 sm:$0xff] %v5392
    %s5457 = scalar_lea.vmem [#allocation1], 1
    %5458 = vst [vmem:[%s5457] ss:$4 sm:$0xff] %v5405
    %s5459 = scalar_lea.vmem [#allocation1], 2
    %5460 = vst [vmem:[%s5459] ss:$4 sm:$0xff] %v5418
    %s5462 = scalar_lea.vmem [#allocation1], 3
    %5463 = vst [vmem:[%s5462] ss:$4 sm:$0xff] %v5431
    %v5464 = vld.sshfl [vmem:[#allocation1] sm:$0xff pattern:$0x73625140]
    %v5467 = vsel %vm2673, %v5443, %v5455
    %v5469 = vunpack.c.l.b16 %v5467
    %v5470 = vunpack.c.l.b16 %v5464
    %v5471 = vunpack.c.h.b16 %v5467
    %v5472 = vunpack.c.h.b16 %v5464
    %v5473 = vpack.c.b16 %v5470, %v5469
    %v5474 = vpack.c.b16 %v5472, %v5471
    %5475 = vrot.lane.b32.xlu0 %v5473, 64
    %v5476 = vpop.permute.xlu0 %5475
    %5477 = vrot.lane.b32.xlu0 %v5474, 64
    %v5478 = vpop.permute.xlu0 %5477
    %v5479 = vrot.slane %v5476, 4
    %v5480 = vrot.slane %v5478, 4
    %v5481 = vsel %vm3191, %v5479, %v5476
    %v5482 = vsel %vm3191, %v5480, %v5478
    %5485 = vst.msk [vmem:[#allocation5 + $0x2c] sm:$0xff] %vm5105, %v5481
    %5486 = vst.msk [vmem:[#allocation5 + $0x40] sm:$0xff] %vm5105, %v5482
    %v5487 = vld [vmem:[%s5246] sm:$0x6]
    %v5488 = vld [vmem:[%s5246 + $0x4] sm:$0x6]
    %v5489 = vld [vmem:[%s5246 + $0x8] sm:$0x6]
    %v5490 = vld [vmem:[%s5246 + $0xc] sm:$0x6]
    %v5491 = vld [vmem:[%s5246 + $0x10] sm:$0x6]
    %v5492 = vld [vmem:[%s5246 + $0x14] sm:$0x6]
    %v5499 = vrot.slane %v5487, 2
    %v5500 = vrot.slane %v5488, 2
    %v5501 = vrot.slane %v5489, 2
    %v5502 = vrot.slane %v5490, 2
    %v5503 = vrot.slane %v5491, 2
    %v5504 = vrot.slane %v5492, 2
    %v5507 = vsel %vm4928, %v5487, %v5499
    %v5509 = vsel %vm4932, %v5487, %v5499
    %v5511 = vrot.slane %v5509, 2
    %v5514 = vsel %vm4928, %v5488, %v5500
    %v5516 = vsel %vm4932, %v5488, %v5500
    %v5518 = vrot.slane %v5516, 2
    %v5521 = vsel %vm4928, %v5489, %v5501
    %v5523 = vsel %vm4932, %v5489, %v5501
    %v5525 = vrot.slane %v5523, 2
    %v5528 = vsel %vm4928, %v5490, %v5502
    %v5530 = vsel %vm4932, %v5490, %v5502
    %v5532 = vrot.slane %v5530, 2
    %v5535 = vsel %vm4928, %v5491, %v5503
    %v5537 = vsel %vm4932, %v5491, %v5503
    %v5539 = vrot.slane %v5537, 2
    %v5542 = vsel %vm4928, %v5492, %v5504
    %v5544 = vsel %vm4932, %v5492, %v5504
    %v5546 = vrot.slane %v5544, 2
    %v5547 = vrot.slane %v5507, 7
    %v5548 = vrot.slane %v5547, 2
    %v5549 = vrot.slane %v5511, 7
    %v5550 = vsel %vm5174, %v5548, %v5549
    %v5551 = vrot.slane %v5514, 7
    %v5552 = vrot.slane %v5551, 2
    %v5553 = vrot.slane %v5518, 7
    %v5554 = vsel %vm5174, %v5552, %v5553
    %v5555 = vrot.slane %v5521, 7
    %v5556 = vrot.slane %v5555, 2
    %v5557 = vrot.slane %v5525, 7
    %v5558 = vsel %vm5174, %v5556, %v5557
    %v5559 = vrot.slane %v5528, 7
    %v5560 = vrot.slane %v5559, 2
    %v5561 = vrot.slane %v5532, 7
    %v5562 = vsel %vm5174, %v5560, %v5561
    %v5563 = vrot.slane %v5535, 7
    %v5564 = vrot.slane %v5563, 2
    %v5565 = vrot.slane %v5539, 7
    %v5566 = vsel %vm5174, %v5564, %v5565
    %v5567 = vrot.slane %v5542, 7
    %v5568 = vrot.slane %v5567, 2
    %v5569 = vrot.slane %v5546, 7
    %v5570 = vsel %vm5174, %v5568, %v5569
    %5572 = vst [vmem:[#allocation1] ss:$4 sm:$0xff] %v5550
    %s5574 = scalar_lea.vmem [#allocation1], 1
    %5575 = vst [vmem:[%s5574] ss:$4 sm:$0xff] %v5554
    %s5577 = scalar_lea.vmem [#allocation1], 2
    %5578 = vst [vmem:[%s5577] ss:$4 sm:$0xff] %v5558
    %s5580 = scalar_lea.vmem [#allocation1], 3
    %5581 = vst [vmem:[%s5580] ss:$4 sm:$0xff] %v5562
    %v5582 = vld.sshfl [vmem:[#allocation1] sm:$0xff pattern:$0x73625140]
    %5583 = vst [vmem:[#allocation1] ss:$4 sm:$0xff] %v5554
    %s5584 = scalar_lea.vmem [#allocation1], 1
    %5585 = vst [vmem:[%s5584] ss:$4 sm:$0xff] %v5558
    %s5586 = scalar_lea.vmem [#allocation1], 2
    %5587 = vst [vmem:[%s5586] ss:$4 sm:$0xff] %v5562
    %s5589 = scalar_lea.vmem [#allocation1], 3
    %5590 = vst [vmem:[%s5589] ss:$4 sm:$0xff] %v5566
    %v5591 = vld.sshfl [vmem:[#allocation1] sm:$0xff pattern:$0x73625140]
    %5593 = vrot.lane.b32.xlu0 %v5591, 64
    %v5594 = vpop.permute.xlu0 %5593
    %5595 = vst [vmem:[#allocation1] ss:$4 sm:$0xff] %v5558
    %s5596 = scalar_lea.vmem [#allocation1], 1
    %5597 = vst [vmem:[%s5596] ss:$4 sm:$0xff] %v5562
    %s5598 = scalar_lea.vmem [#allocation1], 2
    %5599 = vst [vmem:[%s5598] ss:$4 sm:$0xff] %v5566
    %s5601 = scalar_lea.vmem [#allocation1], 3
    %5602 = vst [vmem:[%s5601] ss:$4 sm:$0xff] %v5570
    %v5603 = vld.sshfl [vmem:[#allocation1] sm:$0xff pattern:$0x73625140]
    %v5606 = vsel %vm2673, %v5582, %v5594
    %v5608 = vunpack.c.l.b16 %v5606
    %v5609 = vunpack.c.l.b16 %v5603
    %v5610 = vunpack.c.h.b16 %v5606
    %v5611 = vunpack.c.h.b16 %v5603
    %v5612 = vpack.c.b16 %v5609, %v5608
    %v5613 = vpack.c.b16 %v5611, %v5610
    %5616 = vst.msk [vmem:[#allocation5 + $0x34] sm:$0xff] %vm4907, %v5612
    %5617 = vst.msk [vmem:[#allocation5 + $0x48] sm:$0xff] %vm4907, %v5613
    %v5618 = vld [vmem:[#allocation5] sm:$0xff]
    %v5619 = vld [vmem:[#allocation5 + $0x8] sm:$0xff]
    %v5620 = vld [vmem:[#allocation5 + $0x10] sm:$0xf]
    %v5621 = vld [vmem:[#allocation5 + $0x14] sm:$0xff]
    %v5622 = vld [vmem:[#allocation5 + $0x1c] sm:$0xff]
    %v5623 = vld [vmem:[#allocation5 + $0x24] sm:$0xf]
    %v5624 = vld [vmem:[#allocation5 + $0x28] sm:$0xff]
    %v5625 = vld [vmem:[#allocation5 + $0x30] sm:$0xff]
    %v5626 = vld [vmem:[#allocation5 + $0x38] sm:$0xf]
    %v5627 = vld [vmem:[#allocation5 + $0x3c] sm:$0xff]
    %v5628 = vld [vmem:[#allocation5 + $0x44] sm:$0xff]
    %v5629 = vld [vmem:[#allocation5 + $0x4c] sm:$0xf]
    %v5630 = vld [vmem:[%s3] sm:$0xf]
    %v5631 = vld [vmem:[%s3 + $0x4] sm:$0xf]
    %v5632 = vld [vmem:[%s3 + $0x8] sm:$0xf]
    %v5633 = vld [vmem:[%s3 + $0xc] sm:$0xf]
    %v5634 = vld [vmem:[%s3 + $0x10] sm:$0xf]
    %v5635 = vld [vmem:[%s3 + $0x14] sm:$0xf]
    %v5636 = vld [vmem:[%s3 + $0x18] sm:$0xf]
    %v5637 = vld [vmem:[%s3 + $0x1c] sm:$0xf]
    %v5638 = vld [vmem:[%s3 + $0x20] sm:$0xf]
    %v5639 = vld [vmem:[%s3 + $0x24] sm:$0xf]
    %v5640 = vld [vmem:[%s3 + $0x28] sm:$0xf]
    %v5641 = vld [vmem:[%s3 + $0x2c] sm:$0xf]
    %v5642 = vld [vmem:[%s3 + $0x30] sm:$0xf]
    %v5643 = vld [vmem:[%s3 + $0x34] sm:$0xf]
    %v5644 = vld [vmem:[%s3 + $0x38] sm:$0xf]
    %v5645 = vld [vmem:[%s3 + $0x3c] sm:$0xf]
    %v5646 = vld [vmem:[%s3 + $0x40] sm:$0xf]
    %v5647 = vld [vmem:[%s3 + $0x44] sm:$0xf]
    %v5648 = vld [vmem:[%s3 + $0x48] sm:$0xf]
    %v5649 = vld [vmem:[%s3 + $0x4c] sm:$0xf]
    %v5650 = vld [vmem:[%s3 + $0x50] sm:$0xf]
    %v5651 = vld [vmem:[%s3 + $0x54] sm:$0xf]
    %v5652 = vld [vmem:[%s3 + $0x58] sm:$0xf]
    %v5653 = vld [vmem:[%s3 + $0x5c] sm:$0xf]
    %v5654 = vld [vmem:[%s3 + $0x60] sm:$0xf]
    %v5655 = vld [vmem:[%s3 + $0x64] sm:$0xf]
    %v5656 = vld [vmem:[%s3 + $0x68] sm:$0xf]
    %v5657 = vld [vmem:[%s3 + $0x6c] sm:$0xf]
    %v5658 = vld [vmem:[%s3 + $0x70] sm:$0xf]
    %v5659 = vld [vmem:[%s3 + $0x74] sm:$0xf]
    %v5660 = vld [vmem:[%s3 + $0x78] sm:$0xf]
    %v5661 = vld [vmem:[%s3 + $0x7c] sm:$0xf]
    %v5662 = vld [vmem:[%s3 + $0x80] sm:$0xf]
    %v5663 = vld [vmem:[%s3 + $0x84] sm:$0xf]
    %v5664 = vld [vmem:[%s3 + $0x88] sm:$0xf]
    %v5665 = vld [vmem:[%s3 + $0x8c] sm:$0xf]
    %v5666 = vld [vmem:[%s3 + $0x90] sm:$0xf]
    %v5667 = vld [vmem:[%s3 + $0x94] sm:$0xf]
    %v5668 = vld [vmem:[%s3 + $0x98] sm:$0xf]
    %v5669 = vld [vmem:[%s3 + $0x9c] sm:$0xf]
    %v5670 = vld [vmem:[%s3 + $0xa0] sm:$0xf]
    %v5671 = vld [vmem:[%s3 + $0xa4] sm:$0xf]
    %v5672 = vld [vmem:[%s3 + $0xa8] sm:$0xf]
    %v5673 = vld [vmem:[%s3 + $0xac] sm:$0xf]
    %v5674 = vld [vmem:[%s3 + $0xb0] sm:$0xf]
    %v5675 = vld [vmem:[%s3 + $0xb4] sm:$0xf]
    %v5676 = vld [vmem:[%s3 + $0xb8] sm:$0xf]
    %v5677 = vld [vmem:[%s3 + $0xbc] sm:$0xf]
    %v5678 = vld [vmem:[%s3 + $0xc0] sm:$0xf]
    %v5679 = vld [vmem:[%s3 + $0xc4] sm:$0xf]
    %v5680 = vld [vmem:[%s3 + $0xc8] sm:$0xf]
    %v5681 = vld [vmem:[%s3 + $0xcc] sm:$0xf]
    %v5682 = vld [vmem:[%s3 + $0xd0] sm:$0xf]
    %v5683 = vld [vmem:[%s3 + $0xd4] sm:$0xf]
    %v5684 = vld [vmem:[%s3 + $0xd8] sm:$0xf]
    %v5685 = vld [vmem:[%s3 + $0xdc] sm:$0xf]
    %v5686 = vld [vmem:[%s3 + $0xe0] sm:$0xf]
    %v5687 = vld [vmem:[%s3 + $0xe4] sm:$0xf]
    %v5688 = vld [vmem:[%s3 + $0xe8] sm:$0xf]
    %v5689 = vld [vmem:[%s3 + $0xec] sm:$0xf]
    %v5690 = vld [vmem:[%s3 + $0xf0] sm:$0xf]
    %v5691 = vld [vmem:[%s3 + $0xf4] sm:$0xf]
    %v5692 = vld [vmem:[%s3 + $0xf8] sm:$0xf]
    %v5693 = vld [vmem:[%s3 + $0xfc] sm:$0xf]
    %v5694 = vld [vmem:[%s3 + $0x100] sm:$0xf]
    %v5695 = vld [vmem:[%s3 + $0x104] sm:$0xf]
    %v5696 = vld [vmem:[%s3 + $0x108] sm:$0xf]
    %v5697 = vld [vmem:[%s3 + $0x10c] sm:$0xf]
    %v5698 = vld [vmem:[%s3 + $0x110] sm:$0xf]
    %v5699 = vld [vmem:[%s3 + $0x114] sm:$0xf]
    %v5700 = vld [vmem:[%s3 + $0x118] sm:$0xf]
    %v5701 = vld [vmem:[%s3 + $0x11c] sm:$0xf]
    %v5703 = vperm.slane %v23, 0
    %v5704 = vperm.slane %v23, 1
    %v5717 = vunpack.c.l.b16 %v5618
    %v5718 = vunpack.c.h.b16 %v5618
    %v5719 = vunpack.c.l.b16 %v5619
    %v5720 = vunpack.c.h.b16 %v5619
    %v5721 = vunpack.c.l.b16 %v5620
    %v5722 = vunpack.c.l.b16 %v5621
    %v5723 = vunpack.c.h.b16 %v5621
    %v5724 = vunpack.c.l.b16 %v5622
    %v5725 = vunpack.c.h.b16 %v5622
    %v5726 = vunpack.c.l.b16 %v5623
    %v5727 = vunpack.c.l.b16 %v5624
    %v5728 = vunpack.c.h.b16 %v5624
    %v5729 = vunpack.c.l.b16 %v5625
    %v5730 = vunpack.c.h.b16 %v5625
    %v5731 = vunpack.c.l.b16 %v5626
    %v5732 = vunpack.c.l.b16 %v5627
    %v5733 = vunpack.c.h.b16 %v5627
    %v5734 = vunpack.c.l.b16 %v5628
    %v5735 = vunpack.c.h.b16 %v5628
    %v5736 = vunpack.c.l.b16 %v5629
    %v5737 = vpack.c.b16 %v5722, %v5717
    %v5738 = vpack.c.b16 %v5723, %v5718
    %v5739 = vpack.c.b16 %v5724, %v5719
    %v5740 = vpack.c.b16 %v5725, %v5720
    %v5741 = vpack.c.b16 %v5726, %v5721
    %v5742 = vpack.c.b16 %v5732, %v5727
    %v5743 = vpack.c.b16 %v5733, %v5728
    %v5744 = vpack.c.b16 %v5734, %v5729
    %v5745 = vpack.c.b16 %v5735, %v5730
    %v5746 = vpack.c.b16 %v5736, %v5731
    %v5827 = vunpack.c.l.b16 %v5630
    %v5828 = vunpack.c.l.b16 %v5631
    %v5829 = vunpack.c.l.b16 %v5632
    %v5830 = vunpack.c.l.b16 %v5633
    %v5831 = vunpack.c.l.b16 %v5634
    %v5832 = vunpack.c.l.b16 %v5635
    %v5833 = vunpack.c.l.b16 %v5636
    %v5834 = vunpack.c.l.b16 %v5637
    %v5835 = vunpack.c.l.b16 %v5638
    %v5836 = vunpack.c.l.b16 %v5639
    %v5837 = vunpack.c.l.b16 %v5640
    %v5838 = vunpack.c.l.b16 %v5641
    %v5839 = vunpack.c.l.b16 %v5642
    %v5840 = vunpack.c.l.b16 %v5643
    %v5841 = vunpack.c.l.b16 %v5644
    %v5842 = vunpack.c.l.b16 %v5645
    %v5843 = vunpack.c.l.b16 %v5646
    %v5844 = vunpack.c.l.b16 %v5647
    %v5845 = vunpack.c.l.b16 %v5648
    %v5846 = vunpack.c.l.b16 %v5649
    %v5847 = vunpack.c.l.b16 %v5650
    %v5848 = vunpack.c.l.b16 %v5651
    %v5849 = vunpack.c.l.b16 %v5652
    %v5850 = vunpack.c.l.b16 %v5653
    %v5851 = vunpack.c.l.b16 %v5654
    %v5852 = vunpack.c.l.b16 %v5655
    %v5853 = vunpack.c.l.b16 %v5656
    %v5854 = vunpack.c.l.b16 %v5657
    %v5855 = vunpack.c.l.b16 %v5658
    %v5856 = vunpack.c.l.b16 %v5659
    %v5857 = vunpack.c.l.b16 %v5660
    %v5858 = vunpack.c.l.b16 %v5661
    %v5859 = vunpack.c.l.b16 %v5662
    %v5860 = vunpack.c.l.b16 %v5663
    %v5861 = vunpack.c.l.b16 %v5664
    %v5862 = vunpack.c.l.b16 %v5665
    %v5863 = vunpack.c.l.b16 %v5666
    %v5864 = vunpack.c.l.b16 %v5667
    %v5865 = vunpack.c.l.b16 %v5668
    %v5866 = vunpack.c.l.b16 %v5669
    %v5867 = vunpack.c.l.b16 %v5670
    %v5868 = vunpack.c.l.b16 %v5671
    %v5869 = vunpack.c.l.b16 %v5672
    %v5870 = vunpack.c.l.b16 %v5673
    %v5871 = vunpack.c.l.b16 %v5674
    %v5872 = vunpack.c.l.b16 %v5675
    %v5873 = vunpack.c.l.b16 %v5676
    %v5874 = vunpack.c.l.b16 %v5677
    %v5875 = vunpack.c.l.b16 %v5678
    %v5876 = vunpack.c.l.b16 %v5679
    %v5877 = vunpack.c.l.b16 %v5680
    %v5878 = vunpack.c.l.b16 %v5681
    %v5879 = vunpack.c.l.b16 %v5682
    %v5880 = vunpack.c.l.b16 %v5683
    %v5881 = vunpack.c.l.b16 %v5684
    %v5882 = vunpack.c.l.b16 %v5685
    %v5883 = vunpack.c.l.b16 %v5686
    %v5884 = vunpack.c.l.b16 %v5687
    %v5885 = vunpack.c.l.b16 %v5688
    %v5886 = vunpack.c.l.b16 %v5689
    %v5887 = vunpack.c.l.b16 %v5690
    %v5888 = vunpack.c.l.b16 %v5691
    %v5889 = vunpack.c.l.b16 %v5692
    %v5890 = vunpack.c.l.b16 %v5693
    %v5891 = vunpack.c.l.b16 %v5694
    %v5892 = vunpack.c.l.b16 %v5695
    %v5893 = vunpack.c.l.b16 %v5696
    %v5894 = vunpack.c.l.b16 %v5697
    %v5895 = vunpack.c.l.b16 %v5698
    %v5896 = vunpack.c.l.b16 %v5699
    %v5897 = vunpack.c.l.b16 %v5700
    %v5898 = vunpack.c.l.b16 %v5701
    %v5899 = vpack.c.b16 %v5828, %v5827
    %v5900 = vpack.c.b16 %v5830, %v5829
    %v5901 = vpack.c.b16 %v5832, %v5831
    %v5902 = vpack.c.b16 %v5834, %v5833
    %v5903 = vpack.c.b16 %v5836, %v5835
    %v5904 = vpack.c.b16 %v5838, %v5837
    %v5905 = vpack.c.b16 %v5840, %v5839
    %v5906 = vpack.c.b16 %v5842, %v5841
    %v5907 = vpack.c.b16 %v5844, %v5843
    %v5908 = vpack.c.b16 %v5846, %v5845
    %v5909 = vpack.c.b16 %v5848, %v5847
    %v5910 = vpack.c.b16 %v5850, %v5849
    %v5911 = vpack.c.b16 %v5852, %v5851
    %v5912 = vpack.c.b16 %v5854, %v5853
    %v5913 = vpack.c.b16 %v5856, %v5855
    %v5914 = vpack.c.b16 %v5858, %v5857
    %v5915 = vpack.c.b16 %v5860, %v5859
    %v5916 = vpack.c.b16 %v5862, %v5861
    %v5917 = vpack.c.b16 %v5864, %v5863
    %v5918 = vpack.c.b16 %v5866, %v5865
    %v5919 = vpack.c.b16 %v5868, %v5867
    %v5920 = vpack.c.b16 %v5870, %v5869
    %v5921 = vpack.c.b16 %v5872, %v5871
    %v5922 = vpack.c.b16 %v5874, %v5873
    %v5923 = vpack.c.b16 %v5876, %v5875
    %v5924 = vpack.c.b16 %v5878, %v5877
    %v5925 = vpack.c.b16 %v5880, %v5879
    %v5926 = vpack.c.b16 %v5882, %v5881
    %v5927 = vpack.c.b16 %v5884, %v5883
    %v5928 = vpack.c.b16 %v5886, %v5885
    %v5929 = vpack.c.b16 %v5888, %v5887
    %v5930 = vpack.c.b16 %v5890, %v5889
    %v5931 = vpack.c.b16 %v5892, %v5891
    %v5932 = vpack.c.b16 %v5894, %v5893
    %v5933 = vpack.c.b16 %v5896, %v5895
    %v5934 = vpack.c.b16 %v5898, %v5897
    %5971 = vrot.lane.b32.xlu0 %v5703, 32
    %v5972 = vpop.permute.xlu0 %5971
    %5973 = vrot.lane.b32.xlu0 %v5704, 32
    %v5974 = vpop.permute.xlu0 %5973
    %v5975 = vsel %vm603, %v5972, %v5974
    %v5978 = vsel %vm2673, %v5741, 0
    %v5981 = vsel %vm2673, %v5746, 0
    %5983 = vmatpush.bf16.msra.mxu0 %v5906
    %5984 = vmatpush.bf16.msra.mxu0 %v5905
    %5985 = vmatpush.bf16.msra.mxu0 %v5904
    %5986 = vmatpush.bf16.msra.mxu0 %v5903
    %5987 = vmatpush.bf16.msra.mxu0 %v5902
    %5988 = vmatpush.bf16.msra.mxu0 %v5901
    %5989 = vmatpush.bf16.msra.mxu0 %v5900
    %5990 = vmatpush.bf16.msra.mxu0 %v5899
    %5991 = vmatmul.bf16.gmra.mxu0 %v5737
    %v5992 = vpop.f32.mrf.mxu0
    %v5993 = vadd.f32 %v5975, %v5992
    %v5994 = vpop.f32.mrf.mxu0
    %v5995 = vadd.f32 %v5975, %v5994
    %5996 = vmatmul.bf16.gmra.mxu0 %v5742
    %v5997 = vpop.f32.mrf.mxu0
    %v5998 = vadd.f32 %v5975, %v5997
    %v5999 = vpop.f32.mrf.mxu0
    %v6000 = vadd.f32 %v5975, %v5999
    %6001 = vdwg.mxu0
    %6002 = vmatpush.bf16.msra.mxu0 %v5914
    %6003 = vmatpush.bf16.msra.mxu0 %v5913
    %6004 = vmatpush.bf16.msra.mxu0 %v5912
    %6005 = vmatpush.bf16.msra.mxu0 %v5911
    %6006 = vmatpush.bf16.msra.mxu0 %v5910
    %6007 = vmatpush.bf16.msra.mxu0 %v5909
    %6008 = vmatpush.bf16.msra.mxu0 %v5908
    %6009 = vmatpush.bf16.msra.mxu0 %v5907
    %6010 = vmatmul.bf16.gmra.mxu0 %v5738
    %v6011 = vpop.f32.mrf.mxu0
    %v6012 = vadd.f32 %v5993, %v6011
    %v6013 = vpop.f32.mrf.mxu0
    %v6014 = vadd.f32 %v5995, %v6013
    %6015 = vmatmul.bf16.gmra.mxu0 %v5743
    %v6016 = vpop.f32.mrf.mxu0
    %v6017 = vadd.f32 %v5998, %v6016
    %v6018 = vpop.f32.mrf.mxu0
    %v6019 = vadd.f32 %v6000, %v6018
    %6020 = vdwg.mxu0
    %6021 = vmatpush.bf16.msra.mxu0 %v5922
    %6022 = vmatpush.bf16.msra.mxu0 %v5921
    %6023 = vmatpush.bf16.msra.mxu0 %v5920
    %6024 = vmatpush.bf16.msra.mxu0 %v5919
    %6025 = vmatpush.bf16.msra.mxu0 %v5918
    %6026 = vmatpush.bf16.msra.mxu0 %v5917
    %6027 = vmatpush.bf16.msra.mxu0 %v5916
    %6028 = vmatpush.bf16.msra.mxu0 %v5915
    %6029 = vmatmul.bf16.gmra.mxu0 %v5739
    %v6030 = vpop.f32.mrf.mxu0
    %v6031 = vadd.f32 %v6012, %v6030
    %v6032 = vpop.f32.mrf.mxu0
    %v6033 = vadd.f32 %v6014, %v6032
    %6034 = vmatmul.bf16.gmra.mxu0 %v5744
    %v6035 = vpop.f32.mrf.mxu0
    %v6036 = vadd.f32 %v6017, %v6035
    %v6037 = vpop.f32.mrf.mxu0
    %v6038 = vadd.f32 %v6019, %v6037
    %6039 = vdwg.mxu0
    %6040 = vmatpush.bf16.msra.mxu0 %v5930
    %6041 = vmatpush.bf16.msra.mxu0 %v5929
    %6042 = vmatpush.bf16.msra.mxu0 %v5928
    %6043 = vmatpush.bf16.msra.mxu0 %v5927
    %6044 = vmatpush.bf16.msra.mxu0 %v5926
    %6045 = vmatpush.bf16.msra.mxu0 %v5925
    %6046 = vmatpush.bf16.msra.mxu0 %v5924
    %6047 = vmatpush.bf16.msra.mxu0 %v5923
    %6048 = vmatmul.bf16.gmra.mxu0 %v5740
    %v6049 = vpop.f32.mrf.mxu0
    %v6050 = vadd.f32 %v6031, %v6049
    %v6051 = vpop.f32.mrf.mxu0
    %v6052 = vadd.f32 %v6033, %v6051
    %6053 = vmatmul.bf16.gmra.mxu0 %v5745
    %v6054 = vpop.f32.mrf.mxu0
    %v6055 = vadd.f32 %v6036, %v6054
    %v6056 = vpop.f32.mrf.mxu0
    %v6057 = vadd.f32 %v6038, %v6056
    %6058 = vdwg.mxu0
    %6059 = vmatpush.bf16.msra.mxu0 0
    %6060 = vmatpush.bf16.msra.mxu0 0
    %6061 = vmatpush.bf16.msra.mxu0 0
    %6062 = vmatpush.bf16.msra.mxu0 0
    %6063 = vmatpush.bf16.msra.mxu0 %v5934
    %6064 = vmatpush.bf16.msra.mxu0 %v5933
    %6065 = vmatpush.bf16.msra.mxu0 %v5932
    %6066 = vmatpush.bf16.msra.mxu0 %v5931
    %6067 = vmatmul.bf16.gmra.mxu0 %v5978
    %v6068 = vpop.f32.mrf.mxu0
    %v6069 = vadd.f32 %v6050, %v6068
    %v6070 = vpop.f32.mrf.mxu0
    %v6071 = vadd.f32 %v6052, %v6070
    %6072 = vmatmul.bf16.gmra.mxu0 %v5981
    %v6073 = vpop.f32.mrf.mxu0
    %v6074 = vadd.f32 %v6055, %v6073
    %v6075 = vpop.f32.mrf.mxu0
    %v6076 = vadd.f32 %v6057, %v6075
    %6077 = vdwg.mxu0
    %v6078 = vmax.f32 %v6069, 0.0
    %v6079 = vmax.f32 %v6071, 0.0
    %v6080 = vmax.f32 %v6074, 0.0
    %v6081 = vmax.f32 %v6076, 0.0
    %v6086 = vrot.slane %v6078, 4
    %v6087 = vrot.slane %v6079, 4
    %v6088 = vrot.slane %v6080, 4
    %v6089 = vrot.slane %v6081, 4
    %v6094 = vsel %vm4906, %v6078, -inf
    %v6095 = vsel %vm4906, %v6086, -inf
    %v6096 = vmax.f32 %v6094, %v6095
    %v6097 = vsel %vm4906, %v6079, -inf
    %v6098 = vsel %vm4906, %v6087, -inf
    %v6099 = vmax.f32 %v6097, %v6098
    %v6100 = vsel %vm4906, %v6080, -inf
    %v6101 = vsel %vm4906, %v6088, -inf
    %v6102 = vmax.f32 %v6100, %v6101
    %v6103 = vsel %vm4906, %v6081, -inf
    %v6104 = vsel %vm4906, %v6089, -inf
    %v6105 = vmax.f32 %v6103, %v6104
    %v6110 = vrot.slane %v6096, 2
    %v6111 = vrot.slane %v6099, 2
    %v6112 = vrot.slane %v6102, 2
    %v6113 = vrot.slane %v6105, 2
    %v6114 = vsel %vm4928, %v6096, %v6110
    %v6115 = vsel %vm4932, %v6096, %v6110
    %v6116 = vrot.slane %v6115, 2
    %v6117 = vsel %vm4928, %v6099, %v6111
    %v6118 = vsel %vm4932, %v6099, %v6111
    %v6119 = vrot.slane %v6118, 2
    %v6120 = vsel %vm4928, %v6102, %v6112
    %v6121 = vsel %vm4932, %v6102, %v6112
    %v6122 = vrot.slane %v6121, 2
    %v6123 = vsel %vm4928, %v6105, %v6113
    %v6124 = vsel %vm4932, %v6105, %v6113
    %v6125 = vrot.slane %v6124, 2
    %v6134 = vsel %vm4928, %v6114, -inf
    %v6135 = vrot.slane %v6134, 4
    %v6136 = vmax.f32 %v6134, %v6135
    %v6137 = vrot.slane %v6136, 2
    %v6138 = vmax.f32 %v6136, %v6137
    %v6139 = vrot.slane %v6138, 1
    %v6140 = vmax.f32 %v6138, %v6139
    %v6141 = vsel %vm4928, %v6116, -inf
    %v6142 = vrot.slane %v6141, 4
    %v6143 = vmax.f32 %v6141, %v6142
    %v6144 = vrot.slane %v6143, 2
    %v6145 = vmax.f32 %v6143, %v6144
    %v6146 = vrot.slane %v6145, 1
    %v6147 = vmax.f32 %v6145, %v6146
    %v6148 = vsel %vm4928, %v6117, -inf
    %v6149 = vrot.slane %v6148, 4
    %v6150 = vmax.f32 %v6148, %v6149
    %v6151 = vrot.slane %v6150, 2
    %v6152 = vmax.f32 %v6150, %v6151
    %v6153 = vrot.slane %v6152, 1
    %v6154 = vmax.f32 %v6152, %v6153
    %v6155 = vsel %vm4928, %v6119, -inf
    %v6156 = vrot.slane %v6155, 4
    %v6157 = vmax.f32 %v6155, %v6156
    %v6158 = vrot.slane %v6157, 2
    %v6159 = vmax.f32 %v6157, %v6158
    %v6160 = vrot.slane %v6159, 1
    %v6161 = vmax.f32 %v6159, %v6160
    %v6162 = vsel %vm4928, %v6120, -inf
    %v6163 = vrot.slane %v6162, 4
    %v6164 = vmax.f32 %v6162, %v6163
    %v6165 = vrot.slane %v6164, 2
    %v6166 = vmax.f32 %v6164, %v6165
    %v6167 = vrot.slane %v6166, 1
    %v6168 = vmax.f32 %v6166, %v6167
    %v6169 = vsel %vm4928, %v6122, -inf
    %v6170 = vrot.slane %v6169, 4
    %v6171 = vmax.f32 %v6169, %v6170
    %v6172 = vrot.slane %v6171, 2
    %v6173 = vmax.f32 %v6171, %v6172
    %v6174 = vrot.slane %v6173, 1
    %v6175 = vmax.f32 %v6173, %v6174
    %v6176 = vsel %vm4928, %v6123, -inf
    %v6177 = vrot.slane %v6176, 4
    %v6178 = vmax.f32 %v6176, %v6177
    %v6179 = vrot.slane %v6178, 2
    %v6180 = vmax.f32 %v6178, %v6179
    %v6181 = vrot.slane %v6180, 1
    %v6182 = vmax.f32 %v6180, %v6181
    %v6183 = vsel %vm4928, %v6125, -inf
    %v6184 = vrot.slane %v6183, 4
    %v6185 = vmax.f32 %v6183, %v6184
    %v6186 = vrot.slane %v6185, 2
    %v6187 = vmax.f32 %v6185, %v6186
    %v6188 = vrot.slane %v6187, 1
    %v6189 = vmax.f32 %v6187, %v6188
    %vm6198 = vcmask 1041409
    %v6199 = vsel %vm6198, %v6147, %v6140
    %v6200 = vsel %vm2341, %v6154, %v6199
    %v6201 = vsel %vm2343, %v6161, %v6200
    %v6202 = vsel %vm2345, %v6168, %v6201
    %v6203 = vsel %vm2347, %v6175, %v6202
    %v6204 = vsel %vm2349, %v6182, %v6203
    %v6205 = vsel %vm2351, %v6189, %v6204
    %6207 = vst [vmem:[#allocation6] sm:$0xff] %v6205
    // Predicated region
    $region22: #{frame_cnn_forward.1} parent=1 // pred_check
      _
    $region23: #{frame_cnn_forward.1} parent=1 // pred_check_branch
      %6209 = sbr.rel (0) target = $region25
    $region24: #{frame_cnn_forward.1} parent=1 // pred_region
      %6211 = vsyncadd [#allocation7], 0
      %s6213 = sshll.u32 [#allocation6], 4
      %s6214 = int_to_ptr.vmem [resolvable:$true] %s6213
      %s6215 = sshll.u32 %s5, 4
      %s6216 = int_to_ptr.hbm [resolvable:$true] %s6215
      %6218 = dma.vmem_to_hbm [thread:$0]  %s6214, 128, %s6216, [#allocation7]
    $region25: #{frame_cnn_forward.1} parent=1 // pred_fallthru
      _
    // Predicated region
    $region26: #{frame_cnn_forward.1} parent=1 // pred_check
      _
    $region27: #{frame_cnn_forward.1} parent=1 // pred_check_branch
      %6220 = sbr.rel (0) target = $region29
    $region28: #{frame_cnn_forward.1} parent=1 // pred_region
      %6222 = dma.done [#allocation7], 128
    $region29: #{frame_cnn_forward.1} parent=1 // pred_fallthru
      _
    %6223 = vsyncpa [#allocation7], 1

</llo_original>
